<compile_context>
chip_gen: v7x
topology: tpu7x:2x2x1
jax: 0.10.0
libtpu: 0.0.40
codegen_flags: <defaults>
</compile_context>

<pallas_src>
import functools

import jax
import jax.numpy as jnp
from jax.experimental import pallas as pl
from jax.experimental.pallas import tpu as pltpu


def _round_up(v, m):
    return (v + m - 1) // m * m


def _node_model_kernel(
    chunk_lo_ref, chunk_cnt_ref,             # scalar prefetch (SMEM)
    xu_ref, col_ref, ea_ref, eat_ref,        # streamed blocks
    w1a_ref, w1b_ref, b1_ref, w2_ref, b2_ref,  # weights (grid-invariant)
    out_ref,
    add_sc, cnt_sc, max_sc,                  # VMEM accumulators
    *, tile_n, edge_out, residuals,
):
    i = pl.program_id(0)          # node tile
    j = pl.program_id(1)          # edge chunk within this tile's range
    base = i * tile_n

    @pl.when(j == 0)
    def _init():
        add_sc[...] = jnp.zeros_like(add_sc)
        cnt_sc[...] = jnp.zeros_like(cnt_sc)
        max_sc[...] = jnp.full_like(max_sc, -jnp.inf)

    # Only accumulate chunks that actually belong to this node tile; extra grid
    # steps (clamped index_map -> same block, no re-DMA) are skipped entirely.
    @pl.when(j < chunk_cnt_ref[i])
    def _accumulate():
        col = col_ref[...]                                    # [1, TE] int32
        te = col.shape[1]
        node_ids = base + jax.lax.broadcasted_iota(jnp.int32, (tile_n, te), 0)
        mask = node_ids == col                                # [TN, TE]
        mask_f = mask.astype(jnp.float32)

        # scatter_add on the MXU; edge count as an XLU row-reduce of the mask.
        ea = ea_ref[...]                                      # [TE, edge_out]
        add_sc[...] += jnp.dot(mask_f, ea, preferred_element_type=jnp.float32)
        cnt_sc[...] += jnp.sum(mask_f, axis=1, keepdims=True)

        # scatter_max: per feature column, 2-D masked max over the chunk lanes
        # (no 3-D temporaries); one [TN, edge_out] update of the running max.
        neg = jnp.where(mask, 0.0, -jnp.inf)                  # [TN, TE]
        eat = eat_ref[...]                                    # [edge_out, TE]
        cols = [jnp.max(neg + eat[c:c + 1, :], axis=1, keepdims=True)
                for c in range(edge_out)]
        chunk_max = jnp.concatenate(cols, axis=1)             # [TN, edge_out]
        max_sc[...] = jnp.maximum(max_sc[...], chunk_max)

    @pl.when(j == pl.num_programs(1) - 1)
    def _finalize():
        cnt = cnt_sc[...]                                     # [TN, 1]
        add = add_sc[...]                                     # [TN, edge_out]
        mean = add * (1.0 / jnp.maximum(cnt, 1.0))
        mx = jnp.where(cnt > 0.0, max_sc[...], 0.0)           # torch_scatter: empty -> 0
        xu = xu_ref[...]                                      # [TN, xu_w] = [x | u[batch] | 0]

        # MLP input built in registers (no scratch slab): two MXU matmuls whose
        # weight rows were permuted/packed in the wrapper to match this order.
        agg = jnp.concatenate([add, mx, mean], axis=1)        # [TN, 3*edge_out]
        h = (jnp.dot(xu, w1a_ref[...], preferred_element_type=jnp.float32)
             + jnp.dot(agg, w1b_ref[...], preferred_element_type=jnp.float32)
             + b1_ref[...])
        h = jnp.maximum(h, 0.0)
        out = jnp.dot(h, w2_ref[...], preferred_element_type=jnp.float32) + b2_ref[...]
        if residuals:
            # x occupies xu[:, :node_in]; residuals requires node_out == node_in, so
            # every surviving output column (< node_out) only picks up x; the u/pad
            # lanes land in columns the wrapper slices off.
            out = out + xu[:, :out.shape[1]]
        out_ref[...] = out.astype(out_ref.dtype)


def node_model_forward(x, edge_index, edge_attr, u, batch, params, *,
                       residuals=True, tile_n=128, tile_e=128):
    """NodeModel forward. Eager wrapper (the chunk schedule uses concrete shapes).

    tile_n=128 suits v5e/v7x; sweep tile_n=256 on v6e once edge chunking keeps the
    per-chunk temporaries small.
    """
    n, node_in = x.shape
    e, edge_out = edge_attr.shape
    _, global_in = u.shape
    w1, b1, w2, b2 = params["w1"], params["b1"], params["w2"], params["b2"]
    hid = w1.shape[1]
    node_out = w2.shape[1]
    if residuals and node_in != node_out:
        raise ValueError("residuals=True requires node_in == node_out")

    f32 = jnp.float32
    n_pad = _round_up(n, tile_n)
    e_pad = _round_up(max(e, 1), tile_e)
    n_tiles = n_pad // tile_n
    n_chunks = e_pad // tile_e
    xu_w = _round_up(node_in + global_in, 128)
    hid_pad = _round_up(hid, 128)
    nout_pad = _round_up(node_out, 128)

    # ---- sort edges by destination node; per-tile chunk ranges (scalar prefetch) ----
    col = edge_index[1].astype(jnp.int32)
    order = jnp.argsort(col)
    col_s = col[order]
    ea_s = edge_attr.astype(f32)[order]

    tile_starts = jnp.arange(n_tiles, dtype=jnp.int32) * tile_n
    starts = jnp.searchsorted(col_s, tile_starts)
    ends = jnp.searchsorted(col_s, tile_starts + tile_n)
    chunk_lo = jnp.clip(starts // tile_e, 0, n_chunks - 1).astype(jnp.int32)
    chunk_hi = jnp.clip((ends - 1) // tile_e, 0, n_chunks - 1).astype(jnp.int32)
    chunk_cnt = jnp.where(ends > starts, chunk_hi - chunk_lo + 1, 0).astype(jnp.int32)
    max_chunks = max(int(jnp.max(chunk_cnt)), 1)

    # ---- wrapper-side packing / padding (layout plumbing only) ----
    col_p = jnp.full((1, e_pad), -1, jnp.int32).at[0, :e].set(col_s)
    ea_p = jnp.zeros((e_pad, edge_out), f32).at[:e].set(ea_s)
    eat_p = jnp.zeros((edge_out, e_pad), f32).at[:, :e].set(ea_s.T)

    # Node features + gathered per-node globals, 128-lane aligned.
    xu_p = jnp.zeros((n_pad, xu_w), f32)
    xu_p = xu_p.at[:n, :node_in].set(x.astype(f32))
    xu_p = xu_p.at[:n, node_in:node_in + global_in].set(u.astype(f32)[batch])

    # W1 split/permuted to match the kernel's [x | u | pad] and [add | max | mean] slabs.
    w1f = w1.astype(f32)
    w1a_p = jnp.zeros((xu_w, hid_pad), f32)
    w1a_p = w1a_p.at[:node_in, :hid].set(w1f[:node_in])
    w1a_p = w1a_p.at[node_in:node_in + global_in, :hid].set(w1f[node_in + 3 * edge_out:])
    w1b_p = jnp.zeros((3 * edge_out, hid_pad), f32)
    w1b_p = w1b_p.at[:, :hid].set(w1f[node_in:node_in + 3 * edge_out])
    b1_p = jnp.zeros((1, hid_pad), f32).at[:, :hid].set(b1.astype(f32))
    w2_p = jnp.zeros((hid_pad, nout_pad), f32).at[:hid, :node_out].set(w2.astype(f32))
    b2_p = jnp.zeros((1, nout_pad), f32).at[:, :node_out].set(b2.astype(f32))

    def chunk_idx(i, j, lo, cnt):
        # Clamp past-the-end steps to the last relevant chunk (same block index ->
        # the pipeline skips the DMA; the kernel skips the compute via pl.when).
        return lo[i] + jnp.minimum(j, jnp.maximum(cnt[i], 1) - 1)

    kernel = functools.partial(_node_model_kernel, tile_n=tile_n,
                               edge_out=edge_out, residuals=residuals)

    flops = int(2 * n_tiles * max_chunks * tile_n * tile_e * edge_out
                + 2 * n_pad * ((xu_w + 3 * edge_out) * hid_pad + hid_pad * nout_pad))
    bytes_accessed = int(4 * (n_pad * (xu_w + nout_pad)
                              + n_tiles * max_chunks * tile_e * (2 * edge_out + 1)
                              + (xu_w + 3 * edge_out) * hid_pad
                              + hid_pad * nout_pad + hid_pad + nout_pad))

    out = pl.pallas_call(
        kernel,
        out_shape=jax.ShapeDtypeStruct((n_pad, nout_pad), f32),
        grid_spec=pltpu.PrefetchScalarGridSpec(
            num_scalar_prefetch=2,
            grid=(n_tiles, max_chunks),
            in_specs=[
                pl.BlockSpec((tile_n, xu_w), lambda i, j, lo, cnt: (i, 0)),
                pl.BlockSpec((1, tile_e),
                             lambda i, j, lo, cnt: (0, chunk_idx(i, j, lo, cnt))),
                pl.BlockSpec((tile_e, edge_out),
                             lambda i, j, lo, cnt: (chunk_idx(i, j, lo, cnt), 0)),
                pl.BlockSpec((edge_out, tile_e),
                             lambda i, j, lo, cnt: (0, chunk_idx(i, j, lo, cnt))),
                pl.BlockSpec((xu_w, hid_pad), lambda i, j, lo, cnt: (0, 0)),
                pl.BlockSpec((3 * edge_out, hid_pad), lambda i, j, lo, cnt: (0, 0)),
                pl.BlockSpec((1, hid_pad), lambda i, j, lo, cnt: (0, 0)),
                pl.BlockSpec((hid_pad, nout_pad), lambda i, j, lo, cnt: (0, 0)),
                pl.BlockSpec((1, nout_pad), lambda i, j, lo, cnt: (0, 0)),
            ],
            out_specs=pl.BlockSpec((tile_n, nout_pad), lambda i, j, lo, cnt: (i, 0)),
            scratch_shapes=[
                pltpu.VMEM((tile_n, edge_out), f32),   # scatter_add accumulator
                pltpu.VMEM((tile_n, 1), f32),          # edge-count accumulator
                pltpu.VMEM((tile_n, edge_out), f32),   # scatter_max accumulator
            ],
        ),
        compiler_params=pltpu.CompilerParams(
            dimension_semantics=("parallel", "arbitrary"),
            vmem_limit_bytes=32 * 1024 * 1024),
        cost_estimate=pl.CostEstimate(flops=flops, transcendentals=0,
                                      bytes_accessed=bytes_accessed),
    )(chunk_lo, chunk_cnt, xu_p, col_p, ea_p, eat_p,
      w1a_p, w1b_p, b1_p, w2_p, b2_p)

    return out[:n, :node_out]


def node_model_ref(x, edge_index, edge_attr, u, batch, params, residuals=True):
    """Pure-JAX reference of the PyTorch forward (float32)."""
    n = x.shape[0]
    col = edge_index[1]
    out1 = jax.ops.segment_sum(edge_attr, col, num_segments=n)
    cnt = jax.ops.segment_sum(jnp.ones((edge_attr.shape[0], 1), jnp.float32), col,
                              num_segments=n)
    out3 = out1 / jnp.maximum(cnt, 1.0)
    out2 = jax.ops.segment_max(edge_attr, col, num_segments=n)
    out2 = jnp.where(cnt > 0, out2, 0.0)
    feat = jnp.concatenate([x, out1, out2, out3, u[batch]], axis=1)
    h = jnp.maximum(feat @ params["w1"] + params["b1"][0], 0.0)
    out = h @ params["w2"] + params["b2"][0]
    if residuals:
        out = out + x
    return out


if __name__ == "__main__":
    # small shapes consistent with the module: residual requires node_out == node_in
    node_in = node_out = 16
    edge_out = 16
    global_in = 4
    hid_channels = 32
    n_nodes, n_edges, n_graphs = 16, 32, 2

    key = jax.random.PRNGKey(0)
    ks = jax.random.split(key, 8)
    x = jax.random.normal(ks[0], (n_nodes, node_in), jnp.float32)
    edge_attr = jax.random.normal(ks[1], (n_edges, edge_out), jnp.float32)
    u = jax.random.normal(ks[2], (n_graphs, global_in), jnp.float32)
    row = jax.random.randint(ks[3], (n_edges,), 0, n_nodes, dtype=jnp.int32)
    col = jax.random.randint(ks[4], (n_edges,), 0, n_nodes, dtype=jnp.int32)
    edge_index = jnp.stack([row, col])
    batch = jnp.repeat(jnp.arange(n_graphs, dtype=jnp.int32), n_nodes // n_graphs)

    def linear_init(k, fan_in, fan_out):
        bound = 1.0 / float(fan_in) ** 0.5
        kw, kb = jax.random.split(k)
        w = jax.random.uniform(kw, (fan_in, fan_out), jnp.float32, -bound, bound)
        bias = jax.random.uniform(kb, (1, fan_out), jnp.float32, -bound, bound)
        return w, bias

    in_feat = node_in + 3 * edge_out + global_in
    w1, b1 = linear_init(ks[5], in_feat, hid_channels)
    w2, b2 = linear_init(ks[6], hid_channels, node_out)
    params = dict(w1=w1, b1=b1, w2=w2, b2=b2)

    out = node_model_forward(x, edge_index, edge_attr, u, batch, params)
    out = jax.block_until_ready(out)

    ref = node_model_ref(x, edge_index, edge_attr, u, batch, params)
    max_err = float(jnp.max(jnp.abs(out - ref)))
    assert jnp.allclose(out, ref, atol=1e-4, rtol=1e-4), f"max_err={max_err}"
    print("KERNEL_OK")
</pallas_src>

<mosaic_0001>
module attributes {stable_mosaic.version = 11 : i64} {
  func.func @_node_model_kernel(%arg0: i32, %arg1: i32, %arg2: memref<1xi32, #tpu.memory_space<smem>>, %arg3: memref<1xi32, #tpu.memory_space<smem>>, %arg4: memref<128x128xf32, #tpu.memory_space<vmem>>, %arg5: memref<1x128xi32, #tpu.memory_space<vmem>>, %arg6: memref<128x16xf32, #tpu.memory_space<vmem>>, %arg7: memref<16x128xf32, #tpu.memory_space<vmem>>, %arg8: memref<128x128xf32, #tpu.memory_space<vmem>>, %arg9: memref<48x128xf32, #tpu.memory_space<vmem>>, %arg10: memref<1x128xf32, #tpu.memory_space<vmem>>, %arg11: memref<128x128xf32, #tpu.memory_space<vmem>>, %arg12: memref<1x128xf32, #tpu.memory_space<vmem>>, %arg13: memref<128x128xf32, #tpu.memory_space<vmem>>, %arg14: memref<128x16xf32, #tpu.memory_space<vmem>>, %arg15: memref<128x1xf32, #tpu.memory_space<vmem>>, %arg16: memref<128x16xf32, #tpu.memory_space<vmem>>) attributes {dimension_semantics = [#tpu.dimension_semantics<parallel>, #tpu.dimension_semantics<arbitrary>], iteration_bounds = array<i64: 1, 1>, scalar_prefetch = 2 : i64, scratch_operands = 3 : i64, tpu.core_type = #tpu.core_type<tc>, window_params = [{transform_indices = @transform_0, window_bounds = array<i64: 128, 128>}, {transform_indices = @transform_1, window_bounds = array<i64: 1, 128>}, {transform_indices = @transform_2, window_bounds = array<i64: 128, 16>}, {transform_indices = @transform_3, window_bounds = array<i64: 16, 128>}, {pipeline_mode = #tpu.pipeline_mode<synchronous>, transform_indices = @transform_4, window_bounds = array<i64: 128, 128>}, {pipeline_mode = #tpu.pipeline_mode<synchronous>, transform_indices = @transform_5, window_bounds = array<i64: 48, 128>}, {pipeline_mode = #tpu.pipeline_mode<synchronous>, transform_indices = @transform_6, window_bounds = array<i64: 1, 128>}, {pipeline_mode = #tpu.pipeline_mode<synchronous>, transform_indices = @transform_7, window_bounds = array<i64: 128, 128>}, {pipeline_mode = #tpu.pipeline_mode<synchronous>, transform_indices = @transform_8, window_bounds = array<i64: 1, 128>}, {transform_indices = @transform_9, window_bounds = array<i64: 128, 128>}]} {
    %c128_i32 = arith.constant 128 : i32
    %0 = arith.muli %arg0, %c128_i32 : i32
    %c0_i32 = arith.constant 0 : i32
    %1 = arith.cmpi eq, %arg1, %c0_i32 : i32
    %2 = arith.extui %1 : i1 to i32
    %c0_i32_0 = arith.constant 0 : i32
    %3 = arith.cmpi ne, %2, %c0_i32_0 : i32
    scf.if %3 {
      %cst = arith.constant 0.000000e+00 : f32
      %12 = vector.broadcast %cst : f32 to vector<128x16xf32>
      %c0 = arith.constant 0 : index
      %c0_4 = arith.constant 0 : index
      %13 = vector.load %arg14[%c0, %c0_4] : memref<128x16xf32, #tpu.memory_space<vmem>>, vector<128x16xf32>
      tpu.vector_store %arg14[%c0, %c0_4], %12 {strides = array<i32>} : memref<128x16xf32, #tpu.memory_space<vmem>>, vector<128x16xf32>,
      %cst_5 = arith.constant 0.000000e+00 : f32
      %14 = vector.broadcast %cst_5 : f32 to vector<128x1xf32>
      %c0_6 = arith.constant 0 : index
      %c0_7 = arith.constant 0 : index
      %15 = vector.load %arg15[%c0_6, %c0_7] : memref<128x1xf32, #tpu.memory_space<vmem>>, vector<128x1xf32>
      tpu.vector_store %arg15[%c0_6, %c0_7], %14 {strides = array<i32>} : memref<128x1xf32, #tpu.memory_space<vmem>>, vector<128x1xf32>,
      %cst_8 = arith.constant 0xFF800000 : f32
      %16 = vector.broadcast %cst_8 : f32 to vector<128x16xf32>
      %c0_9 = arith.constant 0 : index
      %c0_10 = arith.constant 0 : index
      %17 = vector.load %arg16[%c0_9, %c0_10] : memref<128x16xf32, #tpu.memory_space<vmem>>, vector<128x16xf32>
      tpu.vector_store %arg16[%c0_9, %c0_10], %16 {strides = array<i32>} : memref<128x16xf32, #tpu.memory_space<vmem>>, vector<128x16xf32>,
    } else {
    }
    %4 = arith.index_cast %arg0 : i32 to index
    %5 = memref.load %arg3[%4] : memref<1xi32, #tpu.memory_space<smem>>
    %6 = arith.cmpi slt, %arg1, %5 : i32
    %7 = arith.extui %6 : i1 to i32
    %c0_i32_1 = arith.constant 0 : i32
    %8 = arith.cmpi ne, %7, %c0_i32_1 : i32
    scf.if %8 {
      %c0 = arith.constant 0 : index
      %c0_4 = arith.constant 0 : index
      %12 = vector.load %arg5[%c0, %c0_4] : memref<1x128xi32, #tpu.memory_space<vmem>>, vector<1x128xi32>
      %13 = tpu.iota {dimensions = array<i32: 0>} : vector<128x128xi32>
      %14 = vector.broadcast %0 : i32 to vector<128x128xi32>
      %15 = arith.addi %14, %13 : vector<128x128xi32>
      %16 = vector.broadcast %12 : vector<1x128xi32> to vector<128x128xi32>
      %17 = arith.cmpi eq, %15, %16 : vector<128x128xi32>
      %18 = arith.extui %17 : vector<128x128xi1> to vector<128x128xi32>
      %19 = arith.sitofp %18 : vector<128x128xi32> to vector<128x128xf32>
      %c0_5 = arith.constant 0 : index
      %c0_6 = arith.constant 0 : index
      %20 = vector.load %arg6[%c0_5, %c0_6] : memref<128x16xf32, #tpu.memory_space<vmem>>, vector<128x16xf32>
      %c0_7 = arith.constant 0 : index
      %c0_8 = arith.constant 0 : index
      %21 = vector.load %arg14[%c0_7, %c0_8] : memref<128x16xf32, #tpu.memory_space<vmem>>, vector<128x16xf32>
      %cst = arith.constant dense<0.000000e+00> : vector<128x16xf32>
      %22 = tpu.matmul %19, %20, %cst {dimension_numbers = #tpu.dot_dimension_numbers<[1], [0], [0], [1], [0, 0, 1, 1], [], []>} : vector<128x128xf32>, vector<128x16xf32>, vector<128x16xf32> -> vector<128x16xf32>
      %23 = arith.addf %21, %22 : vector<128x16xf32>
      %c0_9 = arith.constant 0 : index
      %c0_10 = arith.constant 0 : index
      %24 = vector.load %arg14[%c0_9, %c0_10] : memref<128x16xf32, #tpu.memory_space<vmem>>, vector<128x16xf32>
      tpu.vector_store %arg14[%c0_9, %c0_10], %23 {strides = array<i32>} : memref<128x16xf32, #tpu.memory_space<vmem>>, vector<128x16xf32>,
      %c0_11 = arith.constant 0 : index
      %c0_12 = arith.constant 0 : index
      %25 = vector.load %arg15[%c0_11, %c0_12] : memref<128x1xf32, #tpu.memory_space<vmem>>, vector<128x1xf32>
      %cst_13 = arith.constant dense<0.000000e+00> : vector<128xf32>
      %26 = vector.multi_reduction <add>, %19, %cst_13 [1] : vector<128x128xf32> to vector<128xf32>
      %27 = vector.shape_cast %26 : vector<128xf32> to vector<128x1xf32>
      %28 = arith.addf %25, %27 : vector<128x1xf32>
      %c0_14 = arith.constant 0 : index
      %c0_15 = arith.constant 0 : index
      %29 = vector.load %arg15[%c0_14, %c0_15] : memref<128x1xf32, #tpu.memory_space<vmem>>, vector<128x1xf32>
      tpu.vector_store %arg15[%c0_14, %c0_15], %28 {strides = array<i32>} : memref<128x1xf32, #tpu.memory_space<vmem>>, vector<128x1xf32>,
      %cst_16 = arith.constant 0.000000e+00 : f32
      %cst_17 = arith.constant 0xFF800000 : f32
      %30 = vector.broadcast %cst_16 : f32 to vector<128x128xf32>
      %31 = vector.broadcast %cst_17 : f32 to vector<128x128xf32>
      %32 = arith.select %17, %30, %31 : vector<128x128xi1>, vector<128x128xf32>
      %c0_18 = arith.constant 0 : index
      %c0_19 = arith.constant 0 : index
      %33 = vector.load %arg7[%c0_18, %c0_19] : memref<16x128xf32, #tpu.memory_space<vmem>>, vector<16x128xf32>
      %34 = vector.extract_strided_slice %33 {offsets = [0, 0], sizes = [1, 128], strides = [1, 1]} : vector<16x128xf32> to vector<1x128xf32>
      %35 = vector.broadcast %34 : vector<1x128xf32> to vector<128x128xf32>
      %36 = arith.addf %32, %35 : vector<128x128xf32>
      %cst_20 = arith.constant dense<0xFF800000> : vector<128xf32>
      %37 = vector.multi_reduction <maximumf>, %36, %cst_20 [1] : vector<128x128xf32> to vector<128xf32>
      %38 = vector.shape_cast %37 : vector<128xf32> to vector<128x1xf32>
      %39 = vector.extract_strided_slice %33 {offsets = [1, 0], sizes = [1, 128], strides = [1, 1]} : vector<16x128xf32> to vector<1x128xf32>
      %40 = vector.broadcast %39 : vector<1x128xf32> to vector<128x128xf32>
      %41 = arith.addf %32, %40 : vector<128x128xf32>
      %cst_21 = arith.constant dense<0xFF800000> : vector<128xf32>
      %42 = vector.multi_reduction <maximumf>, %41, %cst_21 [1] : vector<128x128xf32> to vector<128xf32>
      %43 = vector.shape_cast %42 : vector<128xf32> to vector<128x1xf32>
      %44 = vector.extract_strided_slice %33 {offsets = [2, 0], sizes = [1, 128], strides = [1, 1]} : vector<16x128xf32> to vector<1x128xf32>
      %45 = vector.broadcast %44 : vector<1x128xf32> to vector<128x128xf32>
      %46 = arith.addf %32, %45 : vector<128x128xf32>
      %cst_22 = arith.constant dense<0xFF800000> : vector<128xf32>
      %47 = vector.multi_reduction <maximumf>, %46, %cst_22 [1] : vector<128x128xf32> to vector<128xf32>
      %48 = vector.shape_cast %47 : vector<128xf32> to vector<128x1xf32>
      %49 = vector.extract_strided_slice %33 {offsets = [3, 0], sizes = [1, 128], strides = [1, 1]} : vector<16x128xf32> to vector<1x128xf32>
      %50 = vector.broadcast %49 : vector<1x128xf32> to vector<128x128xf32>
      %51 = arith.addf %32, %50 : vector<128x128xf32>
      %cst_23 = arith.constant dense<0xFF800000> : vector<128xf32>
      %52 = vector.multi_reduction <maximumf>, %51, %cst_23 [1] : vector<128x128xf32> to vector<128xf32>
      %53 = vector.shape_cast %52 : vector<128xf32> to vector<128x1xf32>
      %54 = vector.extract_strided_slice %33 {offsets = [4, 0], sizes = [1, 128], strides = [1, 1]} : vector<16x128xf32> to vector<1x128xf32>
      %55 = vector.broadcast %54 : vector<1x128xf32> to vector<128x128xf32>
      %56 = arith.addf %32, %55 : vector<128x128xf32>
      %cst_24 = arith.constant dense<0xFF800000> : vector<128xf32>
      %57 = vector.multi_reduction <maximumf>, %56, %cst_24 [1] : vector<128x128xf32> to vector<128xf32>
      %58 = vector.shape_cast %57 : vector<128xf32> to vector<128x1xf32>
      %59 = vector.extract_strided_slice %33 {offsets = [5, 0], sizes = [1, 128], strides = [1, 1]} : vector<16x128xf32> to vector<1x128xf32>
      %60 = vector.broadcast %59 : vector<1x128xf32> to vector<128x128xf32>
      %61 = arith.addf %32, %60 : vector<128x128xf32>
      %cst_25 = arith.constant dense<0xFF800000> : vector<128xf32>
      %62 = vector.multi_reduction <maximumf>, %61, %cst_25 [1] : vector<128x128xf32> to vector<128xf32>
      %63 = vector.shape_cast %62 : vector<128xf32> to vector<128x1xf32>
      %64 = vector.extract_strided_slice %33 {offsets = [6, 0], sizes = [1, 128], strides = [1, 1]} : vector<16x128xf32> to vector<1x128xf32>
      %65 = vector.broadcast %64 : vector<1x128xf32> to vector<128x128xf32>
      %66 = arith.addf %32, %65 : vector<128x128xf32>
      %cst_26 = arith.constant dense<0xFF800000> : vector<128xf32>
      %67 = vector.multi_reduction <maximumf>, %66, %cst_26 [1] : vector<128x128xf32> to vector<128xf32>
      %68 = vector.shape_cast %67 : vector<128xf32> to vector<128x1xf32>
      %69 = vector.extract_strided_slice %33 {offsets = [7, 0], sizes = [1, 128], strides = [1, 1]} : vector<16x128xf32> to vector<1x128xf32>
      %70 = vector.broadcast %69 : vector<1x128xf32> to vector<128x128xf32>
      %71 = arith.addf %32, %70 : vector<128x128xf32>
      %cst_27 = arith.constant dense<0xFF800000> : vector<128xf32>
      %72 = vector.multi_reduction <maximumf>, %71, %cst_27 [1] : vector<128x128xf32> to vector<128xf32>
      %73 = vector.shape_cast %72 : vector<128xf32> to vector<128x1xf32>
      %74 = vector.extract_strided_slice %33 {offsets = [8, 0], sizes = [1, 128], strides = [1, 1]} : vector<16x128xf32> to vector<1x128xf32>
      %75 = vector.broadcast %74 : vector<1x128xf32> to vector<128x128xf32>
      %76 = arith.addf %32, %75 : vector<128x128xf32>
      %cst_28 = arith.constant dense<0xFF800000> : vector<128xf32>
      %77 = vector.multi_reduction <maximumf>, %76, %cst_28 [1] : vector<128x128xf32> to vector<128xf32>
      %78 = vector.shape_cast %77 : vector<128xf32> to vector<128x1xf32>
      %79 = vector.extract_strided_slice %33 {offsets = [9, 0], sizes = [1, 128], strides = [1, 1]} : vector<16x128xf32> to vector<1x128xf32>
      %80 = vector.broadcast %79 : vector<1x128xf32> to vector<128x128xf32>
      %81 = arith.addf %32, %80 : vector<128x128xf32>
      %cst_29 = arith.constant dense<0xFF800000> : vector<128xf32>
      %82 = vector.multi_reduction <maximumf>, %81, %cst_29 [1] : vector<128x128xf32> to vector<128xf32>
      %83 = vector.shape_cast %82 : vector<128xf32> to vector<128x1xf32>
      %84 = vector.extract_strided_slice %33 {offsets = [10, 0], sizes = [1, 128], strides = [1, 1]} : vector<16x128xf32> to vector<1x128xf32>
      %85 = vector.broadcast %84 : vector<1x128xf32> to vector<128x128xf32>
      %86 = arith.addf %32, %85 : vector<128x128xf32>
      %cst_30 = arith.constant dense<0xFF800000> : vector<128xf32>
      %87 = vector.multi_reduction <maximumf>, %86, %cst_30 [1] : vector<128x128xf32> to vector<128xf32>
      %88 = vector.shape_cast %87 : vector<128xf32> to vector<128x1xf32>
      %89 = vector.extract_strided_slice %33 {offsets = [11, 0], sizes = [1, 128], strides = [1, 1]} : vector<16x128xf32> to vector<1x128xf32>
      %90 = vector.broadcast %89 : vector<1x128xf32> to vector<128x128xf32>
      %91 = arith.addf %32, %90 : vector<128x128xf32>
      %cst_31 = arith.constant dense<0xFF800000> : vector<128xf32>
      %92 = vector.multi_reduction <maximumf>, %91, %cst_31 [1] : vector<128x128xf32> to vector<128xf32>
      %93 = vector.shape_cast %92 : vector<128xf32> to vector<128x1xf32>
      %94 = vector.extract_strided_slice %33 {offsets = [12, 0], sizes = [1, 128], strides = [1, 1]} : vector<16x128xf32> to vector<1x128xf32>
      %95 = vector.broadcast %94 : vector<1x128xf32> to vector<128x128xf32>
      %96 = arith.addf %32, %95 : vector<128x128xf32>
      %cst_32 = arith.constant dense<0xFF800000> : vector<128xf32>
      %97 = vector.multi_reduction <maximumf>, %96, %cst_32 [1] : vector<128x128xf32> to vector<128xf32>
      %98 = vector.shape_cast %97 : vector<128xf32> to vector<128x1xf32>
      %99 = vector.extract_strided_slice %33 {offsets = [13, 0], sizes = [1, 128], strides = [1, 1]} : vector<16x128xf32> to vector<1x128xf32>
      %100 = vector.broadcast %99 : vector<1x128xf32> to vector<128x128xf32>
      %101 = arith.addf %32, %100 : vector<128x128xf32>
      %cst_33 = arith.constant dense<0xFF800000> : vector<128xf32>
      %102 = vector.multi_reduction <maximumf>, %101, %cst_33 [1] : vector<128x128xf32> to vector<128xf32>
      %103 = vector.shape_cast %102 : vector<128xf32> to vector<128x1xf32>
      %104 = vector.extract_strided_slice %33 {offsets = [14, 0], sizes = [1, 128], strides = [1, 1]} : vector<16x128xf32> to vector<1x128xf32>
      %105 = vector.broadcast %104 : vector<1x128xf32> to vector<128x128xf32>
      %106 = arith.addf %32, %105 : vector<128x128xf32>
      %cst_34 = arith.constant dense<0xFF800000> : vector<128xf32>
      %107 = vector.multi_reduction <maximumf>, %106, %cst_34 [1] : vector<128x128xf32> to vector<128xf32>
      %108 = vector.shape_cast %107 : vector<128xf32> to vector<128x1xf32>
      %109 = vector.extract_strided_slice %33 {offsets = [15, 0], sizes = [1, 128], strides = [1, 1]} : vector<16x128xf32> to vector<1x128xf32>
      %110 = vector.broadcast %109 : vector<1x128xf32> to vector<128x128xf32>
      %111 = arith.addf %32, %110 : vector<128x128xf32>
      %cst_35 = arith.constant dense<0xFF800000> : vector<128xf32>
      %112 = vector.multi_reduction <maximumf>, %111, %cst_35 [1] : vector<128x128xf32> to vector<128xf32>
      %113 = vector.shape_cast %112 : vector<128xf32> to vector<128x1xf32>
      %114 = tpu.concatenate %38, %43, %48, %53, %58, %63, %68, %73, %78, %83, %88, %93, %98, %103, %108, %113 in 1 : vector<128x1xf32>, vector<128x1xf32>, vector<128x1xf32>, vector<128x1xf32>, vector<128x1xf32>, vector<128x1xf32>, vector<128x1xf32>, vector<128x1xf32>, vector<128x1xf32>, vector<128x1xf32>, vector<128x1xf32>, vector<128x1xf32>, vector<128x1xf32>, vector<128x1xf32>, vector<128x1xf32>, vector<128x1xf32> -> vector<128x16xf32>
      %c0_36 = arith.constant 0 : index
      %c0_37 = arith.constant 0 : index
      %115 = vector.load %arg16[%c0_36, %c0_37] : memref<128x16xf32, #tpu.memory_space<vmem>>, vector<128x16xf32>
      %116 = arith.maximumf %115, %114 : vector<128x16xf32>
      %c0_38 = arith.constant 0 : index
      %c0_39 = arith.constant 0 : index
      %117 = vector.load %arg16[%c0_38, %c0_39] : memref<128x16xf32, #tpu.memory_space<vmem>>, vector<128x16xf32>
      tpu.vector_store %arg16[%c0_38, %c0_39], %116 {strides = array<i32>} : memref<128x16xf32, #tpu.memory_space<vmem>>, vector<128x16xf32>,
    } else {
    }
    %c0_i32_2 = arith.constant 0 : i32
    %9 = arith.cmpi eq, %arg1, %c0_i32_2 : i32
    %10 = arith.extui %9 : i1 to i32
    %c0_i32_3 = arith.constant 0 : i32
    %11 = arith.cmpi ne, %10, %c0_i32_3 : i32
    scf.if %11 {
      %c0 = arith.constant 0 : index
      %c0_4 = arith.constant 0 : index
      %12 = vector.load %arg15[%c0, %c0_4] : memref<128x1xf32, #tpu.memory_space<vmem>>, vector<128x1xf32>
      %c0_5 = arith.constant 0 : index
      %c0_6 = arith.constant 0 : index
      %13 = vector.load %arg14[%c0_5, %c0_6] : memref<128x16xf32, #tpu.memory_space<vmem>>, vector<128x16xf32>
      %cst = arith.constant 1.000000e+00 : f32
      %14 = vector.broadcast %cst : f32 to vector<128x1xf32>
      %15 = arith.maximumf %12, %14 : vector<128x1xf32>
      %cst_7 = arith.constant 1.000000e+00 : f32
      %16 = vector.broadcast %cst_7 : f32 to vector<128x1xf32>
      %17 = arith.divf %16, %15 : vector<128x1xf32>
      %18 = vector.broadcast %17 : vector<128x1xf32> to vector<128x16xf32>
      %19 = arith.mulf %13, %18 : vector<128x16xf32>
      %cst_8 = arith.constant 0.000000e+00 : f32
      %20 = vector.broadcast %cst_8 : f32 to vector<128x1xf32>
      %21 = arith.cmpf ogt, %12, %20 : vector<128x1xf32>
      %c0_9 = arith.constant 0 : index
      %c0_10 = arith.constant 0 : index
      %22 = vector.load %arg16[%c0_9, %c0_10] : memref<128x16xf32, #tpu.memory_space<vmem>>, vector<128x16xf32>
      %cst_11 = arith.constant 0.000000e+00 : f32
      %23 = vector.shape_cast %21 : vector<128x1xi1> to vector<128x1xi1>
      %24 = vector.broadcast %23 : vector<128x1xi1> to vector<128x16xi1>
      %25 = vector.broadcast %cst_11 : f32 to vector<128x16xf32>
      %26 = arith.select %24, %22, %25 : vector<128x16xi1>, vector<128x16xf32>
      %c0_12 = arith.constant 0 : index
      %c0_13 = arith.constant 0 : index
      %27 = vector.load %arg4[%c0_12, %c0_13] : memref<128x128xf32, #tpu.memory_space<vmem>>, vector<128x128xf32>
      %28 = tpu.concatenate %13, %26, %19 in 1 : vector<128x16xf32>, vector<128x16xf32>, vector<128x16xf32> -> vector<128x48xf32>
      %c0_14 = arith.constant 0 : index
      %c0_15 = arith.constant 0 : index
      %29 = vector.load %arg8[%c0_14, %c0_15] : memref<128x128xf32, #tpu.memory_space<vmem>>, vector<128x128xf32>
      %cst_16 = arith.constant dense<0.000000e+00> : vector<128x128xf32>
      %30 = tpu.matmul %27, %29, %cst_16 {dimension_numbers = #tpu.dot_dimension_numbers<[1], [0], [0], [1], [0, 0, 1, 1], [], []>} : vector<128x128xf32>, vector<128x128xf32>, vector<128x128xf32> -> vector<128x128xf32>
      %c0_17 = arith.constant 0 : index
      %c0_18 = arith.constant 0 : index
      %31 = vector.load %arg9[%c0_17, %c0_18] : memref<48x128xf32, #tpu.memory_space<vmem>>, vector<48x128xf32>
      %cst_19 = arith.constant dense<0.000000e+00> : vector<128x128xf32>
      %32 = tpu.matmul %28, %31, %cst_19 {dimension_numbers = #tpu.dot_dimension_numbers<[1], [0], [0], [1], [0, 0, 1, 1], [], []>} : vector<128x48xf32>, vector<48x128xf32>, vector<128x128xf32> -> vector<128x128xf32>
      %33 = arith.addf %30, %32 : vector<128x128xf32>
      %c0_20 = arith.constant 0 : index
      %c0_21 = arith.constant 0 : index
      %34 = vector.load %arg10[%c0_20, %c0_21] : memref<1x128xf32, #tpu.memory_space<vmem>>, vector<1x128xf32>
      %35 = vector.broadcast %34 : vector<1x128xf32> to vector<128x128xf32>
      %36 = arith.addf %33, %35 : vector<128x128xf32>
      %cst_22 = arith.constant 0.000000e+00 : f32
      %37 = vector.broadcast %cst_22 : f32 to vector<128x128xf32>
      %38 = arith.maximumf %36, %37 : vector<128x128xf32>
      %c0_23 = arith.constant 0 : index
      %c0_24 = arith.constant 0 : index
      %39 = vector.load %arg11[%c0_23, %c0_24] : memref<128x128xf32, #tpu.memory_space<vmem>>, vector<128x128xf32>
      %cst_25 = arith.constant dense<0.000000e+00> : vector<128x128xf32>
      %40 = tpu.matmul %38, %39, %cst_25 {dimension_numbers = #tpu.dot_dimension_numbers<[1], [0], [0], [1], [0, 0, 1, 1], [], []>} : vector<128x128xf32>, vector<128x128xf32>, vector<128x128xf32> -> vector<128x128xf32>
      %c0_26 = arith.constant 0 : index
      %c0_27 = arith.constant 0 : index
      %41 = vector.load %arg12[%c0_26, %c0_27] : memref<1x128xf32, #tpu.memory_space<vmem>>, vector<1x128xf32>
      %42 = vector.broadcast %41 : vector<1x128xf32> to vector<128x128xf32>
      %43 = arith.addf %40, %42 : vector<128x128xf32>
      %44 = arith.addf %43, %27 : vector<128x128xf32>
      %c0_28 = arith.constant 0 : index
      %c0_29 = arith.constant 0 : index
      %45 = vector.load %arg13[%c0_28, %c0_29] : memref<128x128xf32, #tpu.memory_space<vmem>>, vector<128x128xf32>
      tpu.vector_store %arg13[%c0_28, %c0_29], %44 {strides = array<i32>} : memref<128x128xf32, #tpu.memory_space<vmem>>, vector<128x128xf32>,
    } else {
    }
    return
  }
  func.func @transform_0(%arg0: i32, %arg1: i32, %arg2: memref<1xi32, #tpu.memory_space<smem>>, %arg3: memref<1xi32, #tpu.memory_space<smem>>) -> (i32, i32) {
    %c0_i32 = arith.constant 0 : i32
    %c0_i32_0 = arith.constant 0 : i32
    return %arg0, %c0_i32 : i32, i32
  }
  func.func @transform_1(%arg0: i32, %arg1: i32, %arg2: memref<1xi32, #tpu.memory_space<smem>>, %arg3: memref<1xi32, #tpu.memory_space<smem>>) -> (i32, i32) {
    %0 = arith.index_cast %arg0 : i32 to index
    %1 = memref.load %arg2[%0] : memref<1xi32, #tpu.memory_space<smem>>
    %2 = arith.index_cast %arg0 : i32 to index
    %3 = memref.load %arg3[%2] : memref<1xi32, #tpu.memory_space<smem>>
    %c1_i32 = arith.constant 1 : i32
    %4 = arith.maxsi %3, %c1_i32 : i32
    %c1_i32_0 = arith.constant 1 : i32
    %5 = arith.subi %4, %c1_i32_0 : i32
    %6 = arith.minsi %arg1, %5 : i32
    %7 = arith.addi %1, %6 : i32
    %c0_i32 = arith.constant 0 : i32
    %c0_i32_1 = arith.constant 0 : i32
    return %c0_i32, %7 : i32, i32
  }
  func.func @transform_2(%arg0: i32, %arg1: i32, %arg2: memref<1xi32, #tpu.memory_space<smem>>, %arg3: memref<1xi32, #tpu.memory_space<smem>>) -> (i32, i32) {
    %0 = arith.index_cast %arg0 : i32 to index
    %1 = memref.load %arg2[%0] : memref<1xi32, #tpu.memory_space<smem>>
    %2 = arith.index_cast %arg0 : i32 to index
    %3 = memref.load %arg3[%2] : memref<1xi32, #tpu.memory_space<smem>>
    %c1_i32 = arith.constant 1 : i32
    %4 = arith.maxsi %3, %c1_i32 : i32
    %c1_i32_0 = arith.constant 1 : i32
    %5 = arith.subi %4, %c1_i32_0 : i32
    %6 = arith.minsi %arg1, %5 : i32
    %7 = arith.addi %1, %6 : i32
    %c0_i32 = arith.constant 0 : i32
    %c0_i32_1 = arith.constant 0 : i32
    return %7, %c0_i32 : i32, i32
  }
  func.func @transform_3(%arg0: i32, %arg1: i32, %arg2: memref<1xi32, #tpu.memory_space<smem>>, %arg3: memref<1xi32, #tpu.memory_space<smem>>) -> (i32, i32) {
    %0 = arith.index_cast %arg0 : i32 to index
    %1 = memref.load %arg2[%0] : memref<1xi32, #tpu.memory_space<smem>>
    %2 = arith.index_cast %arg0 : i32 to index
    %3 = memref.load %arg3[%2] : memref<1xi32, #tpu.memory_space<smem>>
    %c1_i32 = arith.constant 1 : i32
    %4 = arith.maxsi %3, %c1_i32 : i32
    %c1_i32_0 = arith.constant 1 : i32
    %5 = arith.subi %4, %c1_i32_0 : i32
    %6 = arith.minsi %arg1, %5 : i32
    %7 = arith.addi %1, %6 : i32
    %c0_i32 = arith.constant 0 : i32
    %c0_i32_1 = arith.constant 0 : i32
    return %c0_i32, %7 : i32, i32
  }
  func.func @transform_4(%arg0: i32, %arg1: i32, %arg2: memref<1xi32, #tpu.memory_space<smem>>, %arg3: memref<1xi32, #tpu.memory_space<smem>>) -> (i32, i32) {
    %c0_i32 = arith.constant 0 : i32
    %c0_i32_0 = arith.constant 0 : i32
    %c0_i32_1 = arith.constant 0 : i32
    return %c0_i32, %c0_i32_0 : i32, i32
  }
  func.func @transform_5(%arg0: i32, %arg1: i32, %arg2: memref<1xi32, #tpu.memory_space<smem>>, %arg3: memref<1xi32, #tpu.memory_space<smem>>) -> (i32, i32) {
    %c0_i32 = arith.constant 0 : i32
    %c0_i32_0 = arith.constant 0 : i32
    %c0_i32_1 = arith.constant 0 : i32
    return %c0_i32, %c0_i32_0 : i32, i32
  }
  func.func @transform_6(%arg0: i32, %arg1: i32, %arg2: memref<1xi32, #tpu.memory_space<smem>>, %arg3: memref<1xi32, #tpu.memory_space<smem>>) -> (i32, i32) {
    %c0_i32 = arith.constant 0 : i32
    %c0_i32_0 = arith.constant 0 : i32
    %c0_i32_1 = arith.constant 0 : i32
    return %c0_i32, %c0_i32_0 : i32, i32
  }
  func.func @transform_7(%arg0: i32, %arg1: i32, %arg2: memref<1xi32, #tpu.memory_space<smem>>, %arg3: memref<1xi32, #tpu.memory_space<smem>>) -> (i32, i32) {
    %c0_i32 = arith.constant 0 : i32
    %c0_i32_0 = arith.constant 0 : i32
    %c0_i32_1 = arith.constant 0 : i32
    return %c0_i32, %c0_i32_0 : i32, i32
  }
  func.func @transform_8(%arg0: i32, %arg1: i32, %arg2: memref<1xi32, #tpu.memory_space<smem>>, %arg3: memref<1xi32, #tpu.memory_space<smem>>) -> (i32, i32) {
    %c0_i32 = arith.constant 0 : i32
    %c0_i32_0 = arith.constant 0 : i32
    %c0_i32_1 = arith.constant 0 : i32
    return %c0_i32, %c0_i32_0 : i32, i32
  }
  func.func @transform_9(%arg0: i32, %arg1: i32, %arg2: memref<1xi32, #tpu.memory_space<smem>>, %arg3: memref<1xi32, #tpu.memory_space<smem>>) -> (i32, i32) {
    %c0_i32 = arith.constant 0 : i32
    %c0_i32_0 = arith.constant 0 : i32
    return %arg0, %c0_i32 : i32, i32
  }
}

</mosaic_0001>

<llo_original>
// kernel: tpu_custom_call.1
$region0: #{tpu_custom_call.1}
  #allocation0 [shape = 'u32[]', space=smem, size = 0x4, offset = 0x4, fixed_abs, tag = 'smem constant byte address 0x4 - core index']
  #allocation1 [shape = 'u32[144,128]{1,0:T(1,128)}', space=vmem, size = 0x12000, scoped, tag = 'internal scratch']
  #allocation2 [shape = 'f32[128,16]{1,0:T(8,128)}', space=vmem, size = 0x10000, scoped, tag = 'scratch operand']
  #allocation3 [shape = 'f32[128,1]{1,0:T(8,128)}', space=vmem, size = 0x10000, scoped, tag = 'scratch operand']
  #allocation4 [shape = 'f32[128,16]{1,0:T(8,128)}', space=vmem, size = 0x10000, scoped, tag = 'scratch operand']
  #allocation5 [shape = 's32[1]{0}', space=sflag, size = 0x4, scoped, tag = 'scoped memory for tpu_custom_call.1']
  #allocation6 [shape = 's32[1]{0:T(128)S(6)}', space=smem, size = 0x200, scoped, tag = 'prefetched SMEM operand 0']
  #allocation7 [shape = 's32[1]{0:T(128)S(6)}', space=smem, size = 0x200, scoped, tag = 'prefetched SMEM operand 1']
  %s0 = inlined_call_operand.<no memory space> [shape: s32[1], index: 0, kind: input, shape index: {}]
  %s1 = inlined_call_operand.<no memory space> [shape: s32[1], index: 1, kind: input, shape index: {}]
  %s2 = inlined_call_operand.vmem [shape: f32[128,128], index: 2, kind: input, shape index: {}]
  %s3 = inlined_call_operand.vmem [shape: s32[1,128], index: 3, kind: input, shape index: {}]
  %s4 = inlined_call_operand.vmem [shape: f32[128,16], index: 4, kind: input, shape index: {}]
  %s5 = inlined_call_operand.vmem [shape: f32[16,128], index: 5, kind: input, shape index: {}]
  %s6 = inlined_call_operand.hbm [shape: f32[128,128], index: 6, kind: input, shape index: {}]
  %s7 = inlined_call_operand.hbm [shape: f32[48,128], index: 7, kind: input, shape index: {}]
  %s8 = inlined_call_operand.vmem [shape: f32[1,128], index: 8, kind: input, shape index: {}]
  %s9 = inlined_call_operand.hbm [shape: f32[128,128], index: 9, kind: input, shape index: {}]
  %s10 = inlined_call_operand.vmem [shape: f32[1,128], index: 10, kind: input, shape index: {}]
  %s11 = inlined_call_operand.hbm [shape: f32[128,128], index: 11, kind: output, shape index: {}]
  %s12 = sld [smem:[#allocation0]]
  $region70: #{tpu_custom_call.1} parent=0
    _
  %s14 = ssub.s32 1, %s12
  %s15 = scalar_select 0, %s14, %s12
  %16 = sst [smem:[#allocation6]] %s0
  %17 = sst [smem:[#allocation7]] %s1
  $region1: #{tpu_custom_call.1} parent=0
    #allocation8 [shape = 'u8[65536]{0}', space=vmem, size = 0x10000, scoped, tag = 'input window, operand 6, single buffered']
    #allocation9 [shape = 's32[1]{0}', space=sflag, size = 0x4, scoped, tag = 'scoped memory for tpu_custom_call.1']
    #allocation10 [shape = 's32[1]{0}', space=sflag, size = 0x4, scoped, tag = 'scoped memory for tpu_custom_call.1']
    #allocation11 [shape = 'u8[24576]{0}', space=vmem, size = 0x6000, scoped, tag = 'input window, operand 7, single buffered']
    #allocation12 [shape = 's32[1]{0}', space=sflag, size = 0x4, scoped, tag = 'scoped memory for tpu_custom_call.1']
    #allocation13 [shape = 'u8[65536]{0}', space=vmem, size = 0x10000, scoped, tag = 'input window, operand 9, single buffered']
    #allocation14 [shape = 'u8[65536]{0}', space=vmem, size = 0x10000, scoped, tag = 'output window, operand 0, single buffered']
    %18 = vsyncpa [#allocation9], 0
    %19 = vsyncpa [#allocation12], 0
    %20 = vsyncpa [#allocation10], 0
    // Predicated region
    $region2: #{tpu_custom_call.1} parent=1 // pred_check
      _
    $region3: #{tpu_custom_call.1} parent=1 // pred_check_branch
      %22 = sbr.rel (0) target = $region5
    $region4: #{tpu_custom_call.1} parent=1 // pred_region
      _
    $region5: #{tpu_custom_call.1} parent=1 // pred_fallthru
      _
    // Predicated region
    $region6: #{tpu_custom_call.1} parent=1 // pred_check
      _
    $region7: #{tpu_custom_call.1} parent=1 // pred_check_branch
      %24 = sbr.rel (0) target = $region9
    $region8: #{tpu_custom_call.1} parent=1 // pred_region
      %s25 = sld [smem:[#allocation6]]
      %s26 = sld [smem:[#allocation7]]
      %p27 = scmp.gt.s32.totalorder %s26, 1
      %s28 = scalar_select %p27, %s26, 1
      %s29 = ssub.s32 %s28, 1
      %p30 = scmp.lt.s32.totalorder 0, %s29
      %s31 = scalar_select %p30, 0, %s29
      %s32 = sadd.s32 %s25, %s31
      %p33 = scmp.lt.s32.totalorder %s32, 0
      %s34 = scalar_select %p33, %s32, 0
      %s35 = scalar_lea.vmem %s3, %s34
      %s36 = sld [smem:[#allocation6]]
      %s37 = sld [smem:[#allocation7]]
      %p38 = scmp.gt.s32.totalorder %s37, 1
      %s39 = scalar_select %p38, %s37, 1
      %s40 = ssub.s32 %s39, 1
      %p41 = scmp.lt.s32.totalorder 0, %s40
      %s42 = scalar_select %p41, 0, %s40
      %s43 = sadd.s32 %s36, %s42
    $region9: #{tpu_custom_call.1} parent=1 // pred_fallthru
      _
    // Predicated region
    $region10: #{tpu_custom_call.1} parent=1 // pred_check
      _
    $region11: #{tpu_custom_call.1} parent=1 // pred_check_branch
      %45 = sbr.rel (0) target = $region13
    $region12: #{tpu_custom_call.1} parent=1 // pred_region
      %s46 = sld [smem:[#allocation6]]
      %s47 = sld [smem:[#allocation7]]
      %p48 = scmp.gt.s32.totalorder %s47, 1
      %s49 = scalar_select %p48, %s47, 1
      %s50 = ssub.s32 %s49, 1
      %p51 = scmp.lt.s32.totalorder 0, %s50
      %s52 = scalar_select %p51, 0, %s50
      %s53 = sadd.s32 %s46, %s52
      %s54 = smul.u32 16, %s53
      %p55 = scmp.lt.s32.totalorder %s54, 15
      %s56 = scalar_select %p55, %s54, 15
      %s57 = smul.addr %s56, 8
      %s58 = scalar_lea.vmem %s4, %s57
      %s59 = sld [smem:[#allocation6]]
      %s60 = sld [smem:[#allocation7]]
      %p61 = scmp.gt.s32.totalorder %s60, 1
      %s62 = scalar_select %p61, %s60, 1
      %s63 = ssub.s32 %s62, 1
      %p64 = scmp.lt.s32.totalorder 0, %s63
      %s65 = scalar_select %p64, 0, %s63
      %s66 = sadd.s32 %s59, %s65
      %s67 = smul.u32 16, %s66
    $region13: #{tpu_custom_call.1} parent=1 // pred_fallthru
      _
    // Predicated region
    $region14: #{tpu_custom_call.1} parent=1 // pred_check
      _
    $region15: #{tpu_custom_call.1} parent=1 // pred_check_branch
      %69 = sbr.rel (0) target = $region17
    $region16: #{tpu_custom_call.1} parent=1 // pred_region
      %s70 = sld [smem:[#allocation6]]
      %s71 = sld [smem:[#allocation7]]
      %p72 = scmp.gt.s32.totalorder %s71, 1
      %s73 = scalar_select %p72, %s71, 1
      %s74 = ssub.s32 %s73, 1
      %p75 = scmp.lt.s32.totalorder 0, %s74
      %s76 = scalar_select %p75, 0, %s74
      %s77 = sadd.s32 %s70, %s76
      %p78 = scmp.lt.s32.totalorder %s77, 0
      %s79 = scalar_select %p78, %s77, 0
      %s80 = smul.addr %s79, 8
      %s81 = scalar_lea.vmem %s5, %s80
      %s82 = sld [smem:[#allocation6]]
      %s83 = sld [smem:[#allocation7]]
      %p84 = scmp.gt.s32.totalorder %s83, 1
      %s85 = scalar_select %p84, %s83, 1
      %s86 = ssub.s32 %s85, 1
      %p87 = scmp.lt.s32.totalorder 0, %s86
      %s88 = scalar_select %p87, 0, %s86
      %s89 = sadd.s32 %s82, %s88
    $region17: #{tpu_custom_call.1} parent=1 // pred_fallthru
      _
    // Predicated region
    $region18: #{tpu_custom_call.1} parent=1 // pred_check
      _
    $region19: #{tpu_custom_call.1} parent=1 // pred_check_branch
      %91 = sbr.rel (0) target = $region21
    $region20: #{tpu_custom_call.1} parent=1 // pred_region
      %s93 = ssub.s32 2048, 2048
      %94 = vsyncadd [#allocation9], %s93
      %s95 = sshll.u32 [#allocation8], 4
      %s96 = int_to_ptr.vmem [resolvable:$true] %s95
      %101 = dma.hbm_to_vmem [thread:$0]  %s6, 2048, %s96, [#allocation9], 128, 128, 8
    $region21: #{tpu_custom_call.1} parent=1 // pred_fallthru
      _
    // Predicated region
    $region22: #{tpu_custom_call.1} parent=1 // pred_check
      _
    $region23: #{tpu_custom_call.1} parent=1 // pred_check_branch
      %103 = sbr.rel (0) target = $region25
    $region24: #{tpu_custom_call.1} parent=1 // pred_region
      %s105 = ssub.s32 768, 768
      %106 = vsyncadd [#allocation12], %s105
      %s107 = sshll.u32 [#allocation11], 4
      %s108 = int_to_ptr.vmem [resolvable:$true] %s107
      %113 = dma.hbm_to_vmem [thread:$0]  %s7, 768, %s108, [#allocation12], 128, 128, 8
    $region25: #{tpu_custom_call.1} parent=1 // pred_fallthru
      _
    // Predicated region
    $region26: #{tpu_custom_call.1} parent=1 // pred_check
      _
    $region27: #{tpu_custom_call.1} parent=1 // pred_check_branch
      %115 = sbr.rel (0) target = $region29
    $region28: #{tpu_custom_call.1} parent=1 // pred_region
      _
    $region29: #{tpu_custom_call.1} parent=1 // pred_fallthru
      _
    // Predicated region
    $region30: #{tpu_custom_call.1} parent=1 // pred_check
      _
    $region31: #{tpu_custom_call.1} parent=1 // pred_check_branch
      %117 = sbr.rel (0) target = $region33
    $region32: #{tpu_custom_call.1} parent=1 // pred_region
      %s119 = ssub.s32 2048, 2048
      %120 = vsyncadd [#allocation12], %s119
      %s121 = sshll.u32 [#allocation13], 4
      %s122 = int_to_ptr.vmem [resolvable:$true] %s121
      %127 = dma.hbm_to_vmem [thread:$0]  %s9, 2048, %s122, [#allocation12], 128, 128, 8
    $region33: #{tpu_custom_call.1} parent=1 // pred_fallthru
      _
    // Predicated region
    $region34: #{tpu_custom_call.1} parent=1 // pred_check
      _
    $region35: #{tpu_custom_call.1} parent=1 // pred_check_branch
      %129 = sbr.rel (0) target = $region37
    $region36: #{tpu_custom_call.1} parent=1 // pred_region
      _
    $region37: #{tpu_custom_call.1} parent=1 // pred_fallthru
      _
    // Predicated region
    $region38: #{tpu_custom_call.1} parent=1 // pred_check
      _
    $region39: #{tpu_custom_call.1} parent=1 // pred_check_branch
      %131 = sbr.rel (0) target = $region41
    $region40: #{tpu_custom_call.1} parent=1 // pred_region
      %132 = dma.done [#allocation9], 2048
    $region41: #{tpu_custom_call.1} parent=1 // pred_fallthru
      _
    // Predicated region
    $region42: #{tpu_custom_call.1} parent=1 // pred_check
      _
    $region43: #{tpu_custom_call.1} parent=1 // pred_check_branch
      %134 = sbr.rel (0) target = $region45
    $region44: #{tpu_custom_call.1} parent=1 // pred_region
      %135 = dma.done [#allocation12], 768
    $region45: #{tpu_custom_call.1} parent=1 // pred_fallthru
      _
    // Predicated region
    $region46: #{tpu_custom_call.1} parent=1 // pred_check
      _
    $region47: #{tpu_custom_call.1} parent=1 // pred_check_branch
      %137 = sbr.rel (0) target = $region49
    $region48: #{tpu_custom_call.1} parent=1 // pred_region
      %138 = dma.done [#allocation12], 2048
    $region49: #{tpu_custom_call.1} parent=1 // pred_fallthru
      _
    %s139 = sld [smem:[#allocation6]]
    %s140 = sld [smem:[#allocation7]]
    %p141 = scmp.gt.s32.totalorder %s140, 1
    %s142 = scalar_select %p141, %s140, 1
    %s143 = ssub.s32 %s142, 1
    %p144 = scmp.lt.s32.totalorder 0, %s143
    %s145 = scalar_select %p144, 0, %s143
    %s146 = sadd.s32 %s139, %s145
    %p147 = scmp.lt.s32.totalorder %s146, 0
    %s148 = scalar_select %p147, %s146, 0
    %s149 = scalar_lea.vmem %s3, %s148
    %s150 = sld [smem:[#allocation6]]
    %s151 = sld [smem:[#allocation7]]
    %p152 = scmp.gt.s32.totalorder %s151, 1
    %s153 = scalar_select %p152, %s151, 1
    %s154 = ssub.s32 %s153, 1
    %p155 = scmp.lt.s32.totalorder 0, %s154
    %s156 = scalar_select %p155, 0, %s154
    %s157 = sadd.s32 %s150, %s156
    %s158 = smul.u32 16, %s157
    %p159 = scmp.lt.s32.totalorder %s158, 15
    %s160 = scalar_select %p159, %s158, 15
    %s161 = smul.addr %s160, 8
    %s162 = scalar_lea.vmem %s4, %s161
    %s163 = sld [smem:[#allocation6]]
    %s164 = sld [smem:[#allocation7]]
    %p165 = scmp.gt.s32.totalorder %s164, 1
    %s166 = scalar_select %p165, %s164, 1
    %s167 = ssub.s32 %s166, 1
    %p168 = scmp.lt.s32.totalorder 0, %s167
    %s169 = scalar_select %p168, 0, %s167
    %s170 = sadd.s32 %s163, %s169
    %p171 = scmp.lt.s32.totalorder %s170, 0
    %s172 = scalar_select %p171, %s170, 0
    %s173 = smul.addr %s172, 8
    %s174 = scalar_lea.vmem %s5, %s173
    %s175 = sld [smem:[#allocation6]]
    %s176 = sld [smem:[#allocation7]]
    %p177 = scmp.gt.s32.totalorder %s176, 1
    %s178 = scalar_select %p177, %s176, 1
    %s179 = ssub.s32 %s178, 1
    %p180 = scmp.lt.s32.totalorder 0, %s179
    %s181 = scalar_select %p180, 0, %s179
    %s182 = sadd.s32 %s175, %s181
    %p183 = scmp.lt.s32.totalorder %s182, 0
    %s184 = scalar_select %p183, %s182, 0
    %s185 = scalar_lea.vmem %s3, %s184
    %s186 = sld [smem:[#allocation6]]
    %s187 = sld [smem:[#allocation7]]
    %p188 = scmp.gt.s32.totalorder %s187, 1
    %s189 = scalar_select %p188, %s187, 1
    %s190 = ssub.s32 %s189, 1
    %p191 = scmp.lt.s32.totalorder 0, %s190
    %s192 = scalar_select %p191, 0, %s190
    %s193 = sadd.s32 %s186, %s192
    %s194 = sld [smem:[#allocation6]]
    %s195 = sld [smem:[#allocation7]]
    %p196 = scmp.gt.s32.totalorder %s195, 1
    %s197 = scalar_select %p196, %s195, 1
    %s198 = ssub.s32 %s197, 1
    %p199 = scmp.lt.s32.totalorder 0, %s198
    %s200 = scalar_select %p199, 0, %s198
    %s201 = sadd.s32 %s194, %s200
    %s202 = smul.u32 16, %s201
    %p203 = scmp.lt.s32.totalorder %s202, 15
    %s204 = scalar_select %p203, %s202, 15
    %s205 = smul.addr %s204, 8
    %s206 = scalar_lea.vmem %s4, %s205
    %s207 = sld [smem:[#allocation6]]
    %s208 = sld [smem:[#allocation7]]
    %p209 = scmp.gt.s32.totalorder %s208, 1
    %s210 = scalar_select %p209, %s208, 1
    %s211 = ssub.s32 %s210, 1
    %p212 = scmp.lt.s32.totalorder 0, %s211
    %s213 = scalar_select %p212, 0, %s211
    %s214 = sadd.s32 %s207, %s213
    %s215 = smul.u32 16, %s214
    %s216 = sld [smem:[#allocation6]]
    %s217 = sld [smem:[#allocation7]]
    %p218 = scmp.gt.s32.totalorder %s217, 1
    %s219 = scalar_select %p218, %s217, 1
    %s220 = ssub.s32 %s219, 1
    %p221 = scmp.lt.s32.totalorder 0, %s220
    %s222 = scalar_select %p221, 0, %s220
    %s223 = sadd.s32 %s216, %s222
    %p224 = scmp.lt.s32.totalorder %s223, 0
    %s225 = scalar_select %p224, %s223, 0
    %s226 = smul.addr %s225, 8
    %s227 = scalar_lea.vmem %s5, %s226
    %s228 = sld [smem:[#allocation6]]
    %s229 = sld [smem:[#allocation7]]
    %p230 = scmp.gt.s32.totalorder %s229, 1
    %s231 = scalar_select %p230, %s229, 1
    %s232 = ssub.s32 %s231, 1
    %p233 = scmp.lt.s32.totalorder 0, %s232
    %s234 = scalar_select %p233, 0, %s232
    %s235 = sadd.s32 %s228, %s234
    %s236 = smul.u32 0, 128
    %p237 = scmp.eq.s32.totalorder 0, 0
    // Predicated region
    $region50: #{tpu_custom_call.1} parent=1 // pred_check
      %p238 = pneg %p237
    $region51: #{tpu_custom_call.1} parent=1 // pred_check_branch
      %240 = sbr.rel (%p238) target = $region53
    $region52: #{tpu_custom_call.1} parent=1 // pred_region
      %vm241 = vcmask 130048
      %242 = vst.msk [vmem:[#allocation2] sm:$0xff] %vm241, 0.0
      %243 = vst.msk [vmem:[#allocation2 + $0x8] sm:$0xff] %vm241, 0.0
      %244 = vst.msk [vmem:[#allocation2 + $0x10] sm:$0xff] %vm241, 0.0
      %245 = vst.msk [vmem:[#allocation2 + $0x18] sm:$0xff] %vm241, 0.0
      %246 = vst.msk [vmem:[#allocation2 + $0x20] sm:$0xff] %vm241, 0.0
      %247 = vst.msk [vmem:[#allocation2 + $0x28] sm:$0xff] %vm241, 0.0
      %248 = vst.msk [vmem:[#allocation2 + $0x30] sm:$0xff] %vm241, 0.0
      %249 = vst.msk [vmem:[#allocation2 + $0x38] sm:$0xff] %vm241, 0.0
      %250 = vst.msk [vmem:[#allocation2 + $0x40] sm:$0xff] %vm241, 0.0
      %251 = vst.msk [vmem:[#allocation2 + $0x48] sm:$0xff] %vm241, 0.0
      %252 = vst.msk [vmem:[#allocation2 + $0x50] sm:$0xff] %vm241, 0.0
      %253 = vst.msk [vmem:[#allocation2 + $0x58] sm:$0xff] %vm241, 0.0
      %254 = vst.msk [vmem:[#allocation2 + $0x60] sm:$0xff] %vm241, 0.0
      %255 = vst.msk [vmem:[#allocation2 + $0x68] sm:$0xff] %vm241, 0.0
      %256 = vst.msk [vmem:[#allocation2 + $0x70] sm:$0xff] %vm241, 0.0
      %257 = vst.msk [vmem:[#allocation2 + $0x78] sm:$0xff] %vm241, 0.0
      %vm258 = vcmask 7168
      %259 = vst.msk [vmem:[#allocation3] sm:$0xff] %vm258, 0.0
      %260 = vst.msk [vmem:[#allocation3 + $0x8] sm:$0xff] %vm258, 0.0
      %261 = vst.msk [vmem:[#allocation3 + $0x10] sm:$0xff] %vm258, 0.0
      %262 = vst.msk [vmem:[#allocation3 + $0x18] sm:$0xff] %vm258, 0.0
      %263 = vst.msk [vmem:[#allocation3 + $0x20] sm:$0xff] %vm258, 0.0
      %264 = vst.msk [vmem:[#allocation3 + $0x28] sm:$0xff] %vm258, 0.0
      %265 = vst.msk [vmem:[#allocation3 + $0x30] sm:$0xff] %vm258, 0.0
      %266 = vst.msk [vmem:[#allocation3 + $0x38] sm:$0xff] %vm258, 0.0
      %267 = vst.msk [vmem:[#allocation3 + $0x40] sm:$0xff] %vm258, 0.0
      %268 = vst.msk [vmem:[#allocation3 + $0x48] sm:$0xff] %vm258, 0.0
      %269 = vst.msk [vmem:[#allocation3 + $0x50] sm:$0xff] %vm258, 0.0
      %270 = vst.msk [vmem:[#allocation3 + $0x58] sm:$0xff] %vm258, 0.0
      %271 = vst.msk [vmem:[#allocation3 + $0x60] sm:$0xff] %vm258, 0.0
      %272 = vst.msk [vmem:[#allocation3 + $0x68] sm:$0xff] %vm258, 0.0
      %273 = vst.msk [vmem:[#allocation3 + $0x70] sm:$0xff] %vm258, 0.0
      %274 = vst.msk [vmem:[#allocation3 + $0x78] sm:$0xff] %vm258, 0.0
      %275 = vst.msk [vmem:[#allocation4] sm:$0xff] %vm241, -inf
      %276 = vst.msk [vmem:[#allocation4 + $0x8] sm:$0xff] %vm241, -inf
      %277 = vst.msk [vmem:[#allocation4 + $0x10] sm:$0xff] %vm241, -inf
      %278 = vst.msk [vmem:[#allocation4 + $0x18] sm:$0xff] %vm241, -inf
      %279 = vst.msk [vmem:[#allocation4 + $0x20] sm:$0xff] %vm241, -inf
      %280 = vst.msk [vmem:[#allocation4 + $0x28] sm:$0xff] %vm241, -inf
      %281 = vst.msk [vmem:[#allocation4 + $0x30] sm:$0xff] %vm241, -inf
      %282 = vst.msk [vmem:[#allocation4 + $0x38] sm:$0xff] %vm241, -inf
      %283 = vst.msk [vmem:[#allocation4 + $0x40] sm:$0xff] %vm241, -inf
      %284 = vst.msk [vmem:[#allocation4 + $0x48] sm:$0xff] %vm241, -inf
      %285 = vst.msk [vmem:[#allocation4 + $0x50] sm:$0xff] %vm241, -inf
      %286 = vst.msk [vmem:[#allocation4 + $0x58] sm:$0xff] %vm241, -inf
      %287 = vst.msk [vmem:[#allocation4 + $0x60] sm:$0xff] %vm241, -inf
      %288 = vst.msk [vmem:[#allocation4 + $0x68] sm:$0xff] %vm241, -inf
      %289 = vst.msk [vmem:[#allocation4 + $0x70] sm:$0xff] %vm241, -inf
      %290 = vst.msk [vmem:[#allocation4 + $0x78] sm:$0xff] %vm241, -inf
    $region53: #{tpu_custom_call.1} parent=1 // pred_fallthru
      _
    %s291 = sld [smem:[#allocation7]]
    %p292 = scmp.lt.s32.totalorder 0, %s291
    // Predicated region
    $region54: #{tpu_custom_call.1} parent=1 // pred_check
      %p293 = pneg %p292
    $region55: #{tpu_custom_call.1} parent=1 // pred_check_branch
      %295 = sbr.rel (%p293) target = $region57
    $region56: #{tpu_custom_call.1} parent=1 // pred_region
      %v296 = vld [vmem:[%s185] sm:$0x1]
      %v297 = vlaneseq
      %v298 = vshrl.u32 %v297, 7
      %v299 = vadd.s32 %v298, 8
      %v300 = vadd.s32 %v298, 16
      %v301 = vadd.s32 %v298, 24
      %v302 = vadd.s32 %v298, 32
      %v303 = vadd.s32 %v298, 40
      %v304 = vadd.s32 %v298, 48
      %v305 = vadd.s32 %v298, 56
      %v306 = vadd.s32 %v298, 64
      %v307 = vadd.s32 %v298, 72
      %v308 = vadd.s32 %v298, 80
      %v309 = vadd.s32 %v298, 88
      %v310 = vadd.s32 %v298, 96
      %v311 = vadd.s32 %v298, 104
      %v312 = vadd.s32 %v298, 112
      %v313 = vadd.s32 %v298, 120
      %v314 = vstv %s236
      %v315 = vadd.s32 %v314, %v298
      %v316 = vadd.s32 %v314, %v299
      %v317 = vadd.s32 %v314, %v300
      %v318 = vadd.s32 %v314, %v301
      %v319 = vadd.s32 %v314, %v302
      %v320 = vadd.s32 %v314, %v303
      %v321 = vadd.s32 %v314, %v304
      %v322 = vadd.s32 %v314, %v305
      %v323 = vadd.s32 %v314, %v306
      %v324 = vadd.s32 %v314, %v307
      %v325 = vadd.s32 %v314, %v308
      %v326 = vadd.s32 %v314, %v309
      %v327 = vadd.s32 %v314, %v310
      %v328 = vadd.s32 %v314, %v311
      %v329 = vadd.s32 %v314, %v312
      %v330 = vadd.s32 %v314, %v313
      %v331 = vlaneseq
      %v332 = vshrl.u32 %v331, 7
      %v333 = vsub.s32 0, %v332
      %v334 = vrot.slane %v296, %v333
      %vm335 = vcmp.eq.s32.totalorder %v315, %v334
      %vm336 = vcmp.eq.s32.totalorder %v316, %v334
      %vm337 = vcmp.eq.s32.totalorder %v317, %v334
      %vm338 = vcmp.eq.s32.totalorder %v318, %v334
      %vm339 = vcmp.eq.s32.totalorder %v319, %v334
      %vm340 = vcmp.eq.s32.totalorder %v320, %v334
      %vm341 = vcmp.eq.s32.totalorder %v321, %v334
      %vm342 = vcmp.eq.s32.totalorder %v322, %v334
      %vm343 = vcmp.eq.s32.totalorder %v323, %v334
      %vm344 = vcmp.eq.s32.totalorder %v324, %v334
      %vm345 = vcmp.eq.s32.totalorder %v325, %v334
      %vm346 = vcmp.eq.s32.totalorder %v326, %v334
      %vm347 = vcmp.eq.s32.totalorder %v327, %v334
      %vm348 = vcmp.eq.s32.totalorder %v328, %v334
      %vm349 = vcmp.eq.s32.totalorder %v329, %v334
      %vm350 = vcmp.eq.s32.totalorder %v330, %v334
      %v351 = vsel %vm335, 1, 0
      %v352 = vsel %vm336, 1, 0
      %v353 = vsel %vm337, 1, 0
      %v354 = vsel %vm338, 1, 0
      %v355 = vsel %vm339, 1, 0
      %v356 = vsel %vm340, 1, 0
      %v357 = vsel %vm341, 1, 0
      %v358 = vsel %vm342, 1, 0
      %v359 = vsel %vm343, 1, 0
      %v360 = vsel %vm344, 1, 0
      %v361 = vsel %vm345, 1, 0
      %v362 = vsel %vm346, 1, 0
      %v363 = vsel %vm347, 1, 0
      %v364 = vsel %vm348, 1, 0
      %v365 = vsel %vm349, 1, 0
      %v366 = vsel %vm350, 1, 0
      %v367 = vcvt.s32.f32 %v351
      %v368 = vcvt.s32.f32 %v352
      %v369 = vcvt.s32.f32 %v353
      %v370 = vcvt.s32.f32 %v354
      %v371 = vcvt.s32.f32 %v355
      %v372 = vcvt.s32.f32 %v356
      %v373 = vcvt.s32.f32 %v357
      %v374 = vcvt.s32.f32 %v358
      %v375 = vcvt.s32.f32 %v359
      %v376 = vcvt.s32.f32 %v360
      %v377 = vcvt.s32.f32 %v361
      %v378 = vcvt.s32.f32 %v362
      %v379 = vcvt.s32.f32 %v363
      %v380 = vcvt.s32.f32 %v364
      %v381 = vcvt.s32.f32 %v365
      %v382 = vcvt.s32.f32 %v366
      %v383 = vld [vmem:[%s206] sm:$0xff]
      %v384 = vld [vmem:[%s206 + $0x8] sm:$0xff]
      %v385 = vld [vmem:[%s206 + $0x10] sm:$0xff]
      %v386 = vld [vmem:[%s206 + $0x18] sm:$0xff]
      %v387 = vld [vmem:[%s206 + $0x20] sm:$0xff]
      %v388 = vld [vmem:[%s206 + $0x28] sm:$0xff]
      %v389 = vld [vmem:[%s206 + $0x30] sm:$0xff]
      %v390 = vld [vmem:[%s206 + $0x38] sm:$0xff]
      %v391 = vld [vmem:[%s206 + $0x40] sm:$0xff]
      %v392 = vld [vmem:[%s206 + $0x48] sm:$0xff]
      %v393 = vld [vmem:[%s206 + $0x50] sm:$0xff]
      %v394 = vld [vmem:[%s206 + $0x58] sm:$0xff]
      %v395 = vld [vmem:[%s206 + $0x60] sm:$0xff]
      %v396 = vld [vmem:[%s206 + $0x68] sm:$0xff]
      %v397 = vld [vmem:[%s206 + $0x70] sm:$0xff]
      %v398 = vld [vmem:[%s206 + $0x78] sm:$0xff]
      %v399 = vld [vmem:[#allocation2] sm:$0xff]
      %v400 = vld [vmem:[#allocation2 + $0x8] sm:$0xff]
      %v401 = vld [vmem:[#allocation2 + $0x10] sm:$0xff]
      %v402 = vld [vmem:[#allocation2 + $0x18] sm:$0xff]
      %v403 = vld [vmem:[#allocation2 + $0x20] sm:$0xff]
      %v404 = vld [vmem:[#allocation2 + $0x28] sm:$0xff]
      %v405 = vld [vmem:[#allocation2 + $0x30] sm:$0xff]
      %v406 = vld [vmem:[#allocation2 + $0x38] sm:$0xff]
      %v407 = vld [vmem:[#allocation2 + $0x40] sm:$0xff]
      %v408 = vld [vmem:[#allocation2 + $0x48] sm:$0xff]
      %v409 = vld [vmem:[#allocation2 + $0x50] sm:$0xff]
      %v410 = vld [vmem:[#allocation2 + $0x58] sm:$0xff]
      %v411 = vld [vmem:[#allocation2 + $0x60] sm:$0xff]
      %v412 = vld [vmem:[#allocation2 + $0x68] sm:$0xff]
      %v413 = vld [vmem:[#allocation2 + $0x70] sm:$0xff]
      %v414 = vld [vmem:[#allocation2 + $0x78] sm:$0xff]
      %415 = vmatprep.subr.mxu0 0.0
      %416 = vmatpush1.msra.mxu0 %v383
      %417 = vmatprep.subr.mxu0 0.0
      %418 = vmatpush1.msra.mxu0 %v384
      %419 = vmatprep.subr.mxu0 0.0
      %420 = vmatpush1.msra.mxu0 %v385
      %421 = vmatprep.subr.mxu0 0.0
      %422 = vmatpush1.msra.mxu0 %v386
      %423 = vmatprep.subr.mxu0 0.0
      %424 = vmatpush1.msra.mxu0 %v387
      %425 = vmatprep.subr.mxu0 0.0
      %426 = vmatpush1.msra.mxu0 %v388
      %427 = vmatprep.subr.mxu0 0.0
      %428 = vmatpush1.msra.mxu0 %v389
      %429 = vmatprep.subr.mxu0 0.0
      %430 = vmatpush1.msra.mxu0 %v390
      %431 = vmatprep.subr.mxu0 0.0
      %432 = vmatpush1.msra.mxu0 %v391
      %433 = vmatprep.subr.mxu0 0.0
      %434 = vmatpush1.msra.mxu0 %v392
      %435 = vmatprep.subr.mxu0 0.0
      %436 = vmatpush1.msra.mxu0 %v393
      %437 = vmatprep.subr.mxu0 0.0
      %438 = vmatpush1.msra.mxu0 %v394
      %439 = vmatprep.subr.mxu0 0.0
      %440 = vmatpush1.msra.mxu0 %v395
      %441 = vmatprep.subr.mxu0 0.0
      %442 = vmatpush1.msra.mxu0 %v396
      %443 = vmatprep.subr.mxu0 0.0
      %444 = vmatpush1.msra.mxu0 %v397
      %445 = vmatprep.subr.mxu0 0.0
      %446 = vmatpush1.msra.mxu0 %v398
      %447 = vmatprep.subr.mxu0 0.0
      %448 = vmatpush1.msra.mxu0 0.0
      %449 = vmatprep.subr.mxu0 0.0
      %450 = vmatpush1.msra.mxu0 0.0
      %451 = vmatprep.subr.mxu0 0.0
      %452 = vmatpush1.msra.mxu0 0.0
      %453 = vmatprep.subr.mxu0 0.0
      %454 = vmatpush1.msra.mxu0 0.0
      %455 = vmatprep.subr.mxu0 0.0
      %456 = vmatpush1.msra.mxu0 0.0
      %457 = vmatprep.subr.mxu0 0.0
      %458 = vmatpush1.msra.mxu0 0.0
      %459 = vmatprep.subr.mxu0 0.0
      %460 = vmatpush1.msra.mxu0 0.0
      %461 = vmatprep.subr.mxu0 0.0
      %462 = vmatpush1.msra.mxu0 0.0
      %463 = vmatprep.subr.mxu0 0.0
      %464 = vmatpush1.msra.mxu0 0.0
      %465 = vmatprep.subr.mxu0 0.0
      %466 = vmatpush1.msra.mxu0 0.0
      %467 = vmatprep.subr.mxu0 0.0
      %468 = vmatpush1.msra.mxu0 0.0
      %469 = vmatprep.subr.mxu0 0.0
      %470 = vmatpush1.msra.mxu0 0.0
      %471 = vmatprep.subr.mxu0 0.0
      %472 = vmatpush1.msra.mxu0 0.0
      %473 = vmatprep.subr.mxu0 0.0
      %474 = vmatpush1.msra.mxu0 0.0
      %475 = vmatprep.subr.mxu0 0.0
      %476 = vmatpush1.msra.mxu0 0.0
      %477 = vmatprep.subr.mxu0 0.0
      %478 = vmatpush1.msra.mxu0 0.0
      %479 = vmatprep.mubr.f32.mxu0 0.0
      %480 = vmatmul.mubr.f32.gmra.mrb[0].mxu0 %v367
      %v481 = vpop.f32.mrb[0].mxu0
      %v482 = vadd.f32 0.0, %v481
      %v483 = vpop.f32.mrb[0].mxu0
      %484 = vmatprep.mubr.f32.mxu0 0.0
      %485 = vmatmul.mubr.f32.gmra.mrb[0].mxu0 %v368
      %v486 = vpop.f32.mrb[0].mxu0
      %v487 = vadd.f32 0.0, %v486
      %v488 = vpop.f32.mrb[0].mxu0
      %489 = vmatprep.mubr.f32.mxu0 0.0
      %490 = vmatmul.mubr.f32.gmra.mrb[0].mxu0 %v369
      %v491 = vpop.f32.mrb[0].mxu0
      %v492 = vadd.f32 0.0, %v491
      %v493 = vpop.f32.mrb[0].mxu0
      %494 = vmatprep.mubr.f32.mxu0 0.0
      %495 = vmatmul.mubr.f32.gmra.mrb[0].mxu0 %v370
      %v496 = vpop.f32.mrb[0].mxu0
      %v497 = vadd.f32 0.0, %v496
      %v498 = vpop.f32.mrb[0].mxu0
      %499 = vmatprep.mubr.f32.mxu0 0.0
      %500 = vmatmul.mubr.f32.gmra.mrb[0].mxu0 %v371
      %v501 = vpop.f32.mrb[0].mxu0
      %v502 = vadd.f32 0.0, %v501
      %v503 = vpop.f32.mrb[0].mxu0
      %504 = vmatprep.mubr.f32.mxu0 0.0
      %505 = vmatmul.mubr.f32.gmra.mrb[0].mxu0 %v372
      %v506 = vpop.f32.mrb[0].mxu0
      %v507 = vadd.f32 0.0, %v506
      %v508 = vpop.f32.mrb[0].mxu0
      %509 = vmatprep.mubr.f32.mxu0 0.0
      %510 = vmatmul.mubr.f32.gmra.mrb[0].mxu0 %v373
      %v511 = vpop.f32.mrb[0].mxu0
      %v512 = vadd.f32 0.0, %v511
      %v513 = vpop.f32.mrb[0].mxu0
      %514 = vmatprep.mubr.f32.mxu0 0.0
      %515 = vmatmul.mubr.f32.gmra.mrb[0].mxu0 %v374
      %v516 = vpop.f32.mrb[0].mxu0
      %v517 = vadd.f32 0.0, %v516
      %v518 = vpop.f32.mrb[0].mxu0
      %519 = vmatprep.mubr.f32.mxu0 0.0
      %520 = vmatmul.mubr.f32.gmra.mrb[0].mxu0 %v375
      %v521 = vpop.f32.mrb[0].mxu0
      %v522 = vadd.f32 0.0, %v521
      %v523 = vpop.f32.mrb[0].mxu0
      %524 = vmatprep.mubr.f32.mxu0 0.0
      %525 = vmatmul.mubr.f32.gmra.mrb[0].mxu0 %v376
      %v526 = vpop.f32.mrb[0].mxu0
      %v527 = vadd.f32 0.0, %v526
      %v528 = vpop.f32.mrb[0].mxu0
      %529 = vmatprep.mubr.f32.mxu0 0.0
      %530 = vmatmul.mubr.f32.gmra.mrb[0].mxu0 %v377
      %v531 = vpop.f32.mrb[0].mxu0
      %v532 = vadd.f32 0.0, %v531
      %v533 = vpop.f32.mrb[0].mxu0
      %534 = vmatprep.mubr.f32.mxu0 0.0
      %535 = vmatmul.mubr.f32.gmra.mrb[0].mxu0 %v378
      %v536 = vpop.f32.mrb[0].mxu0
      %v537 = vadd.f32 0.0, %v536
      %v538 = vpop.f32.mrb[0].mxu0
      %539 = vmatprep.mubr.f32.mxu0 0.0
      %540 = vmatmul.mubr.f32.gmra.mrb[0].mxu0 %v379
      %v541 = vpop.f32.mrb[0].mxu0
      %v542 = vadd.f32 0.0, %v541
      %v543 = vpop.f32.mrb[0].mxu0
      %544 = vmatprep.mubr.f32.mxu0 0.0
      %545 = vmatmul.mubr.f32.gmra.mrb[0].mxu0 %v380
      %v546 = vpop.f32.mrb[0].mxu0
      %v547 = vadd.f32 0.0, %v546
      %v548 = vpop.f32.mrb[0].mxu0
      %549 = vmatprep.mubr.f32.mxu0 0.0
      %550 = vmatmul.mubr.f32.gmra.mrb[0].mxu0 %v381
      %v551 = vpop.f32.mrb[0].mxu0
      %v552 = vadd.f32 0.0, %v551
      %v553 = vpop.f32.mrb[0].mxu0
      %554 = vmatprep.mubr.f32.mxu0 0.0
      %555 = vmatmul.mubr.f32.gmra.mrb[0].mxu0 %v382
      %v556 = vpop.f32.mrb[0].mxu0
      %v557 = vadd.f32 0.0, %v556
      %v558 = vpop.f32.mrb[0].mxu0
      %559 = vdwg.mxu0
      %v560 = vadd.f32 %v399, %v482
      %v561 = vadd.f32 %v400, %v487
      %v562 = vadd.f32 %v401, %v492
      %v563 = vadd.f32 %v402, %v497
      %v564 = vadd.f32 %v403, %v502
      %v565 = vadd.f32 %v404, %v507
      %v566 = vadd.f32 %v405, %v512
      %v567 = vadd.f32 %v406, %v517
      %v568 = vadd.f32 %v407, %v522
      %v569 = vadd.f32 %v408, %v527
      %v570 = vadd.f32 %v409, %v532
      %v571 = vadd.f32 %v410, %v537
      %v572 = vadd.f32 %v411, %v542
      %v573 = vadd.f32 %v412, %v547
      %v574 = vadd.f32 %v413, %v552
      %v575 = vadd.f32 %v414, %v557
      %vm576 = vcmask 130048
      %577 = vst.msk [vmem:[#allocation2] sm:$0xff] %vm576, %v560
      %578 = vst.msk [vmem:[#allocation2 + $0x8] sm:$0xff] %vm576, %v561
      %579 = vst.msk [vmem:[#allocation2 + $0x10] sm:$0xff] %vm576, %v562
      %580 = vst.msk [vmem:[#allocation2 + $0x18] sm:$0xff] %vm576, %v563
      %581 = vst.msk [vmem:[#allocation2 + $0x20] sm:$0xff] %vm576, %v564
      %582 = vst.msk [vmem:[#allocation2 + $0x28] sm:$0xff] %vm576, %v565
      %583 = vst.msk [vmem:[#allocation2 + $0x30] sm:$0xff] %vm576, %v566
      %584 = vst.msk [vmem:[#allocation2 + $0x38] sm:$0xff] %vm576, %v567
      %585 = vst.msk [vmem:[#allocation2 + $0x40] sm:$0xff] %vm576, %v568
      %586 = vst.msk [vmem:[#allocation2 + $0x48] sm:$0xff] %vm576, %v569
      %587 = vst.msk [vmem:[#allocation2 + $0x50] sm:$0xff] %vm576, %v570
      %588 = vst.msk [vmem:[#allocation2 + $0x58] sm:$0xff] %vm576, %v571
      %589 = vst.msk [vmem:[#allocation2 + $0x60] sm:$0xff] %vm576, %v572
      %590 = vst.msk [vmem:[#allocation2 + $0x68] sm:$0xff] %vm576, %v573
      %591 = vst.msk [vmem:[#allocation2 + $0x70] sm:$0xff] %vm576, %v574
      %592 = vst.msk [vmem:[#allocation2 + $0x78] sm:$0xff] %vm576, %v575
      %v593 = vld [vmem:[#allocation3] sm:$0xff]
      %v594 = vld [vmem:[#allocation3 + $0x8] sm:$0xff]
      %v595 = vld [vmem:[#allocation3 + $0x10] sm:$0xff]
      %v596 = vld [vmem:[#allocation3 + $0x18] sm:$0xff]
      %v597 = vld [vmem:[#allocation3 + $0x20] sm:$0xff]
      %v598 = vld [vmem:[#allocation3 + $0x28] sm:$0xff]
      %v599 = vld [vmem:[#allocation3 + $0x30] sm:$0xff]
      %v600 = vld [vmem:[#allocation3 + $0x38] sm:$0xff]
      %v601 = vld [vmem:[#allocation3 + $0x40] sm:$0xff]
      %v602 = vld [vmem:[#allocation3 + $0x48] sm:$0xff]
      %v603 = vld [vmem:[#allocation3 + $0x50] sm:$0xff]
      %v604 = vld [vmem:[#allocation3 + $0x58] sm:$0xff]
      %v605 = vld [vmem:[#allocation3 + $0x60] sm:$0xff]
      %v606 = vld [vmem:[#allocation3 + $0x68] sm:$0xff]
      %v607 = vld [vmem:[#allocation3 + $0x70] sm:$0xff]
      %v608 = vld [vmem:[#allocation3 + $0x78] sm:$0xff]
      %609 = vadd.xlane.f32.xlu0 %v367
      %v610 = vpop.xlane.xlu0 %609
      %611 = vadd.xlane.f32.xlu0 %v368
      %v612 = vpop.xlane.xlu0 %611
      %613 = vadd.xlane.f32.xlu0 %v369
      %v614 = vpop.xlane.xlu0 %613
      %615 = vadd.xlane.f32.xlu0 %v370
      %v616 = vpop.xlane.xlu0 %615
      %617 = vadd.xlane.f32.xlu0 %v371
      %v618 = vpop.xlane.xlu0 %617
      %619 = vadd.xlane.f32.xlu0 %v372
      %v620 = vpop.xlane.xlu0 %619
      %621 = vadd.xlane.f32.xlu0 %v373
      %v622 = vpop.xlane.xlu0 %621
      %623 = vadd.xlane.f32.xlu0 %v374
      %v624 = vpop.xlane.xlu0 %623
      %625 = vadd.xlane.f32.xlu0 %v375
      %v626 = vpop.xlane.xlu0 %625
      %627 = vadd.xlane.f32.xlu0 %v376
      %v628 = vpop.xlane.xlu0 %627
      %629 = vadd.xlane.f32.xlu0 %v377
      %v630 = vpop.xlane.xlu0 %629
      %631 = vadd.xlane.f32.xlu0 %v378
      %v632 = vpop.xlane.xlu0 %631
      %633 = vadd.xlane.f32.xlu0 %v379
      %v634 = vpop.xlane.xlu0 %633
      %635 = vadd.xlane.f32.xlu0 %v380
      %v636 = vpop.xlane.xlu0 %635
      %637 = vadd.xlane.f32.xlu0 %v381
      %v638 = vpop.xlane.xlu0 %637
      %639 = vadd.xlane.f32.xlu0 %v382
      %v640 = vpop.xlane.xlu0 %639
      %v641 = vadd.f32 %v593, %v610
      %v642 = vadd.f32 %v594, %v612
      %v643 = vadd.f32 %v595, %v614
      %v644 = vadd.f32 %v596, %v616
      %v645 = vadd.f32 %v597, %v618
      %v646 = vadd.f32 %v598, %v620
      %v647 = vadd.f32 %v599, %v622
      %v648 = vadd.f32 %v600, %v624
      %v649 = vadd.f32 %v601, %v626
      %v650 = vadd.f32 %v602, %v628
      %v651 = vadd.f32 %v603, %v630
      %v652 = vadd.f32 %v604, %v632
      %v653 = vadd.f32 %v605, %v634
      %v654 = vadd.f32 %v606, %v636
      %v655 = vadd.f32 %v607, %v638
      %v656 = vadd.f32 %v608, %v640
      %vm657 = vcmask 7168
      %658 = vst.msk [vmem:[#allocation3] sm:$0xff] %vm657, %v641
      %659 = vst.msk [vmem:[#allocation3 + $0x8] sm:$0xff] %vm657, %v642
      %660 = vst.msk [vmem:[#allocation3 + $0x10] sm:$0xff] %vm657, %v643
      %661 = vst.msk [vmem:[#allocation3 + $0x18] sm:$0xff] %vm657, %v644
      %662 = vst.msk [vmem:[#allocation3 + $0x20] sm:$0xff] %vm657, %v645
      %663 = vst.msk [vmem:[#allocation3 + $0x28] sm:$0xff] %vm657, %v646
      %664 = vst.msk [vmem:[#allocation3 + $0x30] sm:$0xff] %vm657, %v647
      %665 = vst.msk [vmem:[#allocation3 + $0x38] sm:$0xff] %vm657, %v648
      %666 = vst.msk [vmem:[#allocation3 + $0x40] sm:$0xff] %vm657, %v649
      %667 = vst.msk [vmem:[#allocation3 + $0x48] sm:$0xff] %vm657, %v650
      %668 = vst.msk [vmem:[#allocation3 + $0x50] sm:$0xff] %vm657, %v651
      %669 = vst.msk [vmem:[#allocation3 + $0x58] sm:$0xff] %vm657, %v652
      %670 = vst.msk [vmem:[#allocation3 + $0x60] sm:$0xff] %vm657, %v653
      %671 = vst.msk [vmem:[#allocation3 + $0x68] sm:$0xff] %vm657, %v654
      %672 = vst.msk [vmem:[#allocation3 + $0x70] sm:$0xff] %vm657, %v655
      %673 = vst.msk [vmem:[#allocation3 + $0x78] sm:$0xff] %vm657, %v656
      %v674 = vsel %vm335, 0.0, -inf
      %v675 = vsel %vm336, 0.0, -inf
      %v676 = vsel %vm337, 0.0, -inf
      %v677 = vsel %vm338, 0.0, -inf
      %v678 = vsel %vm339, 0.0, -inf
      %v679 = vsel %vm340, 0.0, -inf
      %v680 = vsel %vm341, 0.0, -inf
      %v681 = vsel %vm342, 0.0, -inf
      %v682 = vsel %vm343, 0.0, -inf
      %v683 = vsel %vm344, 0.0, -inf
      %v684 = vsel %vm345, 0.0, -inf
      %v685 = vsel %vm346, 0.0, -inf
      %v686 = vsel %vm347, 0.0, -inf
      %v687 = vsel %vm348, 0.0, -inf
      %v688 = vsel %vm349, 0.0, -inf
      %v689 = vsel %vm350, 0.0, -inf
      %v690 = vld [vmem:[%s227] sm:$0xff]
      %v691 = vld [vmem:[%s227 + $0x8] sm:$0xff]
      %v692 = vlaneseq
      %v693 = vshrl.u32 %v692, 7
      %v694 = vsub.s32 0, %v693
      %v695 = vrot.slane %v690, %v694
      %v696 = vadd.f32 %v674, %v695
      %v697 = vadd.f32 %v675, %v695
      %v698 = vadd.f32 %v676, %v695
      %v699 = vadd.f32 %v677, %v695
      %v700 = vadd.f32 %v678, %v695
      %v701 = vadd.f32 %v679, %v695
      %v702 = vadd.f32 %v680, %v695
      %v703 = vadd.f32 %v681, %v695
      %v704 = vadd.f32 %v682, %v695
      %v705 = vadd.f32 %v683, %v695
      %v706 = vadd.f32 %v684, %v695
      %v707 = vadd.f32 %v685, %v695
      %v708 = vadd.f32 %v686, %v695
      %v709 = vadd.f32 %v687, %v695
      %v710 = vadd.f32 %v688, %v695
      %v711 = vadd.f32 %v689, %v695
      %712 = vmax.xlane.f32.xlu0 %v696
      %v713 = vpop.xlane.xlu0 %712
      %714 = vmax.xlane.f32.xlu0 %v697
      %v715 = vpop.xlane.xlu0 %714
      %716 = vmax.xlane.f32.xlu0 %v698
      %v717 = vpop.xlane.xlu0 %716
      %718 = vmax.xlane.f32.xlu0 %v699
      %v719 = vpop.xlane.xlu0 %718
      %720 = vmax.xlane.f32.xlu0 %v700
      %v721 = vpop.xlane.xlu0 %720
      %722 = vmax.xlane.f32.xlu0 %v701
      %v723 = vpop.xlane.xlu0 %722
      %724 = vmax.xlane.f32.xlu0 %v702
      %v725 = vpop.xlane.xlu0 %724
      %726 = vmax.xlane.f32.xlu0 %v703
      %v727 = vpop.xlane.xlu0 %726
      %728 = vmax.xlane.f32.xlu0 %v704
      %v729 = vpop.xlane.xlu0 %728
      %730 = vmax.xlane.f32.xlu0 %v705
      %v731 = vpop.xlane.xlu0 %730
      %732 = vmax.xlane.f32.xlu0 %v706
      %v733 = vpop.xlane.xlu0 %732
      %734 = vmax.xlane.f32.xlu0 %v707
      %v735 = vpop.xlane.xlu0 %734
      %736 = vmax.xlane.f32.xlu0 %v708
      %v737 = vpop.xlane.xlu0 %736
      %738 = vmax.xlane.f32.xlu0 %v709
      %v739 = vpop.xlane.xlu0 %738
      %740 = vmax.xlane.f32.xlu0 %v710
      %v741 = vpop.xlane.xlu0 %740
      %742 = vmax.xlane.f32.xlu0 %v711
      %v743 = vpop.xlane.xlu0 %742
      %v744 = vlaneseq
      %v745 = vshrl.u32 %v744, 7
      %v746 = vsub.s32 1, %v745
      %v747 = vrot.slane %v690, %v746
      %v748 = vadd.f32 %v674, %v747
      %v749 = vadd.f32 %v675, %v747
      %v750 = vadd.f32 %v676, %v747
      %v751 = vadd.f32 %v677, %v747
      %v752 = vadd.f32 %v678, %v747
      %v753 = vadd.f32 %v679, %v747
      %v754 = vadd.f32 %v680, %v747
      %v755 = vadd.f32 %v681, %v747
      %v756 = vadd.f32 %v682, %v747
      %v757 = vadd.f32 %v683, %v747
      %v758 = vadd.f32 %v684, %v747
      %v759 = vadd.f32 %v685, %v747
      %v760 = vadd.f32 %v686, %v747
      %v761 = vadd.f32 %v687, %v747
      %v762 = vadd.f32 %v688, %v747
      %v763 = vadd.f32 %v689, %v747
      %764 = vmax.xlane.f32.xlu0 %v748
      %v765 = vpop.xlane.xlu0 %764
      %766 = vmax.xlane.f32.xlu0 %v749
      %v767 = vpop.xlane.xlu0 %766
      %768 = vmax.xlane.f32.xlu0 %v750
      %v769 = vpop.xlane.xlu0 %768
      %770 = vmax.xlane.f32.xlu0 %v751
      %v771 = vpop.xlane.xlu0 %770
      %772 = vmax.xlane.f32.xlu0 %v752
      %v773 = vpop.xlane.xlu0 %772
      %774 = vmax.xlane.f32.xlu0 %v753
      %v775 = vpop.xlane.xlu0 %774
      %776 = vmax.xlane.f32.xlu0 %v754
      %v777 = vpop.xlane.xlu0 %776
      %778 = vmax.xlane.f32.xlu0 %v755
      %v779 = vpop.xlane.xlu0 %778
      %780 = vmax.xlane.f32.xlu0 %v756
      %v781 = vpop.xlane.xlu0 %780
      %782 = vmax.xlane.f32.xlu0 %v757
      %v783 = vpop.xlane.xlu0 %782
      %784 = vmax.xlane.f32.xlu0 %v758
      %v785 = vpop.xlane.xlu0 %784
      %786 = vmax.xlane.f32.xlu0 %v759
      %v787 = vpop.xlane.xlu0 %786
      %788 = vmax.xlane.f32.xlu0 %v760
      %v789 = vpop.xlane.xlu0 %788
      %790 = vmax.xlane.f32.xlu0 %v761
      %v791 = vpop.xlane.xlu0 %790
      %792 = vmax.xlane.f32.xlu0 %v762
      %v793 = vpop.xlane.xlu0 %792
      %794 = vmax.xlane.f32.xlu0 %v763
      %v795 = vpop.xlane.xlu0 %794
      %v796 = vlaneseq
      %v797 = vshrl.u32 %v796, 7
      %v798 = vsub.s32 2, %v797
      %v799 = vrot.slane %v690, %v798
      %v800 = vadd.f32 %v674, %v799
      %v801 = vadd.f32 %v675, %v799
      %v802 = vadd.f32 %v676, %v799
      %v803 = vadd.f32 %v677, %v799
      %v804 = vadd.f32 %v678, %v799
      %v805 = vadd.f32 %v679, %v799
      %v806 = vadd.f32 %v680, %v799
      %v807 = vadd.f32 %v681, %v799
      %v808 = vadd.f32 %v682, %v799
      %v809 = vadd.f32 %v683, %v799
      %v810 = vadd.f32 %v684, %v799
      %v811 = vadd.f32 %v685, %v799
      %v812 = vadd.f32 %v686, %v799
      %v813 = vadd.f32 %v687, %v799
      %v814 = vadd.f32 %v688, %v799
      %v815 = vadd.f32 %v689, %v799
      %816 = vmax.xlane.f32.xlu0 %v800
      %v817 = vpop.xlane.xlu0 %816
      %818 = vmax.xlane.f32.xlu0 %v801
      %v819 = vpop.xlane.xlu0 %818
      %820 = vmax.xlane.f32.xlu0 %v802
      %v821 = vpop.xlane.xlu0 %820
      %822 = vmax.xlane.f32.xlu0 %v803
      %v823 = vpop.xlane.xlu0 %822
      %824 = vmax.xlane.f32.xlu0 %v804
      %v825 = vpop.xlane.xlu0 %824
      %826 = vmax.xlane.f32.xlu0 %v805
      %v827 = vpop.xlane.xlu0 %826
      %828 = vmax.xlane.f32.xlu0 %v806
      %v829 = vpop.xlane.xlu0 %828
      %830 = vmax.xlane.f32.xlu0 %v807
      %v831 = vpop.xlane.xlu0 %830
      %832 = vmax.xlane.f32.xlu0 %v808
      %v833 = vpop.xlane.xlu0 %832
      %834 = vmax.xlane.f32.xlu0 %v809
      %v835 = vpop.xlane.xlu0 %834
      %836 = vmax.xlane.f32.xlu0 %v810
      %v837 = vpop.xlane.xlu0 %836
      %838 = vmax.xlane.f32.xlu0 %v811
      %v839 = vpop.xlane.xlu0 %838
      %840 = vmax.xlane.f32.xlu0 %v812
      %v841 = vpop.xlane.xlu0 %840
      %842 = vmax.xlane.f32.xlu0 %v813
      %v843 = vpop.xlane.xlu0 %842
      %844 = vmax.xlane.f32.xlu0 %v814
      %v845 = vpop.xlane.xlu0 %844
      %846 = vmax.xlane.f32.xlu0 %v815
      %v847 = vpop.xlane.xlu0 %846
      %v848 = vlaneseq
      %v849 = vshrl.u32 %v848, 7
      %v850 = vsub.s32 3, %v849
      %v851 = vrot.slane %v690, %v850
      %v852 = vadd.f32 %v674, %v851
      %v853 = vadd.f32 %v675, %v851
      %v854 = vadd.f32 %v676, %v851
      %v855 = vadd.f32 %v677, %v851
      %v856 = vadd.f32 %v678, %v851
      %v857 = vadd.f32 %v679, %v851
      %v858 = vadd.f32 %v680, %v851
      %v859 = vadd.f32 %v681, %v851
      %v860 = vadd.f32 %v682, %v851
      %v861 = vadd.f32 %v683, %v851
      %v862 = vadd.f32 %v684, %v851
      %v863 = vadd.f32 %v685, %v851
      %v864 = vadd.f32 %v686, %v851
      %v865 = vadd.f32 %v687, %v851
      %v866 = vadd.f32 %v688, %v851
      %v867 = vadd.f32 %v689, %v851
      %868 = vmax.xlane.f32.xlu0 %v852
      %v869 = vpop.xlane.xlu0 %868
      %870 = vmax.xlane.f32.xlu0 %v853
      %v871 = vpop.xlane.xlu0 %870
      %872 = vmax.xlane.f32.xlu0 %v854
      %v873 = vpop.xlane.xlu0 %872
      %874 = vmax.xlane.f32.xlu0 %v855
      %v875 = vpop.xlane.xlu0 %874
      %876 = vmax.xlane.f32.xlu0 %v856
      %v877 = vpop.xlane.xlu0 %876
      %878 = vmax.xlane.f32.xlu0 %v857
      %v879 = vpop.xlane.xlu0 %878
      %880 = vmax.xlane.f32.xlu0 %v858
      %v881 = vpop.xlane.xlu0 %880
      %882 = vmax.xlane.f32.xlu0 %v859
      %v883 = vpop.xlane.xlu0 %882
      %884 = vmax.xlane.f32.xlu0 %v860
      %v885 = vpop.xlane.xlu0 %884
      %886 = vmax.xlane.f32.xlu0 %v861
      %v887 = vpop.xlane.xlu0 %886
      %888 = vmax.xlane.f32.xlu0 %v862
      %v889 = vpop.xlane.xlu0 %888
      %890 = vmax.xlane.f32.xlu0 %v863
      %v891 = vpop.xlane.xlu0 %890
      %892 = vmax.xlane.f32.xlu0 %v864
      %v893 = vpop.xlane.xlu0 %892
      %894 = vmax.xlane.f32.xlu0 %v865
      %v895 = vpop.xlane.xlu0 %894
      %896 = vmax.xlane.f32.xlu0 %v866
      %v897 = vpop.xlane.xlu0 %896
      %898 = vmax.xlane.f32.xlu0 %v867
      %v899 = vpop.xlane.xlu0 %898
      %v900 = vlaneseq
      %v901 = vshrl.u32 %v900, 7
      %v902 = vsub.s32 4, %v901
      %v903 = vrot.slane %v690, %v902
      %v904 = vadd.f32 %v674, %v903
      %v905 = vadd.f32 %v675, %v903
      %v906 = vadd.f32 %v676, %v903
      %v907 = vadd.f32 %v677, %v903
      %v908 = vadd.f32 %v678, %v903
      %v909 = vadd.f32 %v679, %v903
      %v910 = vadd.f32 %v680, %v903
      %v911 = vadd.f32 %v681, %v903
      %v912 = vadd.f32 %v682, %v903
      %v913 = vadd.f32 %v683, %v903
      %v914 = vadd.f32 %v684, %v903
      %v915 = vadd.f32 %v685, %v903
      %v916 = vadd.f32 %v686, %v903
      %v917 = vadd.f32 %v687, %v903
      %v918 = vadd.f32 %v688, %v903
      %v919 = vadd.f32 %v689, %v903
      %920 = vmax.xlane.f32.xlu0 %v904
      %v921 = vpop.xlane.xlu0 %920
      %922 = vmax.xlane.f32.xlu0 %v905
      %v923 = vpop.xlane.xlu0 %922
      %924 = vmax.xlane.f32.xlu0 %v906
      %v925 = vpop.xlane.xlu0 %924
      %926 = vmax.xlane.f32.xlu0 %v907
      %v927 = vpop.xlane.xlu0 %926
      %928 = vmax.xlane.f32.xlu0 %v908
      %v929 = vpop.xlane.xlu0 %928
      %930 = vmax.xlane.f32.xlu0 %v909
      %v931 = vpop.xlane.xlu0 %930
      %932 = vmax.xlane.f32.xlu0 %v910
      %v933 = vpop.xlane.xlu0 %932
      %934 = vmax.xlane.f32.xlu0 %v911
      %v935 = vpop.xlane.xlu0 %934
      %936 = vmax.xlane.f32.xlu0 %v912
      %v937 = vpop.xlane.xlu0 %936
      %938 = vmax.xlane.f32.xlu0 %v913
      %v939 = vpop.xlane.xlu0 %938
      %940 = vmax.xlane.f32.xlu0 %v914
      %v941 = vpop.xlane.xlu0 %940
      %942 = vmax.xlane.f32.xlu0 %v915
      %v943 = vpop.xlane.xlu0 %942
      %944 = vmax.xlane.f32.xlu0 %v916
      %v945 = vpop.xlane.xlu0 %944
      %946 = vmax.xlane.f32.xlu0 %v917
      %v947 = vpop.xlane.xlu0 %946
      %948 = vmax.xlane.f32.xlu0 %v918
      %v949 = vpop.xlane.xlu0 %948
      %950 = vmax.xlane.f32.xlu0 %v919
      %v951 = vpop.xlane.xlu0 %950
      %v952 = vlaneseq
      %v953 = vshrl.u32 %v952, 7
      %v954 = vsub.s32 5, %v953
      %v955 = vrot.slane %v690, %v954
      %v956 = vadd.f32 %v674, %v955
      %v957 = vadd.f32 %v675, %v955
      %v958 = vadd.f32 %v676, %v955
      %v959 = vadd.f32 %v677, %v955
      %v960 = vadd.f32 %v678, %v955
      %v961 = vadd.f32 %v679, %v955
      %v962 = vadd.f32 %v680, %v955
      %v963 = vadd.f32 %v681, %v955
      %v964 = vadd.f32 %v682, %v955
      %v965 = vadd.f32 %v683, %v955
      %v966 = vadd.f32 %v684, %v955
      %v967 = vadd.f32 %v685, %v955
      %v968 = vadd.f32 %v686, %v955
      %v969 = vadd.f32 %v687, %v955
      %v970 = vadd.f32 %v688, %v955
      %v971 = vadd.f32 %v689, %v955
      %972 = vmax.xlane.f32.xlu0 %v956
      %v973 = vpop.xlane.xlu0 %972
      %974 = vmax.xlane.f32.xlu0 %v957
      %v975 = vpop.xlane.xlu0 %974
      %976 = vmax.xlane.f32.xlu0 %v958
      %v977 = vpop.xlane.xlu0 %976
      %978 = vmax.xlane.f32.xlu0 %v959
      %v979 = vpop.xlane.xlu0 %978
      %980 = vmax.xlane.f32.xlu0 %v960
      %v981 = vpop.xlane.xlu0 %980
      %982 = vmax.xlane.f32.xlu0 %v961
      %v983 = vpop.xlane.xlu0 %982
      %984 = vmax.xlane.f32.xlu0 %v962
      %v985 = vpop.xlane.xlu0 %984
      %986 = vmax.xlane.f32.xlu0 %v963
      %v987 = vpop.xlane.xlu0 %986
      %988 = vmax.xlane.f32.xlu0 %v964
      %v989 = vpop.xlane.xlu0 %988
      %990 = vmax.xlane.f32.xlu0 %v965
      %v991 = vpop.xlane.xlu0 %990
      %992 = vmax.xlane.f32.xlu0 %v966
      %v993 = vpop.xlane.xlu0 %992
      %994 = vmax.xlane.f32.xlu0 %v967
      %v995 = vpop.xlane.xlu0 %994
      %996 = vmax.xlane.f32.xlu0 %v968
      %v997 = vpop.xlane.xlu0 %996
      %998 = vmax.xlane.f32.xlu0 %v969
      %v999 = vpop.xlane.xlu0 %998
      %1000 = vmax.xlane.f32.xlu0 %v970
      %v1001 = vpop.xlane.xlu0 %1000
      %1002 = vmax.xlane.f32.xlu0 %v971
      %v1003 = vpop.xlane.xlu0 %1002
      %v1004 = vlaneseq
      %v1005 = vshrl.u32 %v1004, 7
      %v1006 = vsub.s32 6, %v1005
      %v1007 = vrot.slane %v690, %v1006
      %v1008 = vadd.f32 %v674, %v1007
      %v1009 = vadd.f32 %v675, %v1007
      %v1010 = vadd.f32 %v676, %v1007
      %v1011 = vadd.f32 %v677, %v1007
      %v1012 = vadd.f32 %v678, %v1007
      %v1013 = vadd.f32 %v679, %v1007
      %v1014 = vadd.f32 %v680, %v1007
      %v1015 = vadd.f32 %v681, %v1007
      %v1016 = vadd.f32 %v682, %v1007
      %v1017 = vadd.f32 %v683, %v1007
      %v1018 = vadd.f32 %v684, %v1007
      %v1019 = vadd.f32 %v685, %v1007
      %v1020 = vadd.f32 %v686, %v1007
      %v1021 = vadd.f32 %v687, %v1007
      %v1022 = vadd.f32 %v688, %v1007
      %v1023 = vadd.f32 %v689, %v1007
      %1024 = vmax.xlane.f32.xlu0 %v1008
      %v1025 = vpop.xlane.xlu0 %1024
      %1026 = vmax.xlane.f32.xlu0 %v1009
      %v1027 = vpop.xlane.xlu0 %1026
      %1028 = vmax.xlane.f32.xlu0 %v1010
      %v1029 = vpop.xlane.xlu0 %1028
      %1030 = vmax.xlane.f32.xlu0 %v1011
      %v1031 = vpop.xlane.xlu0 %1030
      %1032 = vmax.xlane.f32.xlu0 %v1012
      %v1033 = vpop.xlane.xlu0 %1032
      %1034 = vmax.xlane.f32.xlu0 %v1013
      %v1035 = vpop.xlane.xlu0 %1034
      %1036 = vmax.xlane.f32.xlu0 %v1014
      %v1037 = vpop.xlane.xlu0 %1036
      %1038 = vmax.xlane.f32.xlu0 %v1015
      %v1039 = vpop.xlane.xlu0 %1038
      %1040 = vmax.xlane.f32.xlu0 %v1016
      %v1041 = vpop.xlane.xlu0 %1040
      %1042 = vmax.xlane.f32.xlu0 %v1017
      %v1043 = vpop.xlane.xlu0 %1042
      %1044 = vmax.xlane.f32.xlu0 %v1018
      %v1045 = vpop.xlane.xlu0 %1044
      %1046 = vmax.xlane.f32.xlu0 %v1019
      %v1047 = vpop.xlane.xlu0 %1046
      %1048 = vmax.xlane.f32.xlu0 %v1020
      %v1049 = vpop.xlane.xlu0 %1048
      %1050 = vmax.xlane.f32.xlu0 %v1021
      %v1051 = vpop.xlane.xlu0 %1050
      %1052 = vmax.xlane.f32.xlu0 %v1022
      %v1053 = vpop.xlane.xlu0 %1052
      %1054 = vmax.xlane.f32.xlu0 %v1023
      %v1055 = vpop.xlane.xlu0 %1054
      %v1056 = vlaneseq
      %v1057 = vshrl.u32 %v1056, 7
      %v1058 = vsub.s32 7, %v1057
      %v1059 = vrot.slane %v690, %v1058
      %v1060 = vadd.f32 %v674, %v1059
      %v1061 = vadd.f32 %v675, %v1059
      %v1062 = vadd.f32 %v676, %v1059
      %v1063 = vadd.f32 %v677, %v1059
      %v1064 = vadd.f32 %v678, %v1059
      %v1065 = vadd.f32 %v679, %v1059
      %v1066 = vadd.f32 %v680, %v1059
      %v1067 = vadd.f32 %v681, %v1059
      %v1068 = vadd.f32 %v682, %v1059
      %v1069 = vadd.f32 %v683, %v1059
      %v1070 = vadd.f32 %v684, %v1059
      %v1071 = vadd.f32 %v685, %v1059
      %v1072 = vadd.f32 %v686, %v1059
      %v1073 = vadd.f32 %v687, %v1059
      %v1074 = vadd.f32 %v688, %v1059
      %v1075 = vadd.f32 %v689, %v1059
      %1076 = vmax.xlane.f32.xlu0 %v1060
      %v1077 = vpop.xlane.xlu0 %1076
      %1078 = vmax.xlane.f32.xlu0 %v1061
      %v1079 = vpop.xlane.xlu0 %1078
      %1080 = vmax.xlane.f32.xlu0 %v1062
      %v1081 = vpop.xlane.xlu0 %1080
      %1082 = vmax.xlane.f32.xlu0 %v1063
      %v1083 = vpop.xlane.xlu0 %1082
      %1084 = vmax.xlane.f32.xlu0 %v1064
      %v1085 = vpop.xlane.xlu0 %1084
      %1086 = vmax.xlane.f32.xlu0 %v1065
      %v1087 = vpop.xlane.xlu0 %1086
      %1088 = vmax.xlane.f32.xlu0 %v1066
      %v1089 = vpop.xlane.xlu0 %1088
      %1090 = vmax.xlane.f32.xlu0 %v1067
      %v1091 = vpop.xlane.xlu0 %1090
      %1092 = vmax.xlane.f32.xlu0 %v1068
      %v1093 = vpop.xlane.xlu0 %1092
      %1094 = vmax.xlane.f32.xlu0 %v1069
      %v1095 = vpop.xlane.xlu0 %1094
      %1096 = vmax.xlane.f32.xlu0 %v1070
      %v1097 = vpop.xlane.xlu0 %1096
      %1098 = vmax.xlane.f32.xlu0 %v1071
      %v1099 = vpop.xlane.xlu0 %1098
      %1100 = vmax.xlane.f32.xlu0 %v1072
      %v1101 = vpop.xlane.xlu0 %1100
      %1102 = vmax.xlane.f32.xlu0 %v1073
      %v1103 = vpop.xlane.xlu0 %1102
      %1104 = vmax.xlane.f32.xlu0 %v1074
      %v1105 = vpop.xlane.xlu0 %1104
      %1106 = vmax.xlane.f32.xlu0 %v1075
      %v1107 = vpop.xlane.xlu0 %1106
      %v1108 = vlaneseq
      %v1109 = vshrl.u32 %v1108, 7
      %v1110 = vsub.s32 0, %v1109
      %v1111 = vrot.slane %v691, %v1110
      %v1112 = vadd.f32 %v674, %v1111
      %v1113 = vadd.f32 %v675, %v1111
      %v1114 = vadd.f32 %v676, %v1111
      %v1115 = vadd.f32 %v677, %v1111
      %v1116 = vadd.f32 %v678, %v1111
      %v1117 = vadd.f32 %v679, %v1111
      %v1118 = vadd.f32 %v680, %v1111
      %v1119 = vadd.f32 %v681, %v1111
      %v1120 = vadd.f32 %v682, %v1111
      %v1121 = vadd.f32 %v683, %v1111
      %v1122 = vadd.f32 %v684, %v1111
      %v1123 = vadd.f32 %v685, %v1111
      %v1124 = vadd.f32 %v686, %v1111
      %v1125 = vadd.f32 %v687, %v1111
      %v1126 = vadd.f32 %v688, %v1111
      %v1127 = vadd.f32 %v689, %v1111
      %1128 = vmax.xlane.f32.xlu0 %v1112
      %v1129 = vpop.xlane.xlu0 %1128
      %1130 = vmax.xlane.f32.xlu0 %v1113
      %v1131 = vpop.xlane.xlu0 %1130
      %1132 = vmax.xlane.f32.xlu0 %v1114
      %v1133 = vpop.xlane.xlu0 %1132
      %1134 = vmax.xlane.f32.xlu0 %v1115
      %v1135 = vpop.xlane.xlu0 %1134
      %1136 = vmax.xlane.f32.xlu0 %v1116
      %v1137 = vpop.xlane.xlu0 %1136
      %1138 = vmax.xlane.f32.xlu0 %v1117
      %v1139 = vpop.xlane.xlu0 %1138
      %1140 = vmax.xlane.f32.xlu0 %v1118
      %v1141 = vpop.xlane.xlu0 %1140
      %1142 = vmax.xlane.f32.xlu0 %v1119
      %v1143 = vpop.xlane.xlu0 %1142
      %1144 = vmax.xlane.f32.xlu0 %v1120
      %v1145 = vpop.xlane.xlu0 %1144
      %1146 = vmax.xlane.f32.xlu0 %v1121
      %v1147 = vpop.xlane.xlu0 %1146
      %1148 = vmax.xlane.f32.xlu0 %v1122
      %v1149 = vpop.xlane.xlu0 %1148
      %1150 = vmax.xlane.f32.xlu0 %v1123
      %v1151 = vpop.xlane.xlu0 %1150
      %1152 = vmax.xlane.f32.xlu0 %v1124
      %v1153 = vpop.xlane.xlu0 %1152
      %1154 = vmax.xlane.f32.xlu0 %v1125
      %v1155 = vpop.xlane.xlu0 %1154
      %1156 = vmax.xlane.f32.xlu0 %v1126
      %v1157 = vpop.xlane.xlu0 %1156
      %1158 = vmax.xlane.f32.xlu0 %v1127
      %v1159 = vpop.xlane.xlu0 %1158
      %v1160 = vlaneseq
      %v1161 = vshrl.u32 %v1160, 7
      %v1162 = vsub.s32 1, %v1161
      %v1163 = vrot.slane %v691, %v1162
      %v1164 = vadd.f32 %v674, %v1163
      %v1165 = vadd.f32 %v675, %v1163
      %v1166 = vadd.f32 %v676, %v1163
      %v1167 = vadd.f32 %v677, %v1163
      %v1168 = vadd.f32 %v678, %v1163
      %v1169 = vadd.f32 %v679, %v1163
      %v1170 = vadd.f32 %v680, %v1163
      %v1171 = vadd.f32 %v681, %v1163
      %v1172 = vadd.f32 %v682, %v1163
      %v1173 = vadd.f32 %v683, %v1163
      %v1174 = vadd.f32 %v684, %v1163
      %v1175 = vadd.f32 %v685, %v1163
      %v1176 = vadd.f32 %v686, %v1163
      %v1177 = vadd.f32 %v687, %v1163
      %v1178 = vadd.f32 %v688, %v1163
      %v1179 = vadd.f32 %v689, %v1163
      %1180 = vmax.xlane.f32.xlu0 %v1164
      %v1181 = vpop.xlane.xlu0 %1180
      %1182 = vmax.xlane.f32.xlu0 %v1165
      %v1183 = vpop.xlane.xlu0 %1182
      %1184 = vmax.xlane.f32.xlu0 %v1166
      %v1185 = vpop.xlane.xlu0 %1184
      %1186 = vmax.xlane.f32.xlu0 %v1167
      %v1187 = vpop.xlane.xlu0 %1186
      %1188 = vmax.xlane.f32.xlu0 %v1168
      %v1189 = vpop.xlane.xlu0 %1188
      %1190 = vmax.xlane.f32.xlu0 %v1169
      %v1191 = vpop.xlane.xlu0 %1190
      %1192 = vmax.xlane.f32.xlu0 %v1170
      %v1193 = vpop.xlane.xlu0 %1192
      %1194 = vmax.xlane.f32.xlu0 %v1171
      %v1195 = vpop.xlane.xlu0 %1194
      %1196 = vmax.xlane.f32.xlu0 %v1172
      %v1197 = vpop.xlane.xlu0 %1196
      %1198 = vmax.xlane.f32.xlu0 %v1173
      %v1199 = vpop.xlane.xlu0 %1198
      %1200 = vmax.xlane.f32.xlu0 %v1174
      %v1201 = vpop.xlane.xlu0 %1200
      %1202 = vmax.xlane.f32.xlu0 %v1175
      %v1203 = vpop.xlane.xlu0 %1202
      %1204 = vmax.xlane.f32.xlu0 %v1176
      %v1205 = vpop.xlane.xlu0 %1204
      %1206 = vmax.xlane.f32.xlu0 %v1177
      %v1207 = vpop.xlane.xlu0 %1206
      %1208 = vmax.xlane.f32.xlu0 %v1178
      %v1209 = vpop.xlane.xlu0 %1208
      %1210 = vmax.xlane.f32.xlu0 %v1179
      %v1211 = vpop.xlane.xlu0 %1210
      %v1212 = vlaneseq
      %v1213 = vshrl.u32 %v1212, 7
      %v1214 = vsub.s32 2, %v1213
      %v1215 = vrot.slane %v691, %v1214
      %v1216 = vadd.f32 %v674, %v1215
      %v1217 = vadd.f32 %v675, %v1215
      %v1218 = vadd.f32 %v676, %v1215
      %v1219 = vadd.f32 %v677, %v1215
      %v1220 = vadd.f32 %v678, %v1215
      %v1221 = vadd.f32 %v679, %v1215
      %v1222 = vadd.f32 %v680, %v1215
      %v1223 = vadd.f32 %v681, %v1215
      %v1224 = vadd.f32 %v682, %v1215
      %v1225 = vadd.f32 %v683, %v1215
      %v1226 = vadd.f32 %v684, %v1215
      %v1227 = vadd.f32 %v685, %v1215
      %v1228 = vadd.f32 %v686, %v1215
      %v1229 = vadd.f32 %v687, %v1215
      %v1230 = vadd.f32 %v688, %v1215
      %v1231 = vadd.f32 %v689, %v1215
      %1232 = vmax.xlane.f32.xlu0 %v1216
      %v1233 = vpop.xlane.xlu0 %1232
      %1234 = vmax.xlane.f32.xlu0 %v1217
      %v1235 = vpop.xlane.xlu0 %1234
      %1236 = vmax.xlane.f32.xlu0 %v1218
      %v1237 = vpop.xlane.xlu0 %1236
      %1238 = vmax.xlane.f32.xlu0 %v1219
      %v1239 = vpop.xlane.xlu0 %1238
      %1240 = vmax.xlane.f32.xlu0 %v1220
      %v1241 = vpop.xlane.xlu0 %1240
      %1242 = vmax.xlane.f32.xlu0 %v1221
      %v1243 = vpop.xlane.xlu0 %1242
      %1244 = vmax.xlane.f32.xlu0 %v1222
      %v1245 = vpop.xlane.xlu0 %1244
      %1246 = vmax.xlane.f32.xlu0 %v1223
      %v1247 = vpop.xlane.xlu0 %1246
      %1248 = vmax.xlane.f32.xlu0 %v1224
      %v1249 = vpop.xlane.xlu0 %1248
      %1250 = vmax.xlane.f32.xlu0 %v1225
      %v1251 = vpop.xlane.xlu0 %1250
      %1252 = vmax.xlane.f32.xlu0 %v1226
      %v1253 = vpop.xlane.xlu0 %1252
      %1254 = vmax.xlane.f32.xlu0 %v1227
      %v1255 = vpop.xlane.xlu0 %1254
      %1256 = vmax.xlane.f32.xlu0 %v1228
      %v1257 = vpop.xlane.xlu0 %1256
      %1258 = vmax.xlane.f32.xlu0 %v1229
      %v1259 = vpop.xlane.xlu0 %1258
      %1260 = vmax.xlane.f32.xlu0 %v1230
      %v1261 = vpop.xlane.xlu0 %1260
      %1262 = vmax.xlane.f32.xlu0 %v1231
      %v1263 = vpop.xlane.xlu0 %1262
      %v1264 = vlaneseq
      %v1265 = vshrl.u32 %v1264, 7
      %v1266 = vsub.s32 3, %v1265
      %v1267 = vrot.slane %v691, %v1266
      %v1268 = vadd.f32 %v674, %v1267
      %v1269 = vadd.f32 %v675, %v1267
      %v1270 = vadd.f32 %v676, %v1267
      %v1271 = vadd.f32 %v677, %v1267
      %v1272 = vadd.f32 %v678, %v1267
      %v1273 = vadd.f32 %v679, %v1267
      %v1274 = vadd.f32 %v680, %v1267
      %v1275 = vadd.f32 %v681, %v1267
      %v1276 = vadd.f32 %v682, %v1267
      %v1277 = vadd.f32 %v683, %v1267
      %v1278 = vadd.f32 %v684, %v1267
      %v1279 = vadd.f32 %v685, %v1267
      %v1280 = vadd.f32 %v686, %v1267
      %v1281 = vadd.f32 %v687, %v1267
      %v1282 = vadd.f32 %v688, %v1267
      %v1283 = vadd.f32 %v689, %v1267
      %1284 = vmax.xlane.f32.xlu0 %v1268
      %v1285 = vpop.xlane.xlu0 %1284
      %1286 = vmax.xlane.f32.xlu0 %v1269
      %v1287 = vpop.xlane.xlu0 %1286
      %1288 = vmax.xlane.f32.xlu0 %v1270
      %v1289 = vpop.xlane.xlu0 %1288
      %1290 = vmax.xlane.f32.xlu0 %v1271
      %v1291 = vpop.xlane.xlu0 %1290
      %1292 = vmax.xlane.f32.xlu0 %v1272
      %v1293 = vpop.xlane.xlu0 %1292
      %1294 = vmax.xlane.f32.xlu0 %v1273
      %v1295 = vpop.xlane.xlu0 %1294
      %1296 = vmax.xlane.f32.xlu0 %v1274
      %v1297 = vpop.xlane.xlu0 %1296
      %1298 = vmax.xlane.f32.xlu0 %v1275
      %v1299 = vpop.xlane.xlu0 %1298
      %1300 = vmax.xlane.f32.xlu0 %v1276
      %v1301 = vpop.xlane.xlu0 %1300
      %1302 = vmax.xlane.f32.xlu0 %v1277
      %v1303 = vpop.xlane.xlu0 %1302
      %1304 = vmax.xlane.f32.xlu0 %v1278
      %v1305 = vpop.xlane.xlu0 %1304
      %1306 = vmax.xlane.f32.xlu0 %v1279
      %v1307 = vpop.xlane.xlu0 %1306
      %1308 = vmax.xlane.f32.xlu0 %v1280
      %v1309 = vpop.xlane.xlu0 %1308
      %1310 = vmax.xlane.f32.xlu0 %v1281
      %v1311 = vpop.xlane.xlu0 %1310
      %1312 = vmax.xlane.f32.xlu0 %v1282
      %v1313 = vpop.xlane.xlu0 %1312
      %1314 = vmax.xlane.f32.xlu0 %v1283
      %v1315 = vpop.xlane.xlu0 %1314
      %v1316 = vlaneseq
      %v1317 = vshrl.u32 %v1316, 7
      %v1318 = vsub.s32 4, %v1317
      %v1319 = vrot.slane %v691, %v1318
      %v1320 = vadd.f32 %v674, %v1319
      %v1321 = vadd.f32 %v675, %v1319
      %v1322 = vadd.f32 %v676, %v1319
      %v1323 = vadd.f32 %v677, %v1319
      %v1324 = vadd.f32 %v678, %v1319
      %v1325 = vadd.f32 %v679, %v1319
      %v1326 = vadd.f32 %v680, %v1319
      %v1327 = vadd.f32 %v681, %v1319
      %v1328 = vadd.f32 %v682, %v1319
      %v1329 = vadd.f32 %v683, %v1319
      %v1330 = vadd.f32 %v684, %v1319
      %v1331 = vadd.f32 %v685, %v1319
      %v1332 = vadd.f32 %v686, %v1319
      %v1333 = vadd.f32 %v687, %v1319
      %v1334 = vadd.f32 %v688, %v1319
      %v1335 = vadd.f32 %v689, %v1319
      %1336 = vmax.xlane.f32.xlu0 %v1320
      %v1337 = vpop.xlane.xlu0 %1336
      %1338 = vmax.xlane.f32.xlu0 %v1321
      %v1339 = vpop.xlane.xlu0 %1338
      %1340 = vmax.xlane.f32.xlu0 %v1322
      %v1341 = vpop.xlane.xlu0 %1340
      %1342 = vmax.xlane.f32.xlu0 %v1323
      %v1343 = vpop.xlane.xlu0 %1342
      %1344 = vmax.xlane.f32.xlu0 %v1324
      %v1345 = vpop.xlane.xlu0 %1344
      %1346 = vmax.xlane.f32.xlu0 %v1325
      %v1347 = vpop.xlane.xlu0 %1346
      %1348 = vmax.xlane.f32.xlu0 %v1326
      %v1349 = vpop.xlane.xlu0 %1348
      %1350 = vmax.xlane.f32.xlu0 %v1327
      %v1351 = vpop.xlane.xlu0 %1350
      %1352 = vmax.xlane.f32.xlu0 %v1328
      %v1353 = vpop.xlane.xlu0 %1352
      %1354 = vmax.xlane.f32.xlu0 %v1329
      %v1355 = vpop.xlane.xlu0 %1354
      %1356 = vmax.xlane.f32.xlu0 %v1330
      %v1357 = vpop.xlane.xlu0 %1356
      %1358 = vmax.xlane.f32.xlu0 %v1331
      %v1359 = vpop.xlane.xlu0 %1358
      %1360 = vmax.xlane.f32.xlu0 %v1332
      %v1361 = vpop.xlane.xlu0 %1360
      %1362 = vmax.xlane.f32.xlu0 %v1333
      %v1363 = vpop.xlane.xlu0 %1362
      %1364 = vmax.xlane.f32.xlu0 %v1334
      %v1365 = vpop.xlane.xlu0 %1364
      %1366 = vmax.xlane.f32.xlu0 %v1335
      %v1367 = vpop.xlane.xlu0 %1366
      %v1368 = vlaneseq
      %v1369 = vshrl.u32 %v1368, 7
      %v1370 = vsub.s32 5, %v1369
      %v1371 = vrot.slane %v691, %v1370
      %v1372 = vadd.f32 %v674, %v1371
      %v1373 = vadd.f32 %v675, %v1371
      %v1374 = vadd.f32 %v676, %v1371
      %v1375 = vadd.f32 %v677, %v1371
      %v1376 = vadd.f32 %v678, %v1371
      %v1377 = vadd.f32 %v679, %v1371
      %v1378 = vadd.f32 %v680, %v1371
      %v1379 = vadd.f32 %v681, %v1371
      %v1380 = vadd.f32 %v682, %v1371
      %v1381 = vadd.f32 %v683, %v1371
      %v1382 = vadd.f32 %v684, %v1371
      %v1383 = vadd.f32 %v685, %v1371
      %v1384 = vadd.f32 %v686, %v1371
      %v1385 = vadd.f32 %v687, %v1371
      %v1386 = vadd.f32 %v688, %v1371
      %v1387 = vadd.f32 %v689, %v1371
      %1388 = vmax.xlane.f32.xlu0 %v1372
      %v1389 = vpop.xlane.xlu0 %1388
      %1390 = vmax.xlane.f32.xlu0 %v1373
      %v1391 = vpop.xlane.xlu0 %1390
      %1392 = vmax.xlane.f32.xlu0 %v1374
      %v1393 = vpop.xlane.xlu0 %1392
      %1394 = vmax.xlane.f32.xlu0 %v1375
      %v1395 = vpop.xlane.xlu0 %1394
      %1396 = vmax.xlane.f32.xlu0 %v1376
      %v1397 = vpop.xlane.xlu0 %1396
      %1398 = vmax.xlane.f32.xlu0 %v1377
      %v1399 = vpop.xlane.xlu0 %1398
      %1400 = vmax.xlane.f32.xlu0 %v1378
      %v1401 = vpop.xlane.xlu0 %1400
      %1402 = vmax.xlane.f32.xlu0 %v1379
      %v1403 = vpop.xlane.xlu0 %1402
      %1404 = vmax.xlane.f32.xlu0 %v1380
      %v1405 = vpop.xlane.xlu0 %1404
      %1406 = vmax.xlane.f32.xlu0 %v1381
      %v1407 = vpop.xlane.xlu0 %1406
      %1408 = vmax.xlane.f32.xlu0 %v1382
      %v1409 = vpop.xlane.xlu0 %1408
      %1410 = vmax.xlane.f32.xlu0 %v1383
      %v1411 = vpop.xlane.xlu0 %1410
      %1412 = vmax.xlane.f32.xlu0 %v1384
      %v1413 = vpop.xlane.xlu0 %1412
      %1414 = vmax.xlane.f32.xlu0 %v1385
      %v1415 = vpop.xlane.xlu0 %1414
      %1416 = vmax.xlane.f32.xlu0 %v1386
      %v1417 = vpop.xlane.xlu0 %1416
      %1418 = vmax.xlane.f32.xlu0 %v1387
      %v1419 = vpop.xlane.xlu0 %1418
      %v1420 = vlaneseq
      %v1421 = vshrl.u32 %v1420, 7
      %v1422 = vsub.s32 6, %v1421
      %v1423 = vrot.slane %v691, %v1422
      %v1424 = vadd.f32 %v674, %v1423
      %v1425 = vadd.f32 %v675, %v1423
      %v1426 = vadd.f32 %v676, %v1423
      %v1427 = vadd.f32 %v677, %v1423
      %v1428 = vadd.f32 %v678, %v1423
      %v1429 = vadd.f32 %v679, %v1423
      %v1430 = vadd.f32 %v680, %v1423
      %v1431 = vadd.f32 %v681, %v1423
      %v1432 = vadd.f32 %v682, %v1423
      %v1433 = vadd.f32 %v683, %v1423
      %v1434 = vadd.f32 %v684, %v1423
      %v1435 = vadd.f32 %v685, %v1423
      %v1436 = vadd.f32 %v686, %v1423
      %v1437 = vadd.f32 %v687, %v1423
      %v1438 = vadd.f32 %v688, %v1423
      %v1439 = vadd.f32 %v689, %v1423
      %1440 = vmax.xlane.f32.xlu0 %v1424
      %v1441 = vpop.xlane.xlu0 %1440
      %1442 = vmax.xlane.f32.xlu0 %v1425
      %v1443 = vpop.xlane.xlu0 %1442
      %1444 = vmax.xlane.f32.xlu0 %v1426
      %v1445 = vpop.xlane.xlu0 %1444
      %1446 = vmax.xlane.f32.xlu0 %v1427
      %v1447 = vpop.xlane.xlu0 %1446
      %1448 = vmax.xlane.f32.xlu0 %v1428
      %v1449 = vpop.xlane.xlu0 %1448
      %1450 = vmax.xlane.f32.xlu0 %v1429
      %v1451 = vpop.xlane.xlu0 %1450
      %1452 = vmax.xlane.f32.xlu0 %v1430
      %v1453 = vpop.xlane.xlu0 %1452
      %1454 = vmax.xlane.f32.xlu0 %v1431
      %v1455 = vpop.xlane.xlu0 %1454
      %1456 = vmax.xlane.f32.xlu0 %v1432
      %v1457 = vpop.xlane.xlu0 %1456
      %1458 = vmax.xlane.f32.xlu0 %v1433
      %v1459 = vpop.xlane.xlu0 %1458
      %1460 = vmax.xlane.f32.xlu0 %v1434
      %v1461 = vpop.xlane.xlu0 %1460
      %1462 = vmax.xlane.f32.xlu0 %v1435
      %v1463 = vpop.xlane.xlu0 %1462
      %1464 = vmax.xlane.f32.xlu0 %v1436
      %v1465 = vpop.xlane.xlu0 %1464
      %1466 = vmax.xlane.f32.xlu0 %v1437
      %v1467 = vpop.xlane.xlu0 %1466
      %1468 = vmax.xlane.f32.xlu0 %v1438
      %v1469 = vpop.xlane.xlu0 %1468
      %1470 = vmax.xlane.f32.xlu0 %v1439
      %v1471 = vpop.xlane.xlu0 %1470
      %v1472 = vlaneseq
      %v1473 = vshrl.u32 %v1472, 7
      %v1474 = vsub.s32 7, %v1473
      %v1475 = vrot.slane %v691, %v1474
      %v1476 = vadd.f32 %v674, %v1475
      %v1477 = vadd.f32 %v675, %v1475
      %v1478 = vadd.f32 %v676, %v1475
      %v1479 = vadd.f32 %v677, %v1475
      %v1480 = vadd.f32 %v678, %v1475
      %v1481 = vadd.f32 %v679, %v1475
      %v1482 = vadd.f32 %v680, %v1475
      %v1483 = vadd.f32 %v681, %v1475
      %v1484 = vadd.f32 %v682, %v1475
      %v1485 = vadd.f32 %v683, %v1475
      %v1486 = vadd.f32 %v684, %v1475
      %v1487 = vadd.f32 %v685, %v1475
      %v1488 = vadd.f32 %v686, %v1475
      %v1489 = vadd.f32 %v687, %v1475
      %v1490 = vadd.f32 %v688, %v1475
      %v1491 = vadd.f32 %v689, %v1475
      %1492 = vmax.xlane.f32.xlu0 %v1476
      %v1493 = vpop.xlane.xlu0 %1492
      %1494 = vmax.xlane.f32.xlu0 %v1477
      %v1495 = vpop.xlane.xlu0 %1494
      %1496 = vmax.xlane.f32.xlu0 %v1478
      %v1497 = vpop.xlane.xlu0 %1496
      %1498 = vmax.xlane.f32.xlu0 %v1479
      %v1499 = vpop.xlane.xlu0 %1498
      %1500 = vmax.xlane.f32.xlu0 %v1480
      %v1501 = vpop.xlane.xlu0 %1500
      %1502 = vmax.xlane.f32.xlu0 %v1481
      %v1503 = vpop.xlane.xlu0 %1502
      %1504 = vmax.xlane.f32.xlu0 %v1482
      %v1505 = vpop.xlane.xlu0 %1504
      %1506 = vmax.xlane.f32.xlu0 %v1483
      %v1507 = vpop.xlane.xlu0 %1506
      %1508 = vmax.xlane.f32.xlu0 %v1484
      %v1509 = vpop.xlane.xlu0 %1508
      %1510 = vmax.xlane.f32.xlu0 %v1485
      %v1511 = vpop.xlane.xlu0 %1510
      %1512 = vmax.xlane.f32.xlu0 %v1486
      %v1513 = vpop.xlane.xlu0 %1512
      %1514 = vmax.xlane.f32.xlu0 %v1487
      %v1515 = vpop.xlane.xlu0 %1514
      %1516 = vmax.xlane.f32.xlu0 %v1488
      %v1517 = vpop.xlane.xlu0 %1516
      %1518 = vmax.xlane.f32.xlu0 %v1489
      %v1519 = vpop.xlane.xlu0 %1518
      %1520 = vmax.xlane.f32.xlu0 %v1490
      %v1521 = vpop.xlane.xlu0 %1520
      %1522 = vmax.xlane.f32.xlu0 %v1491
      %v1523 = vpop.xlane.xlu0 %1522
      %v1524 = vsel %vm657, %v713, %v765
      %v1525 = vsel %vm657, %v715, %v767
      %v1526 = vsel %vm657, %v717, %v769
      %v1527 = vsel %vm657, %v719, %v771
      %v1528 = vsel %vm657, %v721, %v773
      %v1529 = vsel %vm657, %v723, %v775
      %v1530 = vsel %vm657, %v725, %v777
      %v1531 = vsel %vm657, %v727, %v779
      %v1532 = vsel %vm657, %v729, %v781
      %v1533 = vsel %vm657, %v731, %v783
      %v1534 = vsel %vm657, %v733, %v785
      %v1535 = vsel %vm657, %v735, %v787
      %v1536 = vsel %vm657, %v737, %v789
      %v1537 = vsel %vm657, %v739, %v791
      %v1538 = vsel %vm657, %v741, %v793
      %v1539 = vsel %vm657, %v743, %v795
      %vm1540 = vcmask 15360
      %v1541 = vsel %vm1540, %v1524, %v817
      %v1542 = vsel %vm1540, %v1525, %v819
      %v1543 = vsel %vm1540, %v1526, %v821
      %v1544 = vsel %vm1540, %v1527, %v823
      %v1545 = vsel %vm1540, %v1528, %v825
      %v1546 = vsel %vm1540, %v1529, %v827
      %v1547 = vsel %vm1540, %v1530, %v829
      %v1548 = vsel %vm1540, %v1531, %v831
      %v1549 = vsel %vm1540, %v1532, %v833
      %v1550 = vsel %vm1540, %v1533, %v835
      %v1551 = vsel %vm1540, %v1534, %v837
      %v1552 = vsel %vm1540, %v1535, %v839
      %v1553 = vsel %vm1540, %v1536, %v841
      %v1554 = vsel %vm1540, %v1537, %v843
      %v1555 = vsel %vm1540, %v1538, %v845
      %v1556 = vsel %vm1540, %v1539, %v847
      %vm1557 = vcmask 23552
      %v1558 = vsel %vm1557, %v1541, %v869
      %v1559 = vsel %vm1557, %v1542, %v871
      %v1560 = vsel %vm1557, %v1543, %v873
      %v1561 = vsel %vm1557, %v1544, %v875
      %v1562 = vsel %vm1557, %v1545, %v877
      %v1563 = vsel %vm1557, %v1546, %v879
      %v1564 = vsel %vm1557, %v1547, %v881
      %v1565 = vsel %vm1557, %v1548, %v883
      %v1566 = vsel %vm1557, %v1549, %v885
      %v1567 = vsel %vm1557, %v1550, %v887
      %v1568 = vsel %vm1557, %v1551, %v889
      %v1569 = vsel %vm1557, %v1552, %v891
      %v1570 = vsel %vm1557, %v1553, %v893
      %v1571 = vsel %vm1557, %v1554, %v895
      %v1572 = vsel %vm1557, %v1555, %v897
      %v1573 = vsel %vm1557, %v1556, %v899
      %vm1574 = vcmask 31744
      %v1575 = vsel %vm1574, %v1558, %v921
      %v1576 = vsel %vm1574, %v1559, %v923
      %v1577 = vsel %vm1574, %v1560, %v925
      %v1578 = vsel %vm1574, %v1561, %v927
      %v1579 = vsel %vm1574, %v1562, %v929
      %v1580 = vsel %vm1574, %v1563, %v931
      %v1581 = vsel %vm1574, %v1564, %v933
      %v1582 = vsel %vm1574, %v1565, %v935
      %v1583 = vsel %vm1574, %v1566, %v937
      %v1584 = vsel %vm1574, %v1567, %v939
      %v1585 = vsel %vm1574, %v1568, %v941
      %v1586 = vsel %vm1574, %v1569, %v943
      %v1587 = vsel %vm1574, %v1570, %v945
      %v1588 = vsel %vm1574, %v1571, %v947
      %v1589 = vsel %vm1574, %v1572, %v949
      %v1590 = vsel %vm1574, %v1573, %v951
      %vm1591 = vcmask 39936
      %v1592 = vsel %vm1591, %v1575, %v973
      %v1593 = vsel %vm1591, %v1576, %v975
      %v1594 = vsel %vm1591, %v1577, %v977
      %v1595 = vsel %vm1591, %v1578, %v979
      %v1596 = vsel %vm1591, %v1579, %v981
      %v1597 = vsel %vm1591, %v1580, %v983
      %v1598 = vsel %vm1591, %v1581, %v985
      %v1599 = vsel %vm1591, %v1582, %v987
      %v1600 = vsel %vm1591, %v1583, %v989
      %v1601 = vsel %vm1591, %v1584, %v991
      %v1602 = vsel %vm1591, %v1585, %v993
      %v1603 = vsel %vm1591, %v1586, %v995
      %v1604 = vsel %vm1591, %v1587, %v997
      %v1605 = vsel %vm1591, %v1588, %v999
      %v1606 = vsel %vm1591, %v1589, %v1001
      %v1607 = vsel %vm1591, %v1590, %v1003
      %vm1608 = vcmask 48128
      %v1609 = vsel %vm1608, %v1592, %v1025
      %v1610 = vsel %vm1608, %v1593, %v1027
      %v1611 = vsel %vm1608, %v1594, %v1029
      %v1612 = vsel %vm1608, %v1595, %v1031
      %v1613 = vsel %vm1608, %v1596, %v1033
      %v1614 = vsel %vm1608, %v1597, %v1035
      %v1615 = vsel %vm1608, %v1598, %v1037
      %v1616 = vsel %vm1608, %v1599, %v1039
      %v1617 = vsel %vm1608, %v1600, %v1041
      %v1618 = vsel %vm1608, %v1601, %v1043
      %v1619 = vsel %vm1608, %v1602, %v1045
      %v1620 = vsel %vm1608, %v1603, %v1047
      %v1621 = vsel %vm1608, %v1604, %v1049
      %v1622 = vsel %vm1608, %v1605, %v1051
      %v1623 = vsel %vm1608, %v1606, %v1053
      %v1624 = vsel %vm1608, %v1607, %v1055
      %vm1625 = vcmask 56320
      %v1626 = vsel %vm1625, %v1609, %v1077
      %v1627 = vsel %vm1625, %v1610, %v1079
      %v1628 = vsel %vm1625, %v1611, %v1081
      %v1629 = vsel %vm1625, %v1612, %v1083
      %v1630 = vsel %vm1625, %v1613, %v1085
      %v1631 = vsel %vm1625, %v1614, %v1087
      %v1632 = vsel %vm1625, %v1615, %v1089
      %v1633 = vsel %vm1625, %v1616, %v1091
      %v1634 = vsel %vm1625, %v1617, %v1093
      %v1635 = vsel %vm1625, %v1618, %v1095
      %v1636 = vsel %vm1625, %v1619, %v1097
      %v1637 = vsel %vm1625, %v1620, %v1099
      %v1638 = vsel %vm1625, %v1621, %v1101
      %v1639 = vsel %vm1625, %v1622, %v1103
      %v1640 = vsel %vm1625, %v1623, %v1105
      %v1641 = vsel %vm1625, %v1624, %v1107
      %vm1642 = vcmask 64512
      %v1643 = vsel %vm1642, %v1626, %v1129
      %v1644 = vsel %vm1642, %v1627, %v1131
      %v1645 = vsel %vm1642, %v1628, %v1133
      %v1646 = vsel %vm1642, %v1629, %v1135
      %v1647 = vsel %vm1642, %v1630, %v1137
      %v1648 = vsel %vm1642, %v1631, %v1139
      %v1649 = vsel %vm1642, %v1632, %v1141
      %v1650 = vsel %vm1642, %v1633, %v1143
      %v1651 = vsel %vm1642, %v1634, %v1145
      %v1652 = vsel %vm1642, %v1635, %v1147
      %v1653 = vsel %vm1642, %v1636, %v1149
      %v1654 = vsel %vm1642, %v1637, %v1151
      %v1655 = vsel %vm1642, %v1638, %v1153
      %v1656 = vsel %vm1642, %v1639, %v1155
      %v1657 = vsel %vm1642, %v1640, %v1157
      %v1658 = vsel %vm1642, %v1641, %v1159
      %vm1659 = vcmask 72704
      %v1660 = vsel %vm1659, %v1643, %v1181
      %v1661 = vsel %vm1659, %v1644, %v1183
      %v1662 = vsel %vm1659, %v1645, %v1185
      %v1663 = vsel %vm1659, %v1646, %v1187
      %v1664 = vsel %vm1659, %v1647, %v1189
      %v1665 = vsel %vm1659, %v1648, %v1191
      %v1666 = vsel %vm1659, %v1649, %v1193
      %v1667 = vsel %vm1659, %v1650, %v1195
      %v1668 = vsel %vm1659, %v1651, %v1197
      %v1669 = vsel %vm1659, %v1652, %v1199
      %v1670 = vsel %vm1659, %v1653, %v1201
      %v1671 = vsel %vm1659, %v1654, %v1203
      %v1672 = vsel %vm1659, %v1655, %v1205
      %v1673 = vsel %vm1659, %v1656, %v1207
      %v1674 = vsel %vm1659, %v1657, %v1209
      %v1675 = vsel %vm1659, %v1658, %v1211
      %vm1676 = vcmask 80896
      %v1677 = vsel %vm1676, %v1660, %v1233
      %v1678 = vsel %vm1676, %v1661, %v1235
      %v1679 = vsel %vm1676, %v1662, %v1237
      %v1680 = vsel %vm1676, %v1663, %v1239
      %v1681 = vsel %vm1676, %v1664, %v1241
      %v1682 = vsel %vm1676, %v1665, %v1243
      %v1683 = vsel %vm1676, %v1666, %v1245
      %v1684 = vsel %vm1676, %v1667, %v1247
      %v1685 = vsel %vm1676, %v1668, %v1249
      %v1686 = vsel %vm1676, %v1669, %v1251
      %v1687 = vsel %vm1676, %v1670, %v1253
      %v1688 = vsel %vm1676, %v1671, %v1255
      %v1689 = vsel %vm1676, %v1672, %v1257
      %v1690 = vsel %vm1676, %v1673, %v1259
      %v1691 = vsel %vm1676, %v1674, %v1261
      %v1692 = vsel %vm1676, %v1675, %v1263
      %vm1693 = vcmask 89088
      %v1694 = vsel %vm1693, %v1677, %v1285
      %v1695 = vsel %vm1693, %v1678, %v1287
      %v1696 = vsel %vm1693, %v1679, %v1289
      %v1697 = vsel %vm1693, %v1680, %v1291
      %v1698 = vsel %vm1693, %v1681, %v1293
      %v1699 = vsel %vm1693, %v1682, %v1295
      %v1700 = vsel %vm1693, %v1683, %v1297
      %v1701 = vsel %vm1693, %v1684, %v1299
      %v1702 = vsel %vm1693, %v1685, %v1301
      %v1703 = vsel %vm1693, %v1686, %v1303
      %v1704 = vsel %vm1693, %v1687, %v1305
      %v1705 = vsel %vm1693, %v1688, %v1307
      %v1706 = vsel %vm1693, %v1689, %v1309
      %v1707 = vsel %vm1693, %v1690, %v1311
      %v1708 = vsel %vm1693, %v1691, %v1313
      %v1709 = vsel %vm1693, %v1692, %v1315
      %vm1710 = vcmask 97280
      %v1711 = vsel %vm1710, %v1694, %v1337
      %v1712 = vsel %vm1710, %v1695, %v1339
      %v1713 = vsel %vm1710, %v1696, %v1341
      %v1714 = vsel %vm1710, %v1697, %v1343
      %v1715 = vsel %vm1710, %v1698, %v1345
      %v1716 = vsel %vm1710, %v1699, %v1347
      %v1717 = vsel %vm1710, %v1700, %v1349
      %v1718 = vsel %vm1710, %v1701, %v1351
      %v1719 = vsel %vm1710, %v1702, %v1353
      %v1720 = vsel %vm1710, %v1703, %v1355
      %v1721 = vsel %vm1710, %v1704, %v1357
      %v1722 = vsel %vm1710, %v1705, %v1359
      %v1723 = vsel %vm1710, %v1706, %v1361
      %v1724 = vsel %vm1710, %v1707, %v1363
      %v1725 = vsel %vm1710, %v1708, %v1365
      %v1726 = vsel %vm1710, %v1709, %v1367
      %vm1727 = vcmask 105472
      %v1728 = vsel %vm1727, %v1711, %v1389
      %v1729 = vsel %vm1727, %v1712, %v1391
      %v1730 = vsel %vm1727, %v1713, %v1393
      %v1731 = vsel %vm1727, %v1714, %v1395
      %v1732 = vsel %vm1727, %v1715, %v1397
      %v1733 = vsel %vm1727, %v1716, %v1399
      %v1734 = vsel %vm1727, %v1717, %v1401
      %v1735 = vsel %vm1727, %v1718, %v1403
      %v1736 = vsel %vm1727, %v1719, %v1405
      %v1737 = vsel %vm1727, %v1720, %v1407
      %v1738 = vsel %vm1727, %v1721, %v1409
      %v1739 = vsel %vm1727, %v1722, %v1411
      %v1740 = vsel %vm1727, %v1723, %v1413
      %v1741 = vsel %vm1727, %v1724, %v1415
      %v1742 = vsel %vm1727, %v1725, %v1417
      %v1743 = vsel %vm1727, %v1726, %v1419
      %vm1744 = vcmask 113664
      %v1745 = vsel %vm1744, %v1728, %v1441
      %v1746 = vsel %vm1744, %v1729, %v1443
      %v1747 = vsel %vm1744, %v1730, %v1445
      %v1748 = vsel %vm1744, %v1731, %v1447
      %v1749 = vsel %vm1744, %v1732, %v1449
      %v1750 = vsel %vm1744, %v1733, %v1451
      %v1751 = vsel %vm1744, %v1734, %v1453
      %v1752 = vsel %vm1744, %v1735, %v1455
      %v1753 = vsel %vm1744, %v1736, %v1457
      %v1754 = vsel %vm1744, %v1737, %v1459
      %v1755 = vsel %vm1744, %v1738, %v1461
      %v1756 = vsel %vm1744, %v1739, %v1463
      %v1757 = vsel %vm1744, %v1740, %v1465
      %v1758 = vsel %vm1744, %v1741, %v1467
      %v1759 = vsel %vm1744, %v1742, %v1469
      %v1760 = vsel %vm1744, %v1743, %v1471
      %vm1761 = vcmask 121856
      %v1762 = vsel %vm1761, %v1745, %v1493
      %v1763 = vsel %vm1761, %v1746, %v1495
      %v1764 = vsel %vm1761, %v1747, %v1497
      %v1765 = vsel %vm1761, %v1748, %v1499
      %v1766 = vsel %vm1761, %v1749, %v1501
      %v1767 = vsel %vm1761, %v1750, %v1503
      %v1768 = vsel %vm1761, %v1751, %v1505
      %v1769 = vsel %vm1761, %v1752, %v1507
      %v1770 = vsel %vm1761, %v1753, %v1509
      %v1771 = vsel %vm1761, %v1754, %v1511
      %v1772 = vsel %vm1761, %v1755, %v1513
      %v1773 = vsel %vm1761, %v1756, %v1515
      %v1774 = vsel %vm1761, %v1757, %v1517
      %v1775 = vsel %vm1761, %v1758, %v1519
      %v1776 = vsel %vm1761, %v1759, %v1521
      %v1777 = vsel %vm1761, %v1760, %v1523
      %v1778 = vld [vmem:[#allocation4] sm:$0xff]
      %v1779 = vld [vmem:[#allocation4 + $0x8] sm:$0xff]
      %v1780 = vld [vmem:[#allocation4 + $0x10] sm:$0xff]
      %v1781 = vld [vmem:[#allocation4 + $0x18] sm:$0xff]
      %v1782 = vld [vmem:[#allocation4 + $0x20] sm:$0xff]
      %v1783 = vld [vmem:[#allocation4 + $0x28] sm:$0xff]
      %v1784 = vld [vmem:[#allocation4 + $0x30] sm:$0xff]
      %v1785 = vld [vmem:[#allocation4 + $0x38] sm:$0xff]
      %v1786 = vld [vmem:[#allocation4 + $0x40] sm:$0xff]
      %v1787 = vld [vmem:[#allocation4 + $0x48] sm:$0xff]
      %v1788 = vld [vmem:[#allocation4 + $0x50] sm:$0xff]
      %v1789 = vld [vmem:[#allocation4 + $0x58] sm:$0xff]
      %v1790 = vld [vmem:[#allocation4 + $0x60] sm:$0xff]
      %v1791 = vld [vmem:[#allocation4 + $0x68] sm:$0xff]
      %v1792 = vld [vmem:[#allocation4 + $0x70] sm:$0xff]
      %v1793 = vld [vmem:[#allocation4 + $0x78] sm:$0xff]
      %v1794 = vmax.f32 %v1778, %v1762
      %v1795 = vmax.f32 %v1779, %v1763
      %v1796 = vmax.f32 %v1780, %v1764
      %v1797 = vmax.f32 %v1781, %v1765
      %v1798 = vmax.f32 %v1782, %v1766
      %v1799 = vmax.f32 %v1783, %v1767
      %v1800 = vmax.f32 %v1784, %v1768
      %v1801 = vmax.f32 %v1785, %v1769
      %v1802 = vmax.f32 %v1786, %v1770
      %v1803 = vmax.f32 %v1787, %v1771
      %v1804 = vmax.f32 %v1788, %v1772
      %v1805 = vmax.f32 %v1789, %v1773
      %v1806 = vmax.f32 %v1790, %v1774
      %v1807 = vmax.f32 %v1791, %v1775
      %v1808 = vmax.f32 %v1792, %v1776
      %v1809 = vmax.f32 %v1793, %v1777
      %1810 = vst.msk [vmem:[#allocation4] sm:$0xff] %vm576, %v1794
      %1811 = vst.msk [vmem:[#allocation4 + $0x8] sm:$0xff] %vm576, %v1795
      %1812 = vst.msk [vmem:[#allocation4 + $0x10] sm:$0xff] %vm576, %v1796
      %1813 = vst.msk [vmem:[#allocation4 + $0x18] sm:$0xff] %vm576, %v1797
      %1814 = vst.msk [vmem:[#allocation4 + $0x20] sm:$0xff] %vm576, %v1798
      %1815 = vst.msk [vmem:[#allocation4 + $0x28] sm:$0xff] %vm576, %v1799
      %1816 = vst.msk [vmem:[#allocation4 + $0x30] sm:$0xff] %vm576, %v1800
      %1817 = vst.msk [vmem:[#allocation4 + $0x38] sm:$0xff] %vm576, %v1801
      %1818 = vst.msk [vmem:[#allocation4 + $0x40] sm:$0xff] %vm576, %v1802
      %1819 = vst.msk [vmem:[#allocation4 + $0x48] sm:$0xff] %vm576, %v1803
      %1820 = vst.msk [vmem:[#allocation4 + $0x50] sm:$0xff] %vm576, %v1804
      %1821 = vst.msk [vmem:[#allocation4 + $0x58] sm:$0xff] %vm576, %v1805
      %1822 = vst.msk [vmem:[#allocation4 + $0x60] sm:$0xff] %vm576, %v1806
      %1823 = vst.msk [vmem:[#allocation4 + $0x68] sm:$0xff] %vm576, %v1807
      %1824 = vst.msk [vmem:[#allocation4 + $0x70] sm:$0xff] %vm576, %v1808
      %1825 = vst.msk [vmem:[#allocation4 + $0x78] sm:$0xff] %vm576, %v1809
    $region57: #{tpu_custom_call.1} parent=1 // pred_fallthru
      _
    // Predicated region
    $region58: #{tpu_custom_call.1} parent=1 // pred_check
      %p1826 = pneg %p237
    $region59: #{tpu_custom_call.1} parent=1 // pred_check_branch
      %1828 = sbr.rel (%p1826) target = $region61
    $region60: #{tpu_custom_call.1} parent=1 // pred_region
      %v1829 = vld [vmem:[#allocation3] sm:$0xff]
      %v1830 = vld [vmem:[#allocation3 + $0x8] sm:$0xff]
      %v1831 = vld [vmem:[#allocation3 + $0x10] sm:$0xff]
      %v1832 = vld [vmem:[#allocation3 + $0x18] sm:$0xff]
      %v1833 = vld [vmem:[#allocation3 + $0x20] sm:$0xff]
      %v1834 = vld [vmem:[#allocation3 + $0x28] sm:$0xff]
      %v1835 = vld [vmem:[#allocation3 + $0x30] sm:$0xff]
      %v1836 = vld [vmem:[#allocation3 + $0x38] sm:$0xff]
      %v1837 = vld [vmem:[#allocation3 + $0x40] sm:$0xff]
      %v1838 = vld [vmem:[#allocation3 + $0x48] sm:$0xff]
      %v1839 = vld [vmem:[#allocation3 + $0x50] sm:$0xff]
      %v1840 = vld [vmem:[#allocation3 + $0x58] sm:$0xff]
      %v1841 = vld [vmem:[#allocation3 + $0x60] sm:$0xff]
      %v1842 = vld [vmem:[#allocation3 + $0x68] sm:$0xff]
      %v1843 = vld [vmem:[#allocation3 + $0x70] sm:$0xff]
      %v1844 = vld [vmem:[#allocation3 + $0x78] sm:$0xff]
      %v1845 = vld [vmem:[#allocation2] sm:$0xff]
      %v1846 = vld [vmem:[#allocation2 + $0x8] sm:$0xff]
      %v1847 = vld [vmem:[#allocation2 + $0x10] sm:$0xff]
      %v1848 = vld [vmem:[#allocation2 + $0x18] sm:$0xff]
      %v1849 = vld [vmem:[#allocation2 + $0x20] sm:$0xff]
      %v1850 = vld [vmem:[#allocation2 + $0x28] sm:$0xff]
      %v1851 = vld [vmem:[#allocation2 + $0x30] sm:$0xff]
      %v1852 = vld [vmem:[#allocation2 + $0x38] sm:$0xff]
      %v1853 = vld [vmem:[#allocation2 + $0x40] sm:$0xff]
      %v1854 = vld [vmem:[#allocation2 + $0x48] sm:$0xff]
      %v1855 = vld [vmem:[#allocation2 + $0x50] sm:$0xff]
      %v1856 = vld [vmem:[#allocation2 + $0x58] sm:$0xff]
      %v1857 = vld [vmem:[#allocation2 + $0x60] sm:$0xff]
      %v1858 = vld [vmem:[#allocation2 + $0x68] sm:$0xff]
      %v1859 = vld [vmem:[#allocation2 + $0x70] sm:$0xff]
      %v1860 = vld [vmem:[#allocation2 + $0x78] sm:$0xff]
      %v1861 = vmax.f32 %v1829, 1.0
      %v1862 = vmax.f32 %v1830, 1.0
      %v1863 = vmax.f32 %v1831, 1.0
      %v1864 = vmax.f32 %v1832, 1.0
      %v1865 = vmax.f32 %v1833, 1.0
      %v1866 = vmax.f32 %v1834, 1.0
      %v1867 = vmax.f32 %v1835, 1.0
      %v1868 = vmax.f32 %v1836, 1.0
      %v1869 = vmax.f32 %v1837, 1.0
      %v1870 = vmax.f32 %v1838, 1.0
      %v1871 = vmax.f32 %v1839, 1.0
      %v1872 = vmax.f32 %v1840, 1.0
      %v1873 = vmax.f32 %v1841, 1.0
      %v1874 = vmax.f32 %v1842, 1.0
      %v1875 = vmax.f32 %v1843, 1.0
      %v1876 = vmax.f32 %v1844, 1.0
      %v1877 = vrcp.pop %v1861
      %v1878 = vmul.f32 1.0, %v1877
      %v1879 = vrcp.pop %v1862
      %v1880 = vmul.f32 1.0, %v1879
      %v1881 = vrcp.pop %v1863
      %v1882 = vmul.f32 1.0, %v1881
      %v1883 = vrcp.pop %v1864
      %v1884 = vmul.f32 1.0, %v1883
      %v1885 = vrcp.pop %v1865
      %v1886 = vmul.f32 1.0, %v1885
      %v1887 = vrcp.pop %v1866
      %v1888 = vmul.f32 1.0, %v1887
      %v1889 = vrcp.pop %v1867
      %v1890 = vmul.f32 1.0, %v1889
      %v1891 = vrcp.pop %v1868
      %v1892 = vmul.f32 1.0, %v1891
      %v1893 = vrcp.pop %v1869
      %v1894 = vmul.f32 1.0, %v1893
      %v1895 = vrcp.pop %v1870
      %v1896 = vmul.f32 1.0, %v1895
      %v1897 = vrcp.pop %v1871
      %v1898 = vmul.f32 1.0, %v1897
      %v1899 = vrcp.pop %v1872
      %v1900 = vmul.f32 1.0, %v1899
      %v1901 = vrcp.pop %v1873
      %v1902 = vmul.f32 1.0, %v1901
      %v1903 = vrcp.pop %v1874
      %v1904 = vmul.f32 1.0, %v1903
      %v1905 = vrcp.pop %v1875
      %v1906 = vmul.f32 1.0, %v1905
      %v1907 = vrcp.pop %v1876
      %v1908 = vmul.f32 1.0, %v1907
      %1910 = vset.pattern.permute.xlu0 0
      %1911 = vperm.xlu0 %1910, %v1878
      %v1912 = vpop.permute.xlu0 %1911
      %1915 = vset.pattern.permute.xlu0 0
      %1916 = vperm.xlu0 %1915, %v1880
      %v1917 = vpop.permute.xlu0 %1916
      %1920 = vset.pattern.permute.xlu0 0
      %1921 = vperm.xlu0 %1920, %v1882
      %v1922 = vpop.permute.xlu0 %1921
      %1925 = vset.pattern.permute.xlu0 0
      %1926 = vperm.xlu0 %1925, %v1884
      %v1927 = vpop.permute.xlu0 %1926
      %1930 = vset.pattern.permute.xlu0 0
      %1931 = vperm.xlu0 %1930, %v1886
      %v1932 = vpop.permute.xlu0 %1931
      %1935 = vset.pattern.permute.xlu0 0
      %1936 = vperm.xlu0 %1935, %v1888
      %v1937 = vpop.permute.xlu0 %1936
      %1940 = vset.pattern.permute.xlu0 0
      %1941 = vperm.xlu0 %1940, %v1890
      %v1942 = vpop.permute.xlu0 %1941
      %1945 = vset.pattern.permute.xlu0 0
      %1946 = vperm.xlu0 %1945, %v1892
      %v1947 = vpop.permute.xlu0 %1946
      %1950 = vset.pattern.permute.xlu0 0
      %1951 = vperm.xlu0 %1950, %v1894
      %v1952 = vpop.permute.xlu0 %1951
      %1955 = vset.pattern.permute.xlu0 0
      %1956 = vperm.xlu0 %1955, %v1896
      %v1957 = vpop.permute.xlu0 %1956
      %1960 = vset.pattern.permute.xlu0 0
      %1961 = vperm.xlu0 %1960, %v1898
      %v1962 = vpop.permute.xlu0 %1961
      %1965 = vset.pattern.permute.xlu0 0
      %1966 = vperm.xlu0 %1965, %v1900
      %v1967 = vpop.permute.xlu0 %1966
      %1970 = vset.pattern.permute.xlu0 0
      %1971 = vperm.xlu0 %1970, %v1902
      %v1972 = vpop.permute.xlu0 %1971
      %1975 = vset.pattern.permute.xlu0 0
      %1976 = vperm.xlu0 %1975, %v1904
      %v1977 = vpop.permute.xlu0 %1976
      %1980 = vset.pattern.permute.xlu0 0
      %1981 = vperm.xlu0 %1980, %v1906
      %v1982 = vpop.permute.xlu0 %1981
      %1985 = vset.pattern.permute.xlu0 0
      %1986 = vperm.xlu0 %1985, %v1908
      %v1987 = vpop.permute.xlu0 %1986
      %v1989 = vmul.f32 %v1845, %v1912
      %v1990 = vmul.f32 %v1846, %v1917
      %v1991 = vmul.f32 %v1847, %v1922
      %v1992 = vmul.f32 %v1848, %v1927
      %v1993 = vmul.f32 %v1849, %v1932
      %v1994 = vmul.f32 %v1850, %v1937
      %v1995 = vmul.f32 %v1851, %v1942
      %v1996 = vmul.f32 %v1852, %v1947
      %v1997 = vmul.f32 %v1853, %v1952
      %v1998 = vmul.f32 %v1854, %v1957
      %v1999 = vmul.f32 %v1855, %v1962
      %v2000 = vmul.f32 %v1856, %v1967
      %v2001 = vmul.f32 %v1857, %v1972
      %v2002 = vmul.f32 %v1858, %v1977
      %v2003 = vmul.f32 %v1859, %v1982
      %v2004 = vmul.f32 %v1860, %v1987
      %vm2005 = vcmp.gt.f32.partialorder %v1829, 0.0
      %vm2006 = vcmp.gt.f32.partialorder %v1830, 0.0
      %vm2007 = vcmp.gt.f32.partialorder %v1831, 0.0
      %vm2008 = vcmp.gt.f32.partialorder %v1832, 0.0
      %vm2009 = vcmp.gt.f32.partialorder %v1833, 0.0
      %vm2010 = vcmp.gt.f32.partialorder %v1834, 0.0
      %vm2011 = vcmp.gt.f32.partialorder %v1835, 0.0
      %vm2012 = vcmp.gt.f32.partialorder %v1836, 0.0
      %vm2013 = vcmp.gt.f32.partialorder %v1837, 0.0
      %vm2014 = vcmp.gt.f32.partialorder %v1838, 0.0
      %vm2015 = vcmp.gt.f32.partialorder %v1839, 0.0
      %vm2016 = vcmp.gt.f32.partialorder %v1840, 0.0
      %vm2017 = vcmp.gt.f32.partialorder %v1841, 0.0
      %vm2018 = vcmp.gt.f32.partialorder %v1842, 0.0
      %vm2019 = vcmp.gt.f32.partialorder %v1843, 0.0
      %vm2020 = vcmp.gt.f32.partialorder %v1844, 0.0
      %v2021 = vld [vmem:[#allocation4] sm:$0xff]
      %v2022 = vld [vmem:[#allocation4 + $0x8] sm:$0xff]
      %v2023 = vld [vmem:[#allocation4 + $0x10] sm:$0xff]
      %v2024 = vld [vmem:[#allocation4 + $0x18] sm:$0xff]
      %v2025 = vld [vmem:[#allocation4 + $0x20] sm:$0xff]
      %v2026 = vld [vmem:[#allocation4 + $0x28] sm:$0xff]
      %v2027 = vld [vmem:[#allocation4 + $0x30] sm:$0xff]
      %v2028 = vld [vmem:[#allocation4 + $0x38] sm:$0xff]
      %v2029 = vld [vmem:[#allocation4 + $0x40] sm:$0xff]
      %v2030 = vld [vmem:[#allocation4 + $0x48] sm:$0xff]
      %v2031 = vld [vmem:[#allocation4 + $0x50] sm:$0xff]
      %v2032 = vld [vmem:[#allocation4 + $0x58] sm:$0xff]
      %v2033 = vld [vmem:[#allocation4 + $0x60] sm:$0xff]
      %v2034 = vld [vmem:[#allocation4 + $0x68] sm:$0xff]
      %v2035 = vld [vmem:[#allocation4 + $0x70] sm:$0xff]
      %v2036 = vld [vmem:[#allocation4 + $0x78] sm:$0xff]
      %v2037 = vsel %vm2005, 1, 0
      %v2038 = vsel %vm2006, 1, 0
      %v2039 = vsel %vm2007, 1, 0
      %v2040 = vsel %vm2008, 1, 0
      %v2041 = vsel %vm2009, 1, 0
      %v2042 = vsel %vm2010, 1, 0
      %v2043 = vsel %vm2011, 1, 0
      %v2044 = vsel %vm2012, 1, 0
      %v2045 = vsel %vm2013, 1, 0
      %v2046 = vsel %vm2014, 1, 0
      %v2047 = vsel %vm2015, 1, 0
      %v2048 = vsel %vm2016, 1, 0
      %v2049 = vsel %vm2017, 1, 0
      %v2050 = vsel %vm2018, 1, 0
      %v2051 = vsel %vm2019, 1, 0
      %v2052 = vsel %vm2020, 1, 0
      %2053 = vset.pattern.permute.xlu0 0
      %2054 = vperm.xlu0 %2053, %v2037
      %v2055 = vpop.permute.xlu0 %2054
      %2056 = vset.pattern.permute.xlu0 0
      %2057 = vperm.xlu0 %2056, %v2038
      %v2058 = vpop.permute.xlu0 %2057
      %2059 = vset.pattern.permute.xlu0 0
      %2060 = vperm.xlu0 %2059, %v2039
      %v2061 = vpop.permute.xlu0 %2060
      %2062 = vset.pattern.permute.xlu0 0
      %2063 = vperm.xlu0 %2062, %v2040
      %v2064 = vpop.permute.xlu0 %2063
      %2065 = vset.pattern.permute.xlu0 0
      %2066 = vperm.xlu0 %2065, %v2041
      %v2067 = vpop.permute.xlu0 %2066
      %2068 = vset.pattern.permute.xlu0 0
      %2069 = vperm.xlu0 %2068, %v2042
      %v2070 = vpop.permute.xlu0 %2069
      %2071 = vset.pattern.permute.xlu0 0
      %2072 = vperm.xlu0 %2071, %v2043
      %v2073 = vpop.permute.xlu0 %2072
      %2074 = vset.pattern.permute.xlu0 0
      %2075 = vperm.xlu0 %2074, %v2044
      %v2076 = vpop.permute.xlu0 %2075
      %2077 = vset.pattern.permute.xlu0 0
      %2078 = vperm.xlu0 %2077, %v2045
      %v2079 = vpop.permute.xlu0 %2078
      %2080 = vset.pattern.permute.xlu0 0
      %2081 = vperm.xlu0 %2080, %v2046
      %v2082 = vpop.permute.xlu0 %2081
      %2083 = vset.pattern.permute.xlu0 0
      %2084 = vperm.xlu0 %2083, %v2047
      %v2085 = vpop.permute.xlu0 %2084
      %2086 = vset.pattern.permute.xlu0 0
      %2087 = vperm.xlu0 %2086, %v2048
      %v2088 = vpop.permute.xlu0 %2087
      %2089 = vset.pattern.permute.xlu0 0
      %2090 = vperm.xlu0 %2089, %v2049
      %v2091 = vpop.permute.xlu0 %2090
      %2092 = vset.pattern.permute.xlu0 0
      %2093 = vperm.xlu0 %2092, %v2050
      %v2094 = vpop.permute.xlu0 %2093
      %2095 = vset.pattern.permute.xlu0 0
      %2096 = vperm.xlu0 %2095, %v2051
      %v2097 = vpop.permute.xlu0 %2096
      %2098 = vset.pattern.permute.xlu0 0
      %2099 = vperm.xlu0 %2098, %v2052
      %v2100 = vpop.permute.xlu0 %2099
      %vm2101 = vcmp.eq.s32.totalorder %v2055, 1
      %vm2102 = vcmp.eq.s32.totalorder %v2058, 1
      %vm2103 = vcmp.eq.s32.totalorder %v2061, 1
      %vm2104 = vcmp.eq.s32.totalorder %v2064, 1
      %vm2105 = vcmp.eq.s32.totalorder %v2067, 1
      %vm2106 = vcmp.eq.s32.totalorder %v2070, 1
      %vm2107 = vcmp.eq.s32.totalorder %v2073, 1
      %vm2108 = vcmp.eq.s32.totalorder %v2076, 1
      %vm2109 = vcmp.eq.s32.totalorder %v2079, 1
      %vm2110 = vcmp.eq.s32.totalorder %v2082, 1
      %vm2111 = vcmp.eq.s32.totalorder %v2085, 1
      %vm2112 = vcmp.eq.s32.totalorder %v2088, 1
      %vm2113 = vcmp.eq.s32.totalorder %v2091, 1
      %vm2114 = vcmp.eq.s32.totalorder %v2094, 1
      %vm2115 = vcmp.eq.s32.totalorder %v2097, 1
      %vm2116 = vcmp.eq.s32.totalorder %v2100, 1
      %v2117 = vsel %vm2101, %v2021, 0.0
      %v2118 = vsel %vm2102, %v2022, 0.0
      %v2119 = vsel %vm2103, %v2023, 0.0
      %v2120 = vsel %vm2104, %v2024, 0.0
      %v2121 = vsel %vm2105, %v2025, 0.0
      %v2122 = vsel %vm2106, %v2026, 0.0
      %v2123 = vsel %vm2107, %v2027, 0.0
      %v2124 = vsel %vm2108, %v2028, 0.0
      %v2125 = vsel %vm2109, %v2029, 0.0
      %v2126 = vsel %vm2110, %v2030, 0.0
      %v2127 = vsel %vm2111, %v2031, 0.0
      %v2128 = vsel %vm2112, %v2032, 0.0
      %v2129 = vsel %vm2113, %v2033, 0.0
      %v2130 = vsel %vm2114, %v2034, 0.0
      %v2131 = vsel %vm2115, %v2035, 0.0
      %v2132 = vsel %vm2116, %v2036, 0.0
      %v2133 = vld [vmem:[%s2] sm:$0xff]
      %v2134 = vld [vmem:[%s2 + $0x8] sm:$0xff]
      %v2135 = vld [vmem:[%s2 + $0x10] sm:$0xff]
      %v2136 = vld [vmem:[%s2 + $0x18] sm:$0xff]
      %v2137 = vld [vmem:[%s2 + $0x20] sm:$0xff]
      %v2138 = vld [vmem:[%s2 + $0x28] sm:$0xff]
      %v2139 = vld [vmem:[%s2 + $0x30] sm:$0xff]
      %v2140 = vld [vmem:[%s2 + $0x38] sm:$0xff]
      %v2141 = vld [vmem:[%s2 + $0x40] sm:$0xff]
      %v2142 = vld [vmem:[%s2 + $0x48] sm:$0xff]
      %v2143 = vld [vmem:[%s2 + $0x50] sm:$0xff]
      %v2144 = vld [vmem:[%s2 + $0x58] sm:$0xff]
      %v2145 = vld [vmem:[%s2 + $0x60] sm:$0xff]
      %v2146 = vld [vmem:[%s2 + $0x68] sm:$0xff]
      %v2147 = vld [vmem:[%s2 + $0x70] sm:$0xff]
      %v2148 = vld [vmem:[%s2 + $0x78] sm:$0xff]
      %2165 = vrot.lane.b32.xlu0 %v2117, 16
      %v2166 = vpop.permute.xlu0 %2165
      %2167 = vrot.lane.b32.xlu0 %v2118, 16
      %v2168 = vpop.permute.xlu0 %2167
      %2169 = vrot.lane.b32.xlu0 %v2119, 16
      %v2170 = vpop.permute.xlu0 %2169
      %2171 = vrot.lane.b32.xlu0 %v2120, 16
      %v2172 = vpop.permute.xlu0 %2171
      %2173 = vrot.lane.b32.xlu0 %v2121, 16
      %v2174 = vpop.permute.xlu0 %2173
      %2175 = vrot.lane.b32.xlu0 %v2122, 16
      %v2176 = vpop.permute.xlu0 %2175
      %2177 = vrot.lane.b32.xlu0 %v2123, 16
      %v2178 = vpop.permute.xlu0 %2177
      %2179 = vrot.lane.b32.xlu0 %v2124, 16
      %v2180 = vpop.permute.xlu0 %2179
      %2181 = vrot.lane.b32.xlu0 %v2125, 16
      %v2182 = vpop.permute.xlu0 %2181
      %2183 = vrot.lane.b32.xlu0 %v2126, 16
      %v2184 = vpop.permute.xlu0 %2183
      %2185 = vrot.lane.b32.xlu0 %v2127, 16
      %v2186 = vpop.permute.xlu0 %2185
      %2187 = vrot.lane.b32.xlu0 %v2128, 16
      %v2188 = vpop.permute.xlu0 %2187
      %2189 = vrot.lane.b32.xlu0 %v2129, 16
      %v2190 = vpop.permute.xlu0 %2189
      %2191 = vrot.lane.b32.xlu0 %v2130, 16
      %v2192 = vpop.permute.xlu0 %2191
      %2193 = vrot.lane.b32.xlu0 %v2131, 16
      %v2194 = vpop.permute.xlu0 %2193
      %2195 = vrot.lane.b32.xlu0 %v2132, 16
      %v2196 = vpop.permute.xlu0 %2195
      %2229 = vrot.lane.b32.xlu0 %v1989, 32
      %v2230 = vpop.permute.xlu0 %2229
      %2231 = vrot.lane.b32.xlu0 %v1990, 32
      %v2232 = vpop.permute.xlu0 %2231
      %2233 = vrot.lane.b32.xlu0 %v1991, 32
      %v2234 = vpop.permute.xlu0 %2233
      %2235 = vrot.lane.b32.xlu0 %v1992, 32
      %v2236 = vpop.permute.xlu0 %2235
      %2237 = vrot.lane.b32.xlu0 %v1993, 32
      %v2238 = vpop.permute.xlu0 %2237
      %2239 = vrot.lane.b32.xlu0 %v1994, 32
      %v2240 = vpop.permute.xlu0 %2239
      %2241 = vrot.lane.b32.xlu0 %v1995, 32
      %v2242 = vpop.permute.xlu0 %2241
      %2243 = vrot.lane.b32.xlu0 %v1996, 32
      %v2244 = vpop.permute.xlu0 %2243
      %2245 = vrot.lane.b32.xlu0 %v1997, 32
      %v2246 = vpop.permute.xlu0 %2245
      %2247 = vrot.lane.b32.xlu0 %v1998, 32
      %v2248 = vpop.permute.xlu0 %2247
      %2249 = vrot.lane.b32.xlu0 %v1999, 32
      %v2250 = vpop.permute.xlu0 %2249
      %2251 = vrot.lane.b32.xlu0 %v2000, 32
      %v2252 = vpop.permute.xlu0 %2251
      %2253 = vrot.lane.b32.xlu0 %v2001, 32
      %v2254 = vpop.permute.xlu0 %2253
      %2255 = vrot.lane.b32.xlu0 %v2002, 32
      %v2256 = vpop.permute.xlu0 %2255
      %2257 = vrot.lane.b32.xlu0 %v2003, 32
      %v2258 = vpop.permute.xlu0 %2257
      %2259 = vrot.lane.b32.xlu0 %v2004, 32
      %v2260 = vpop.permute.xlu0 %2259
      %vm2277 = vcmask 130048
      %v2278 = vsel %vm2277, %v1845, %v2166
      %v2279 = vsel %vm2277, %v1846, %v2168
      %v2280 = vsel %vm2277, %v1847, %v2170
      %v2281 = vsel %vm2277, %v1848, %v2172
      %v2282 = vsel %vm2277, %v1849, %v2174
      %v2283 = vsel %vm2277, %v1850, %v2176
      %v2284 = vsel %vm2277, %v1851, %v2178
      %v2285 = vsel %vm2277, %v1852, %v2180
      %v2286 = vsel %vm2277, %v1853, %v2182
      %v2287 = vsel %vm2277, %v1854, %v2184
      %v2288 = vsel %vm2277, %v1855, %v2186
      %v2289 = vsel %vm2277, %v1856, %v2188
      %v2290 = vsel %vm2277, %v1857, %v2190
      %v2291 = vsel %vm2277, %v1858, %v2192
      %v2292 = vsel %vm2277, %v1859, %v2194
      %v2293 = vsel %vm2277, %v1860, %v2196
      %vm2294 = vcmask 261120
      %v2295 = vsel %vm2294, %v2278, %v2230
      %v2296 = vsel %vm2294, %v2279, %v2232
      %v2297 = vsel %vm2294, %v2280, %v2234
      %v2298 = vsel %vm2294, %v2281, %v2236
      %v2299 = vsel %vm2294, %v2282, %v2238
      %v2300 = vsel %vm2294, %v2283, %v2240
      %v2301 = vsel %vm2294, %v2284, %v2242
      %v2302 = vsel %vm2294, %v2285, %v2244
      %v2303 = vsel %vm2294, %v2286, %v2246
      %v2304 = vsel %vm2294, %v2287, %v2248
      %v2305 = vsel %vm2294, %v2288, %v2250
      %v2306 = vsel %vm2294, %v2289, %v2252
      %v2307 = vsel %vm2294, %v2290, %v2254
      %v2308 = vsel %vm2294, %v2291, %v2256
      %v2309 = vsel %vm2294, %v2292, %v2258
      %v2310 = vsel %vm2294, %v2293, %v2260
      %v2311 = vld [vmem:[#allocation8] sm:$0xff]
      %v2312 = vld [vmem:[#allocation8 + $0x8] sm:$0xff]
      %v2313 = vld [vmem:[#allocation8 + $0x10] sm:$0xff]
      %v2314 = vld [vmem:[#allocation8 + $0x18] sm:$0xff]
      %v2315 = vld [vmem:[#allocation8 + $0x20] sm:$0xff]
      %v2316 = vld [vmem:[#allocation8 + $0x28] sm:$0xff]
      %v2317 = vld [vmem:[#allocation8 + $0x30] sm:$0xff]
      %v2318 = vld [vmem:[#allocation8 + $0x38] sm:$0xff]
      %v2319 = vld [vmem:[#allocation8 + $0x40] sm:$0xff]
      %v2320 = vld [vmem:[#allocation8 + $0x48] sm:$0xff]
      %v2321 = vld [vmem:[#allocation8 + $0x50] sm:$0xff]
      %v2322 = vld [vmem:[#allocation8 + $0x58] sm:$0xff]
      %v2323 = vld [vmem:[#allocation8 + $0x60] sm:$0xff]
      %v2324 = vld [vmem:[#allocation8 + $0x68] sm:$0xff]
      %v2325 = vld [vmem:[#allocation8 + $0x70] sm:$0xff]
      %v2326 = vld [vmem:[#allocation8 + $0x78] sm:$0xff]
      %v2327 = vld [vmem:[#allocation11] sm:$0xff]
      %v2328 = vld [vmem:[#allocation11 + $0x8] sm:$0xff]
      %v2329 = vld [vmem:[#allocation11 + $0x10] sm:$0xff]
      %v2330 = vld [vmem:[#allocation11 + $0x18] sm:$0xff]
      %v2331 = vld [vmem:[#allocation11 + $0x20] sm:$0xff]
      %v2332 = vld [vmem:[#allocation11 + $0x28] sm:$0xff]
      %vm2333 = vcmask 392192
      %v2335 = vsel %vm2333, %v2295, 0
      %v2338 = vsel %vm2333, %v2296, 0
      %v2341 = vsel %vm2333, %v2297, 0
      %v2344 = vsel %vm2333, %v2298, 0
      %v2347 = vsel %vm2333, %v2299, 0
      %v2350 = vsel %vm2333, %v2300, 0
      %v2353 = vsel %vm2333, %v2301, 0
      %v2356 = vsel %vm2333, %v2302, 0
      %v2359 = vsel %vm2333, %v2303, 0
      %v2362 = vsel %vm2333, %v2304, 0
      %v2365 = vsel %vm2333, %v2305, 0
      %v2368 = vsel %vm2333, %v2306, 0
      %v2371 = vsel %vm2333, %v2307, 0
      %v2374 = vsel %vm2333, %v2308, 0
      %v2377 = vsel %vm2333, %v2309, 0
      %v2380 = vsel %vm2333, %v2310, 0
      %2382 = vmatprep.subr.mxu0 0.0
      %2383 = vmatpush1.msra.mxu0 %v2327
      %2384 = vmatprep.subr.mxu0 0.0
      %2385 = vmatpush1.msra.mxu0 %v2328
      %2386 = vmatprep.subr.mxu0 0.0
      %2387 = vmatpush1.msra.mxu0 %v2329
      %2388 = vmatprep.subr.mxu0 0.0
      %2389 = vmatpush1.msra.mxu0 %v2330
      %2390 = vmatprep.subr.mxu0 0.0
      %2391 = vmatpush1.msra.mxu0 %v2331
      %2392 = vmatprep.subr.mxu0 0.0
      %2393 = vmatpush1.msra.mxu0 %v2332
      %2394 = vmatprep.subr.mxu0 0.0
      %2395 = vmatpush1.msra.mxu0 0.0
      %2396 = vmatprep.subr.mxu0 0.0
      %2397 = vmatpush1.msra.mxu0 0.0
      %2398 = vmatprep.subr.mxu0 0.0
      %2399 = vmatpush1.msra.mxu0 0.0
      %2400 = vmatprep.subr.mxu0 0.0
      %2401 = vmatpush1.msra.mxu0 0.0
      %2402 = vmatprep.subr.mxu0 0.0
      %2403 = vmatpush1.msra.mxu0 0.0
      %2404 = vmatprep.subr.mxu0 0.0
      %2405 = vmatpush1.msra.mxu0 0.0
      %2406 = vmatprep.subr.mxu0 0.0
      %2407 = vmatpush1.msra.mxu0 0.0
      %2408 = vmatprep.subr.mxu0 0.0
      %2409 = vmatpush1.msra.mxu0 0.0
      %2410 = vmatprep.subr.mxu0 0.0
      %2411 = vmatpush1.msra.mxu0 0.0
      %2412 = vmatprep.subr.mxu0 0.0
      %2413 = vmatpush1.msra.mxu0 0.0
      %2414 = vmatprep.subr.mxu0 0.0
      %2415 = vmatpush1.msra.mxu0 0.0
      %2416 = vmatprep.subr.mxu0 0.0
      %2417 = vmatpush1.msra.mxu0 0.0
      %2418 = vmatprep.subr.mxu0 0.0
      %2419 = vmatpush1.msra.mxu0 0.0
      %2420 = vmatprep.subr.mxu0 0.0
      %2421 = vmatpush1.msra.mxu0 0.0
      %2422 = vmatprep.subr.mxu0 0.0
      %2423 = vmatpush1.msra.mxu0 0.0
      %2424 = vmatprep.subr.mxu0 0.0
      %2425 = vmatpush1.msra.mxu0 0.0
      %2426 = vmatprep.subr.mxu0 0.0
      %2427 = vmatpush1.msra.mxu0 0.0
      %2428 = vmatprep.subr.mxu0 0.0
      %2429 = vmatpush1.msra.mxu0 0.0
      %2430 = vmatprep.subr.mxu0 0.0
      %2431 = vmatpush1.msra.mxu0 0.0
      %2432 = vmatprep.subr.mxu0 0.0
      %2433 = vmatpush1.msra.mxu0 0.0
      %2434 = vmatprep.subr.mxu0 0.0
      %2435 = vmatpush1.msra.mxu0 0.0
      %2436 = vmatprep.subr.mxu0 0.0
      %2437 = vmatpush1.msra.mxu0 0.0
      %2438 = vmatprep.subr.mxu0 0.0
      %2439 = vmatpush1.msra.mxu0 0.0
      %2440 = vmatprep.subr.mxu0 0.0
      %2441 = vmatpush1.msra.mxu0 0.0
      %2442 = vmatprep.subr.mxu0 0.0
      %2443 = vmatpush1.msra.mxu0 0.0
      %2444 = vmatprep.subr.mxu0 0.0
      %2445 = vmatpush1.msra.mxu0 0.0
      %2446 = vmatprep.mubr.f32.mxu0 0.0
      %2447 = vmatmul.mubr.f32.gmra.mrb[0].mxu0 %v2335
      %v2448 = vpop.f32.mrb[0].mxu0
      %v2449 = vadd.f32 0.0, %v2448
      %v2450 = vpop.f32.mrb[0].mxu0
      %2451 = vmatprep.mubr.f32.mxu0 0.0
      %2452 = vmatmul.mubr.f32.gmra.mrb[0].mxu0 %v2338
      %v2453 = vpop.f32.mrb[0].mxu0
      %v2454 = vadd.f32 0.0, %v2453
      %v2455 = vpop.f32.mrb[0].mxu0
      %2456 = vmatprep.mubr.f32.mxu0 0.0
      %2457 = vmatmul.mubr.f32.gmra.mrb[0].mxu0 %v2341
      %v2458 = vpop.f32.mrb[0].mxu0
      %v2459 = vadd.f32 0.0, %v2458
      %v2460 = vpop.f32.mrb[0].mxu0
      %2461 = vmatprep.mubr.f32.mxu0 0.0
      %2462 = vmatmul.mubr.f32.gmra.mrb[0].mxu0 %v2344
      %v2463 = vpop.f32.mrb[0].mxu0
      %v2464 = vadd.f32 0.0, %v2463
      %v2465 = vpop.f32.mrb[0].mxu0
      %2466 = vmatprep.mubr.f32.mxu0 0.0
      %2467 = vmatmul.mubr.f32.gmra.mrb[0].mxu0 %v2347
      %v2468 = vpop.f32.mrb[0].mxu0
      %v2469 = vadd.f32 0.0, %v2468
      %v2470 = vpop.f32.mrb[0].mxu0
      %2471 = vmatprep.mubr.f32.mxu0 0.0
      %2472 = vmatmul.mubr.f32.gmra.mrb[0].mxu0 %v2350
      %v2473 = vpop.f32.mrb[0].mxu0
      %v2474 = vadd.f32 0.0, %v2473
      %v2475 = vpop.f32.mrb[0].mxu0
      %2476 = vmatprep.mubr.f32.mxu0 0.0
      %2477 = vmatmul.mubr.f32.gmra.mrb[0].mxu0 %v2353
      %v2478 = vpop.f32.mrb[0].mxu0
      %v2479 = vadd.f32 0.0, %v2478
      %v2480 = vpop.f32.mrb[0].mxu0
      %2481 = vmatprep.mubr.f32.mxu0 0.0
      %2482 = vmatmul.mubr.f32.gmra.mrb[0].mxu0 %v2356
      %v2483 = vpop.f32.mrb[0].mxu0
      %v2484 = vadd.f32 0.0, %v2483
      %v2485 = vpop.f32.mrb[0].mxu0
      %2486 = vmatprep.mubr.f32.mxu0 0.0
      %2487 = vmatmul.mubr.f32.gmra.mrb[0].mxu0 %v2359
      %v2488 = vpop.f32.mrb[0].mxu0
      %v2489 = vadd.f32 0.0, %v2488
      %v2490 = vpop.f32.mrb[0].mxu0
      %2491 = vmatprep.mubr.f32.mxu0 0.0
      %2492 = vmatmul.mubr.f32.gmra.mrb[0].mxu0 %v2362
      %v2493 = vpop.f32.mrb[0].mxu0
      %v2494 = vadd.f32 0.0, %v2493
      %v2495 = vpop.f32.mrb[0].mxu0
      %2496 = vmatprep.mubr.f32.mxu0 0.0
      %2497 = vmatmul.mubr.f32.gmra.mrb[0].mxu0 %v2365
      %v2498 = vpop.f32.mrb[0].mxu0
      %v2499 = vadd.f32 0.0, %v2498
      %v2500 = vpop.f32.mrb[0].mxu0
      %2501 = vmatprep.mubr.f32.mxu0 0.0
      %2502 = vmatmul.mubr.f32.gmra.mrb[0].mxu0 %v2368
      %v2503 = vpop.f32.mrb[0].mxu0
      %v2504 = vadd.f32 0.0, %v2503
      %v2505 = vpop.f32.mrb[0].mxu0
      %2506 = vmatprep.mubr.f32.mxu0 0.0
      %2507 = vmatmul.mubr.f32.gmra.mrb[0].mxu0 %v2371
      %v2508 = vpop.f32.mrb[0].mxu0
      %v2509 = vadd.f32 0.0, %v2508
      %v2510 = vpop.f32.mrb[0].mxu0
      %2511 = vmatprep.mubr.f32.mxu0 0.0
      %2512 = vmatmul.mubr.f32.gmra.mrb[0].mxu0 %v2374
      %v2513 = vpop.f32.mrb[0].mxu0
      %v2514 = vadd.f32 0.0, %v2513
      %v2515 = vpop.f32.mrb[0].mxu0
      %2516 = vmatprep.mubr.f32.mxu0 0.0
      %2517 = vmatmul.mubr.f32.gmra.mrb[0].mxu0 %v2377
      %v2518 = vpop.f32.mrb[0].mxu0
      %v2519 = vadd.f32 0.0, %v2518
      %v2520 = vpop.f32.mrb[0].mxu0
      %2521 = vmatprep.mubr.f32.mxu0 0.0
      %2522 = vmatmul.mubr.f32.gmra.mrb[0].mxu0 %v2380
      %v2523 = vpop.f32.mrb[0].mxu0
      %v2524 = vadd.f32 0.0, %v2523
      %v2525 = vpop.f32.mrb[0].mxu0
      %2526 = vdwg.mxu0
      %2527 = vmatprep.subr.mxu0 0.0
      %2528 = vmatpush1.msra.mxu0 %v2311
      %2529 = vmatprep.subr.mxu0 0.0
      %2530 = vmatpush1.msra.mxu0 %v2312
      %2531 = vmatprep.subr.mxu0 0.0
      %2532 = vmatpush1.msra.mxu0 %v2313
      %2533 = vmatprep.subr.mxu0 0.0
      %2534 = vmatpush1.msra.mxu0 %v2314
      %2535 = vmatprep.subr.mxu0 0.0
      %2536 = vmatpush1.msra.mxu0 %v2315
      %2537 = vmatprep.subr.mxu0 0.0
      %2538 = vmatpush1.msra.mxu0 %v2316
      %2539 = vmatprep.subr.mxu0 0.0
      %2540 = vmatpush1.msra.mxu0 %v2317
      %2541 = vmatprep.subr.mxu0 0.0
      %2542 = vmatpush1.msra.mxu0 %v2318
      %2543 = vmatprep.subr.mxu0 0.0
      %2544 = vmatpush1.msra.mxu0 %v2319
      %2545 = vmatprep.subr.mxu0 0.0
      %2546 = vmatpush1.msra.mxu0 %v2320
      %2547 = vmatprep.subr.mxu0 0.0
      %2548 = vmatpush1.msra.mxu0 %v2321
      %2549 = vmatprep.subr.mxu0 0.0
      %2550 = vmatpush1.msra.mxu0 %v2322
      %2551 = vmatprep.subr.mxu0 0.0
      %2552 = vmatpush1.msra.mxu0 %v2323
      %2553 = vmatprep.subr.mxu0 0.0
      %2554 = vmatpush1.msra.mxu0 %v2324
      %2555 = vmatprep.subr.mxu0 0.0
      %2556 = vmatpush1.msra.mxu0 %v2325
      %2557 = vmatprep.subr.mxu0 0.0
      %2558 = vmatpush1.msra.mxu0 %v2326
      %2559 = vmatprep.subr.mxu0 0.0
      %2560 = vmatpush1.msra.mxu0 0.0
      %2561 = vmatprep.subr.mxu0 0.0
      %2562 = vmatpush1.msra.mxu0 0.0
      %2563 = vmatprep.subr.mxu0 0.0
      %2564 = vmatpush1.msra.mxu0 0.0
      %2565 = vmatprep.subr.mxu0 0.0
      %2566 = vmatpush1.msra.mxu0 0.0
      %2567 = vmatprep.subr.mxu0 0.0
      %2568 = vmatpush1.msra.mxu0 0.0
      %2569 = vmatprep.subr.mxu0 0.0
      %2570 = vmatpush1.msra.mxu0 0.0
      %2571 = vmatprep.subr.mxu0 0.0
      %2572 = vmatpush1.msra.mxu0 0.0
      %2573 = vmatprep.subr.mxu0 0.0
      %2574 = vmatpush1.msra.mxu0 0.0
      %2575 = vmatprep.subr.mxu0 0.0
      %2576 = vmatpush1.msra.mxu0 0.0
      %2577 = vmatprep.subr.mxu0 0.0
      %2578 = vmatpush1.msra.mxu0 0.0
      %2579 = vmatprep.subr.mxu0 0.0
      %2580 = vmatpush1.msra.mxu0 0.0
      %2581 = vmatprep.subr.mxu0 0.0
      %2582 = vmatpush1.msra.mxu0 0.0
      %2583 = vmatprep.subr.mxu0 0.0
      %2584 = vmatpush1.msra.mxu0 0.0
      %2585 = vmatprep.subr.mxu0 0.0
      %2586 = vmatpush1.msra.mxu0 0.0
      %2587 = vmatprep.subr.mxu0 0.0
      %2588 = vmatpush1.msra.mxu0 0.0
      %2589 = vmatprep.subr.mxu0 0.0
      %2590 = vmatpush1.msra.mxu0 0.0
      %2591 = vmatprep.mubr.f32.mxu0 0.0
      %2592 = vmatmul.mubr.f32.gmra.mrb[0].mxu0 %v2133
      %v2593 = vpop.f32.mrb[0].mxu0
      %v2594 = vadd.f32 %v2449, %v2593
      %v2595 = vpop.f32.mrb[0].mxu0
      %2596 = vmatprep.mubr.f32.mxu0 0.0
      %2597 = vmatmul.mubr.f32.gmra.mrb[0].mxu0 %v2134
      %v2598 = vpop.f32.mrb[0].mxu0
      %v2599 = vadd.f32 %v2454, %v2598
      %v2600 = vpop.f32.mrb[0].mxu0
      %2601 = vmatprep.mubr.f32.mxu0 0.0
      %2602 = vmatmul.mubr.f32.gmra.mrb[0].mxu0 %v2135
      %v2603 = vpop.f32.mrb[0].mxu0
      %v2604 = vadd.f32 %v2459, %v2603
      %v2605 = vpop.f32.mrb[0].mxu0
      %2606 = vmatprep.mubr.f32.mxu0 0.0
      %2607 = vmatmul.mubr.f32.gmra.mrb[0].mxu0 %v2136
      %v2608 = vpop.f32.mrb[0].mxu0
      %v2609 = vadd.f32 %v2464, %v2608
      %v2610 = vpop.f32.mrb[0].mxu0
      %2611 = vmatprep.mubr.f32.mxu0 0.0
      %2612 = vmatmul.mubr.f32.gmra.mrb[0].mxu0 %v2137
      %v2613 = vpop.f32.mrb[0].mxu0
      %v2614 = vadd.f32 %v2469, %v2613
      %v2615 = vpop.f32.mrb[0].mxu0
      %2616 = vmatprep.mubr.f32.mxu0 0.0
      %2617 = vmatmul.mubr.f32.gmra.mrb[0].mxu0 %v2138
      %v2618 = vpop.f32.mrb[0].mxu0
      %v2619 = vadd.f32 %v2474, %v2618
      %v2620 = vpop.f32.mrb[0].mxu0
      %2621 = vmatprep.mubr.f32.mxu0 0.0
      %2622 = vmatmul.mubr.f32.gmra.mrb[0].mxu0 %v2139
      %v2623 = vpop.f32.mrb[0].mxu0
      %v2624 = vadd.f32 %v2479, %v2623
      %v2625 = vpop.f32.mrb[0].mxu0
      %2626 = vmatprep.mubr.f32.mxu0 0.0
      %2627 = vmatmul.mubr.f32.gmra.mrb[0].mxu0 %v2140
      %v2628 = vpop.f32.mrb[0].mxu0
      %v2629 = vadd.f32 %v2484, %v2628
      %v2630 = vpop.f32.mrb[0].mxu0
      %2631 = vmatprep.mubr.f32.mxu0 0.0
      %2632 = vmatmul.mubr.f32.gmra.mrb[0].mxu0 %v2141
      %v2633 = vpop.f32.mrb[0].mxu0
      %v2634 = vadd.f32 %v2489, %v2633
      %v2635 = vpop.f32.mrb[0].mxu0
      %2636 = vmatprep.mubr.f32.mxu0 0.0
      %2637 = vmatmul.mubr.f32.gmra.mrb[0].mxu0 %v2142
      %v2638 = vpop.f32.mrb[0].mxu0
      %v2639 = vadd.f32 %v2494, %v2638
      %v2640 = vpop.f32.mrb[0].mxu0
      %2641 = vmatprep.mubr.f32.mxu0 0.0
      %2642 = vmatmul.mubr.f32.gmra.mrb[0].mxu0 %v2143
      %v2643 = vpop.f32.mrb[0].mxu0
      %v2644 = vadd.f32 %v2499, %v2643
      %v2645 = vpop.f32.mrb[0].mxu0
      %2646 = vmatprep.mubr.f32.mxu0 0.0
      %2647 = vmatmul.mubr.f32.gmra.mrb[0].mxu0 %v2144
      %v2648 = vpop.f32.mrb[0].mxu0
      %v2649 = vadd.f32 %v2504, %v2648
      %v2650 = vpop.f32.mrb[0].mxu0
      %2651 = vmatprep.mubr.f32.mxu0 0.0
      %2652 = vmatmul.mubr.f32.gmra.mrb[0].mxu0 %v2145
      %v2653 = vpop.f32.mrb[0].mxu0
      %v2654 = vadd.f32 %v2509, %v2653
      %v2655 = vpop.f32.mrb[0].mxu0
      %2656 = vmatprep.mubr.f32.mxu0 0.0
      %2657 = vmatmul.mubr.f32.gmra.mrb[0].mxu0 %v2146
      %v2658 = vpop.f32.mrb[0].mxu0
      %v2659 = vadd.f32 %v2514, %v2658
      %v2660 = vpop.f32.mrb[0].mxu0
      %2661 = vmatprep.mubr.f32.mxu0 0.0
      %2662 = vmatmul.mubr.f32.gmra.mrb[0].mxu0 %v2147
      %v2663 = vpop.f32.mrb[0].mxu0
      %v2664 = vadd.f32 %v2519, %v2663
      %v2665 = vpop.f32.mrb[0].mxu0
      %2666 = vmatprep.mubr.f32.mxu0 0.0
      %2667 = vmatmul.mubr.f32.gmra.mrb[0].mxu0 %v2148
      %v2668 = vpop.f32.mrb[0].mxu0
      %v2669 = vadd.f32 %v2524, %v2668
      %v2670 = vpop.f32.mrb[0].mxu0
      %2671 = vdwg.mxu0
      %v2672 = vld [vmem:[%s8] sm:$0x1]
      %v2674 = vlaneseq
      %v2675 = vshrl.u32 %v2674, 7
      %v2676 = vsub.s32 0, %v2675
      %v2677 = vrot.slane %v2672, %v2676
      %v2679 = vadd.f32 %v2594, %v2677
      %v2680 = vadd.f32 %v2599, %v2677
      %v2681 = vadd.f32 %v2604, %v2677
      %v2682 = vadd.f32 %v2609, %v2677
      %v2683 = vadd.f32 %v2614, %v2677
      %v2684 = vadd.f32 %v2619, %v2677
      %v2685 = vadd.f32 %v2624, %v2677
      %v2686 = vadd.f32 %v2629, %v2677
      %v2687 = vadd.f32 %v2634, %v2677
      %v2688 = vadd.f32 %v2639, %v2677
      %v2689 = vadd.f32 %v2644, %v2677
      %v2690 = vadd.f32 %v2649, %v2677
      %v2691 = vadd.f32 %v2654, %v2677
      %v2692 = vadd.f32 %v2659, %v2677
      %v2693 = vadd.f32 %v2664, %v2677
      %v2694 = vadd.f32 %v2669, %v2677
      %v2695 = vmax.f32 %v2679, 0.0
      %v2696 = vmax.f32 %v2680, 0.0
      %v2697 = vmax.f32 %v2681, 0.0
      %v2698 = vmax.f32 %v2682, 0.0
      %v2699 = vmax.f32 %v2683, 0.0
      %v2700 = vmax.f32 %v2684, 0.0
      %v2701 = vmax.f32 %v2685, 0.0
      %v2702 = vmax.f32 %v2686, 0.0
      %v2703 = vmax.f32 %v2687, 0.0
      %v2704 = vmax.f32 %v2688, 0.0
      %v2705 = vmax.f32 %v2689, 0.0
      %v2706 = vmax.f32 %v2690, 0.0
      %v2707 = vmax.f32 %v2691, 0.0
      %v2708 = vmax.f32 %v2692, 0.0
      %v2709 = vmax.f32 %v2693, 0.0
      %v2710 = vmax.f32 %v2694, 0.0
      %v2711 = vld [vmem:[#allocation13] sm:$0xff]
      %v2712 = vld [vmem:[#allocation13 + $0x8] sm:$0xff]
      %v2713 = vld [vmem:[#allocation13 + $0x10] sm:$0xff]
      %v2714 = vld [vmem:[#allocation13 + $0x18] sm:$0xff]
      %v2715 = vld [vmem:[#allocation13 + $0x20] sm:$0xff]
      %v2716 = vld [vmem:[#allocation13 + $0x28] sm:$0xff]
      %v2717 = vld [vmem:[#allocation13 + $0x30] sm:$0xff]
      %v2718 = vld [vmem:[#allocation13 + $0x38] sm:$0xff]
      %v2719 = vld [vmem:[#allocation13 + $0x40] sm:$0xff]
      %v2720 = vld [vmem:[#allocation13 + $0x48] sm:$0xff]
      %v2721 = vld [vmem:[#allocation13 + $0x50] sm:$0xff]
      %v2722 = vld [vmem:[#allocation13 + $0x58] sm:$0xff]
      %v2723 = vld [vmem:[#allocation13 + $0x60] sm:$0xff]
      %v2724 = vld [vmem:[#allocation13 + $0x68] sm:$0xff]
      %v2725 = vld [vmem:[#allocation13 + $0x70] sm:$0xff]
      %v2726 = vld [vmem:[#allocation13 + $0x78] sm:$0xff]
      %v2727 = vld [vmem:[%s10] sm:$0x1]
      %v2729 = vlaneseq
      %v2730 = vshrl.u32 %v2729, 7
      %v2731 = vsub.s32 0, %v2730
      %v2732 = vrot.slane %v2727, %v2731
      %2734 = vmatprep.subr.mxu0 0.0
      %2735 = vmatpush1.msra.mxu0 %v2711
      %2736 = vmatprep.subr.mxu0 0.0
      %2737 = vmatpush1.msra.mxu0 %v2712
      %2738 = vmatprep.subr.mxu0 0.0
      %2739 = vmatpush1.msra.mxu0 %v2713
      %2740 = vmatprep.subr.mxu0 0.0
      %2741 = vmatpush1.msra.mxu0 %v2714
      %2742 = vmatprep.subr.mxu0 0.0
      %2743 = vmatpush1.msra.mxu0 %v2715
      %2744 = vmatprep.subr.mxu0 0.0
      %2745 = vmatpush1.msra.mxu0 %v2716
      %2746 = vmatprep.subr.mxu0 0.0
      %2747 = vmatpush1.msra.mxu0 %v2717
      %2748 = vmatprep.subr.mxu0 0.0
      %2749 = vmatpush1.msra.mxu0 %v2718
      %2750 = vmatprep.subr.mxu0 0.0
      %2751 = vmatpush1.msra.mxu0 %v2719
      %2752 = vmatprep.subr.mxu0 0.0
      %2753 = vmatpush1.msra.mxu0 %v2720
      %2754 = vmatprep.subr.mxu0 0.0
      %2755 = vmatpush1.msra.mxu0 %v2721
      %2756 = vmatprep.subr.mxu0 0.0
      %2757 = vmatpush1.msra.mxu0 %v2722
      %2758 = vmatprep.subr.mxu0 0.0
      %2759 = vmatpush1.msra.mxu0 %v2723
      %2760 = vmatprep.subr.mxu0 0.0
      %2761 = vmatpush1.msra.mxu0 %v2724
      %2762 = vmatprep.subr.mxu0 0.0
      %2763 = vmatpush1.msra.mxu0 %v2725
      %2764 = vmatprep.subr.mxu0 0.0
      %2765 = vmatpush1.msra.mxu0 %v2726
      %2766 = vmatprep.subr.mxu0 0.0
      %2767 = vmatpush1.msra.mxu0 0.0
      %2768 = vmatprep.subr.mxu0 0.0
      %2769 = vmatpush1.msra.mxu0 0.0
      %2770 = vmatprep.subr.mxu0 0.0
      %2771 = vmatpush1.msra.mxu0 0.0
      %2772 = vmatprep.subr.mxu0 0.0
      %2773 = vmatpush1.msra.mxu0 0.0
      %2774 = vmatprep.subr.mxu0 0.0
      %2775 = vmatpush1.msra.mxu0 0.0
      %2776 = vmatprep.subr.mxu0 0.0
      %2777 = vmatpush1.msra.mxu0 0.0
      %2778 = vmatprep.subr.mxu0 0.0
      %2779 = vmatpush1.msra.mxu0 0.0
      %2780 = vmatprep.subr.mxu0 0.0
      %2781 = vmatpush1.msra.mxu0 0.0
      %2782 = vmatprep.subr.mxu0 0.0
      %2783 = vmatpush1.msra.mxu0 0.0
      %2784 = vmatprep.subr.mxu0 0.0
      %2785 = vmatpush1.msra.mxu0 0.0
      %2786 = vmatprep.subr.mxu0 0.0
      %2787 = vmatpush1.msra.mxu0 0.0
      %2788 = vmatprep.subr.mxu0 0.0
      %2789 = vmatpush1.msra.mxu0 0.0
      %2790 = vmatprep.subr.mxu0 0.0
      %2791 = vmatpush1.msra.mxu0 0.0
      %2792 = vmatprep.subr.mxu0 0.0
      %2793 = vmatpush1.msra.mxu0 0.0
      %2794 = vmatprep.subr.mxu0 0.0
      %2795 = vmatpush1.msra.mxu0 0.0
      %2796 = vmatprep.subr.mxu0 0.0
      %2797 = vmatpush1.msra.mxu0 0.0
      %2798 = vmatprep.mubr.f32.mxu0 0.0
      %2799 = vmatmul.mubr.f32.gmra.mrb[0].mxu0 %v2695
      %v2800 = vpop.f32.mrb[0].mxu0
      %v2801 = vadd.f32 %v2732, %v2800
      %v2802 = vpop.f32.mrb[0].mxu0
      %2803 = vmatprep.mubr.f32.mxu0 0.0
      %2804 = vmatmul.mubr.f32.gmra.mrb[0].mxu0 %v2696
      %v2805 = vpop.f32.mrb[0].mxu0
      %v2806 = vadd.f32 %v2732, %v2805
      %v2807 = vpop.f32.mrb[0].mxu0
      %2808 = vmatprep.mubr.f32.mxu0 0.0
      %2809 = vmatmul.mubr.f32.gmra.mrb[0].mxu0 %v2697
      %v2810 = vpop.f32.mrb[0].mxu0
      %v2811 = vadd.f32 %v2732, %v2810
      %v2812 = vpop.f32.mrb[0].mxu0
      %2813 = vmatprep.mubr.f32.mxu0 0.0
      %2814 = vmatmul.mubr.f32.gmra.mrb[0].mxu0 %v2698
      %v2815 = vpop.f32.mrb[0].mxu0
      %v2816 = vadd.f32 %v2732, %v2815
      %v2817 = vpop.f32.mrb[0].mxu0
      %2818 = vmatprep.mubr.f32.mxu0 0.0
      %2819 = vmatmul.mubr.f32.gmra.mrb[0].mxu0 %v2699
      %v2820 = vpop.f32.mrb[0].mxu0
      %v2821 = vadd.f32 %v2732, %v2820
      %v2822 = vpop.f32.mrb[0].mxu0
      %2823 = vmatprep.mubr.f32.mxu0 0.0
      %2824 = vmatmul.mubr.f32.gmra.mrb[0].mxu0 %v2700
      %v2825 = vpop.f32.mrb[0].mxu0
      %v2826 = vadd.f32 %v2732, %v2825
      %v2827 = vpop.f32.mrb[0].mxu0
      %2828 = vmatprep.mubr.f32.mxu0 0.0
      %2829 = vmatmul.mubr.f32.gmra.mrb[0].mxu0 %v2701
      %v2830 = vpop.f32.mrb[0].mxu0
      %v2831 = vadd.f32 %v2732, %v2830
      %v2832 = vpop.f32.mrb[0].mxu0
      %2833 = vmatprep.mubr.f32.mxu0 0.0
      %2834 = vmatmul.mubr.f32.gmra.mrb[0].mxu0 %v2702
      %v2835 = vpop.f32.mrb[0].mxu0
      %v2836 = vadd.f32 %v2732, %v2835
      %v2837 = vpop.f32.mrb[0].mxu0
      %2838 = vmatprep.mubr.f32.mxu0 0.0
      %2839 = vmatmul.mubr.f32.gmra.mrb[0].mxu0 %v2703
      %v2840 = vpop.f32.mrb[0].mxu0
      %v2841 = vadd.f32 %v2732, %v2840
      %v2842 = vpop.f32.mrb[0].mxu0
      %2843 = vmatprep.mubr.f32.mxu0 0.0
      %2844 = vmatmul.mubr.f32.gmra.mrb[0].mxu0 %v2704
      %v2845 = vpop.f32.mrb[0].mxu0
      %v2846 = vadd.f32 %v2732, %v2845
      %v2847 = vpop.f32.mrb[0].mxu0
      %2848 = vmatprep.mubr.f32.mxu0 0.0
      %2849 = vmatmul.mubr.f32.gmra.mrb[0].mxu0 %v2705
      %v2850 = vpop.f32.mrb[0].mxu0
      %v2851 = vadd.f32 %v2732, %v2850
      %v2852 = vpop.f32.mrb[0].mxu0
      %2853 = vmatprep.mubr.f32.mxu0 0.0
      %2854 = vmatmul.mubr.f32.gmra.mrb[0].mxu0 %v2706
      %v2855 = vpop.f32.mrb[0].mxu0
      %v2856 = vadd.f32 %v2732, %v2855
      %v2857 = vpop.f32.mrb[0].mxu0
      %2858 = vmatprep.mubr.f32.mxu0 0.0
      %2859 = vmatmul.mubr.f32.gmra.mrb[0].mxu0 %v2707
      %v2860 = vpop.f32.mrb[0].mxu0
      %v2861 = vadd.f32 %v2732, %v2860
      %v2862 = vpop.f32.mrb[0].mxu0
      %2863 = vmatprep.mubr.f32.mxu0 0.0
      %2864 = vmatmul.mubr.f32.gmra.mrb[0].mxu0 %v2708
      %v2865 = vpop.f32.mrb[0].mxu0
      %v2866 = vadd.f32 %v2732, %v2865
      %v2867 = vpop.f32.mrb[0].mxu0
      %2868 = vmatprep.mubr.f32.mxu0 0.0
      %2869 = vmatmul.mubr.f32.gmra.mrb[0].mxu0 %v2709
      %v2870 = vpop.f32.mrb[0].mxu0
      %v2871 = vadd.f32 %v2732, %v2870
      %v2872 = vpop.f32.mrb[0].mxu0
      %2873 = vmatprep.mubr.f32.mxu0 0.0
      %2874 = vmatmul.mubr.f32.gmra.mrb[0].mxu0 %v2710
      %v2875 = vpop.f32.mrb[0].mxu0
      %v2876 = vadd.f32 %v2732, %v2875
      %v2877 = vpop.f32.mrb[0].mxu0
      %2878 = vdwg.mxu0
      %v2879 = vadd.f32 %v2801, %v2133
      %v2880 = vadd.f32 %v2806, %v2134
      %v2881 = vadd.f32 %v2811, %v2135
      %v2882 = vadd.f32 %v2816, %v2136
      %v2883 = vadd.f32 %v2821, %v2137
      %v2884 = vadd.f32 %v2826, %v2138
      %v2885 = vadd.f32 %v2831, %v2139
      %v2886 = vadd.f32 %v2836, %v2140
      %v2887 = vadd.f32 %v2841, %v2141
      %v2888 = vadd.f32 %v2846, %v2142
      %v2889 = vadd.f32 %v2851, %v2143
      %v2890 = vadd.f32 %v2856, %v2144
      %v2891 = vadd.f32 %v2861, %v2145
      %v2892 = vadd.f32 %v2866, %v2146
      %v2893 = vadd.f32 %v2871, %v2147
      %v2894 = vadd.f32 %v2876, %v2148
      %2895 = vst [vmem:[#allocation14] sm:$0xff] %v2879
      %2896 = vst [vmem:[#allocation14 + $0x8] sm:$0xff] %v2880
      %2897 = vst [vmem:[#allocation14 + $0x10] sm:$0xff] %v2881
      %2898 = vst [vmem:[#allocation14 + $0x18] sm:$0xff] %v2882
      %2899 = vst [vmem:[#allocation14 + $0x20] sm:$0xff] %v2883
      %2900 = vst [vmem:[#allocation14 + $0x28] sm:$0xff] %v2884
      %2901 = vst [vmem:[#allocation14 + $0x30] sm:$0xff] %v2885
      %2902 = vst [vmem:[#allocation14 + $0x38] sm:$0xff] %v2886
      %2903 = vst [vmem:[#allocation14 + $0x40] sm:$0xff] %v2887
      %2904 = vst [vmem:[#allocation14 + $0x48] sm:$0xff] %v2888
      %2905 = vst [vmem:[#allocation14 + $0x50] sm:$0xff] %v2889
      %2906 = vst [vmem:[#allocation14 + $0x58] sm:$0xff] %v2890
      %2907 = vst [vmem:[#allocation14 + $0x60] sm:$0xff] %v2891
      %2908 = vst [vmem:[#allocation14 + $0x68] sm:$0xff] %v2892
      %2909 = vst [vmem:[#allocation14 + $0x70] sm:$0xff] %v2893
      %2910 = vst [vmem:[#allocation14 + $0x78] sm:$0xff] %v2894
    $region61: #{tpu_custom_call.1} parent=1 // pred_fallthru
      _
    // Predicated region
    $region62: #{tpu_custom_call.1} parent=1 // pred_check
      _
    $region63: #{tpu_custom_call.1} parent=1 // pred_check_branch
      %2912 = sbr.rel (0) target = $region65
    $region64: #{tpu_custom_call.1} parent=1 // pred_region
      %s2914 = ssub.s32 2048, 2048
      %2915 = vsyncadd [#allocation10], %s2914
      %s2916 = sshll.u32 [#allocation14], 4
      %s2917 = int_to_ptr.vmem [resolvable:$true] %s2916
      %2922 = dma.vmem_to_hbm [thread:$0]  %s2917, 2048, %s11, [#allocation10], 128, 128, 8
    $region65: #{tpu_custom_call.1} parent=1 // pred_fallthru
      _
    // Predicated region
    $region66: #{tpu_custom_call.1} parent=1 // pred_check
      _
    $region67: #{tpu_custom_call.1} parent=1 // pred_check_branch
      %2924 = sbr.rel (0) target = $region69
    $region68: #{tpu_custom_call.1} parent=1 // pred_region
      %2925 = dma.done [#allocation10], 2048
    $region69: #{tpu_custom_call.1} parent=1 // pred_fallthru
      _
    %2926 = vsyncpa [#allocation9], 1
    %2927 = vsyncpa [#allocation12], 1
    %2928 = vsyncpa [#allocation10], 1

</llo_original>
